<compile_context>
chip_gen: v7x
topology: tpu7x:2x2x1
jax: 0.10.0
libtpu: 0.0.40
codegen_flags: <defaults>
</compile_context>

<pallas_src>
import functools

import jax
import jax.numpy as jnp
from jax.experimental import pallas as pl
from jax.experimental.pallas import tpu as pltpu  # noqa: F401  (TPU backend)

LANES = 128
MAP_DIM = 2304

# --- row indices into the packed (22, 128) vector table ----------------------
(V_BM1, V_GM1, V_BETAM1,
 V_BM2, V_GM2, V_BETAM2,
 V_BS1, V_GS1, V_BETAS1,
 V_BS2,
 V_BC1, V_GC1, V_BETAC1,
 V_BC2,
 V_BF1, V_GF, V_BETAF,
 V_BF2,
 V_BG1, V_GG, V_BETAG,
 V_BG2) = range(22)

# --- indices into the packed (13, 128, 128) matrix table ---------------------
(M_WM2, M_WS1, M_WS2, M_WC1, M_WC2,
 M_WF1_POSE, M_WF1_CMD, M_WF1_ELEV, M_WF2,
 M_WG1_POSE, M_WG1_CMD, M_WG1_ELEV, M_WG2) = range(13)


# -----------------------------------------------------------------------------
# The single fused Pallas kernel
# -----------------------------------------------------------------------------
def _tal_kernel(elev_ref, pose_ref, cmd_ref, wm1_ref, mats_ref, vecs_ref, out_ref):
    f32 = jnp.float32
    vecs = vecs_ref[...]                              # (22, 128) f32, ~3 vregs

    def vrow(i):                                      # (1, 128) broadcast row
        return vecs[i:i + 1, :]

    def mat(i):                                       # (128, 128) weight block
        return mats_ref[i]

    def layernorm(x, n, g_idx, b_idx, eps=1e-5):
        # LayerNorm over the first `n` lanes; padded lanes are 0 on input and
        # stay 0 on output (gamma / beta are zero-padded).
        mean = jnp.sum(x, axis=-1, keepdims=True) * (1.0 / n)
        lane = jax.lax.broadcasted_iota(jnp.int32, x.shape, 1)
        centered = jnp.where(lane < n, x - mean, 0.0)
        var = jnp.sum(centered * centered, axis=-1, keepdims=True) * (1.0 / n)
        inv = jax.lax.rsqrt(var + eps)
        return centered * inv * vrow(g_idx) + vrow(b_idx)

    # ---- map_process_fc: Linear(2304,128) LN Tanh [Drop] Linear(128,16) LN Tanh [Drop]
    h = jnp.dot(elev_ref[...], wm1_ref[...], preferred_element_type=f32) + vrow(V_BM1)
    h = jnp.tanh(layernorm(h, 128, V_GM1, V_BETAM1))
    h = jnp.dot(h, mat(M_WM2), preferred_element_type=f32) + vrow(V_BM2)
    elev_feat = jnp.tanh(layernorm(h, 16, V_GM2, V_BETAM2))

    # ---- state_process: Linear(6,8) LN Tanh Linear(8,16) Tanh [Drop]
    h = jnp.dot(pose_ref[...], mat(M_WS1), preferred_element_type=f32) + vrow(V_BS1)
    h = jnp.tanh(layernorm(h, 8, V_GS1, V_BETAS1))
    pose_feat = jnp.tanh(jnp.dot(h, mat(M_WS2), preferred_element_type=f32) + vrow(V_BS2))

    # ---- cmd_process: Linear(2,8) LN Tanh Linear(8,16) Tanh
    h = jnp.dot(cmd_ref[...], mat(M_WC1), preferred_element_type=f32) + vrow(V_BC1)
    h = jnp.tanh(layernorm(h, 8, V_GC1, V_BETAC1))
    cmd_feat = jnp.tanh(jnp.dot(h, mat(M_WC2), preferred_element_type=f32) + vrow(V_BC2))

    # ---- fc head: Linear(48,16) on cat(pose, cmd, elev) -> LN -> Tanh -> Linear(16,4)
    #      (concat folded into weight chunks; final weight scattered to cols [0,1,2,5])
    z = (jnp.dot(pose_feat, mat(M_WF1_POSE), preferred_element_type=f32)
         + jnp.dot(cmd_feat, mat(M_WF1_CMD), preferred_element_type=f32)
         + jnp.dot(elev_feat, mat(M_WF1_ELEV), preferred_element_type=f32)
         + vrow(V_BF1))
    z = jnp.tanh(layernorm(z, 16, V_GF, V_BETAF))
    head1 = jnp.dot(z, mat(M_WF2), preferred_element_type=f32) + vrow(V_BF2)

    # ---- fc2 head: same structure, final weight scattered to cols [3,4]
    z2 = (jnp.dot(pose_feat, mat(M_WG1_POSE), preferred_element_type=f32)
          + jnp.dot(cmd_feat, mat(M_WG1_CMD), preferred_element_type=f32)
          + jnp.dot(elev_feat, mat(M_WG1_ELEV), preferred_element_type=f32)
          + vrow(V_BG1))
    z2 = jnp.tanh(layernorm(z2, 16, V_GG, V_BETAG))
    head2 = jnp.dot(z2, mat(M_WG2), preferred_element_type=f32) + vrow(V_BG2)

    out_ref[...] = (head1 + head2).astype(out_ref.dtype)


# -----------------------------------------------------------------------------
# Parameter packing (done once, outside the kernel)
# -----------------------------------------------------------------------------
def _embed_mat(w):
    out = jnp.zeros((LANES, LANES), jnp.float32)
    return out.at[: w.shape[0], : w.shape[1]].set(w.astype(jnp.float32))


def _scatter_mat(w, cols):
    out = jnp.zeros((LANES, LANES), jnp.float32)
    return out.at[: w.shape[0], jnp.asarray(cols)].set(w.astype(jnp.float32))


def _embed_vec(v):
    out = jnp.zeros((LANES,), jnp.float32)
    return out.at[: v.shape[0]].set(v.astype(jnp.float32))


def _scatter_vec(v, cols):
    out = jnp.zeros((LANES,), jnp.float32)
    return out.at[jnp.asarray(cols)].set(v.astype(jnp.float32))


def pack_params(p):
    wm1 = p["map_w1"].astype(jnp.bfloat16)                       # (2304, 128)

    fc1_w, g1_w = p["fc_w1"], p["fc2_w1"]                        # (48, 16) each
    mats = jnp.stack([
        _embed_mat(p["map_w2"]),                                 # M_WM2
        _embed_mat(p["state_w1"]),                               # M_WS1
        _embed_mat(p["state_w2"]),                               # M_WS2
        _embed_mat(p["cmd_w1"]),                                 # M_WC1
        _embed_mat(p["cmd_w2"]),                                 # M_WC2
        _embed_mat(fc1_w[0:16]),                                 # M_WF1_POSE
        _embed_mat(fc1_w[16:32]),                                # M_WF1_CMD
        _embed_mat(fc1_w[32:48]),                                # M_WF1_ELEV
        _scatter_mat(p["fc_w2"], (0, 1, 2, 5)),                  # M_WF2
        _embed_mat(g1_w[0:16]),                                  # M_WG1_POSE
        _embed_mat(g1_w[16:32]),                                 # M_WG1_CMD
        _embed_mat(g1_w[32:48]),                                 # M_WG1_ELEV
        _scatter_mat(p["fc2_w2"], (3, 4)),                       # M_WG2
    ])

    vecs = jnp.stack([
        _embed_vec(p["map_b1"]), _embed_vec(p["map_ln1_g"]), _embed_vec(p["map_ln1_b"]),
        _embed_vec(p["map_b2"]), _embed_vec(p["map_ln2_g"]), _embed_vec(p["map_ln2_b"]),
        _embed_vec(p["state_b1"]), _embed_vec(p["state_ln_g"]), _embed_vec(p["state_ln_b"]),
        _embed_vec(p["state_b2"]),
        _embed_vec(p["cmd_b1"]), _embed_vec(p["cmd_ln_g"]), _embed_vec(p["cmd_ln_b"]),
        _embed_vec(p["cmd_b2"]),
        _embed_vec(p["fc_b1"]), _embed_vec(p["fc_ln_g"]), _embed_vec(p["fc_ln_b"]),
        _scatter_vec(p["fc_b2"], (0, 1, 2, 5)),
        _embed_vec(p["fc2_b1"]), _embed_vec(p["fc2_ln_g"]), _embed_vec(p["fc2_ln_b"]),
        _scatter_vec(p["fc2_b2"], (3, 4)),
    ])
    return wm1, mats, vecs


# -----------------------------------------------------------------------------
# Forward wrapper
# -----------------------------------------------------------------------------
def tal_forward(pose_dot, cmd_vel, map_offset, elev_embedding, params):
    # TODO(synk): self.map_encoder(...) and self.map_decoder.decode(..., map_offset)
    # are external frozen modules without a spec; elev_embedding stands in for the
    # decoder output and map_offset is unused.
    del map_offset
    B = pose_dot.shape[0]
    Bp = max(8, ((B + 7) // 8) * 8)

    wm1, mats, vecs = pack_params(params)

    elev_p = jnp.zeros((Bp, MAP_DIM), jnp.bfloat16).at[:B].set(
        elev_embedding.astype(jnp.bfloat16))
    pose_p = jnp.zeros((Bp, LANES), jnp.float32).at[:B, :6].set(
        pose_dot.astype(jnp.float32))
    cmd_p = jnp.zeros((Bp, LANES), jnp.float32).at[:B, :2].set(
        cmd_vel.astype(jnp.float32))

    out = pl.pallas_call(
        _tal_kernel,
        out_shape=jax.ShapeDtypeStruct((Bp, LANES), jnp.float32),
    )(elev_p, pose_p, cmd_p, wm1, mats, vecs)
    return out[:B, :6]


# -----------------------------------------------------------------------------
# Pure-JAX reference (f32) for a correctness check
# -----------------------------------------------------------------------------
def tal_reference(pose_dot, cmd_vel, elev_embedding, p):
    def ln(x, g, b, eps=1e-5):
        m = jnp.mean(x, axis=-1, keepdims=True)
        v = jnp.mean((x - m) ** 2, axis=-1, keepdims=True)
        return (x - m) * jax.lax.rsqrt(v + eps) * g + b

    e = jnp.tanh(ln(elev_embedding @ p["map_w1"] + p["map_b1"], p["map_ln1_g"], p["map_ln1_b"]))
    e = jnp.tanh(ln(e @ p["map_w2"] + p["map_b2"], p["map_ln2_g"], p["map_ln2_b"]))
    s = jnp.tanh(ln(pose_dot @ p["state_w1"] + p["state_b1"], p["state_ln_g"], p["state_ln_b"]))
    s = jnp.tanh(s @ p["state_w2"] + p["state_b2"])
    c = jnp.tanh(ln(cmd_vel @ p["cmd_w1"] + p["cmd_b1"], p["cmd_ln_g"], p["cmd_ln_b"]))
    c = jnp.tanh(c @ p["cmd_w2"] + p["cmd_b2"])
    x = jnp.concatenate([s, c, e], axis=1)
    h1 = jnp.tanh(ln(x @ p["fc_w1"] + p["fc_b1"], p["fc_ln_g"], p["fc_ln_b"])) @ p["fc_w2"] + p["fc_b2"]
    h2 = jnp.tanh(ln(x @ p["fc2_w1"] + p["fc2_b1"], p["fc2_ln_g"], p["fc2_ln_b"])) @ p["fc2_w2"] + p["fc2_b2"]
    out = jnp.zeros((pose_dot.shape[0], 6), jnp.float32)
    out = out.at[:, jnp.array([0, 1, 2, 5])].set(h1)
    out = out.at[:, jnp.array([3, 4])].set(h2)
    return out


# -----------------------------------------------------------------------------
# Deterministic parameter init (shapes match the PyTorch module)
# -----------------------------------------------------------------------------
def init_params(key):
    def xavier(k, shape):
        fan_in, fan_out = shape
        bound = (6.0 / (fan_in + fan_out)) ** 0.5
        return jax.random.uniform(k, shape, jnp.float32, -bound, bound)

    def linear(k, fan_in, fan_out):
        kw, kb = jax.random.split(k)
        w = xavier(kw, (fan_in, fan_out))
        bb = 1.0 / (fan_in ** 0.5)
        b = jax.random.uniform(kb, (fan_out,), jnp.float32, -bb, bb)
        return w, b

    keys = jax.random.split(key, 10)
    p = {}
    p["map_w1"], p["map_b1"] = linear(keys[0], MAP_DIM, 128)
    p["map_ln1_g"], p["map_ln1_b"] = jnp.ones((128,), jnp.float32), jnp.zeros((128,), jnp.float32)
    p["map_w2"], p["map_b2"] = linear(keys[1], 128, 16)
    p["map_ln2_g"], p["map_ln2_b"] = jnp.ones((16,), jnp.float32), jnp.zeros((16,), jnp.float32)
    p["state_w1"], p["state_b1"] = linear(keys[2], 6, 8)
    p["state_ln_g"], p["state_ln_b"] = jnp.ones((8,), jnp.float32), jnp.zeros((8,), jnp.float32)
    p["state_w2"], p["state_b2"] = linear(keys[3], 8, 16)
    p["cmd_w1"], p["cmd_b1"] = linear(keys[4], 2, 8)
    p["cmd_ln_g"], p["cmd_ln_b"] = jnp.ones((8,), jnp.float32), jnp.zeros((8,), jnp.float32)
    p["cmd_w2"], p["cmd_b2"] = linear(keys[5], 8, 16)
    p["fc_w1"], p["fc_b1"] = linear(keys[6], 48, 16)
    p["fc_ln_g"], p["fc_ln_b"] = jnp.ones((16,), jnp.float32), jnp.zeros((16,), jnp.float32)
    p["fc_w2"], p["fc_b2"] = linear(keys[7], 16, 4)
    p["fc2_w1"], p["fc2_b1"] = linear(keys[8], 48, 16)
    p["fc2_ln_g"], p["fc2_ln_b"] = jnp.ones((16,), jnp.float32), jnp.zeros((16,), jnp.float32)
    p["fc2_w2"], p["fc2_b2"] = linear(keys[9], 16, 2)
    return p


if __name__ == "__main__":
    key = jax.random.PRNGKey(0)
    kp, k1, k2, k3 = jax.random.split(key, 4)
    params = init_params(kp)

    B = 4
    pose_dot = jax.random.normal(k1, (B, 6), jnp.float32)
    cmd_vel = jax.random.normal(k2, (B, 2), jnp.float32)
    map_offset = jnp.zeros((B, 2), jnp.float32)            # consumed by the (absent) decoder
    elev_emb = jax.random.normal(k3, (B, MAP_DIM), jnp.float32)  # decoded map embedding

    fwd = jax.jit(functools.partial(tal_forward, params=params))
    out = jax.block_until_ready(fwd(pose_dot, cmd_vel, map_offset, elev_emb))

    assert out.shape == (B, 6), out.shape
    assert bool(jnp.all(jnp.isfinite(out)))

    ref = tal_reference(pose_dot, cmd_vel, elev_emb, params)
    assert bool(jnp.allclose(out, ref, atol=5e-2, rtol=5e-2)), float(jnp.max(jnp.abs(out - ref)))

    print("KERNEL_OK")
</pallas_src>

<mosaic_0001>
module attributes {stable_mosaic.version = 11 : i64} {
  func.func @_tal_kernel(%arg0: memref<8x2304xbf16, #tpu.memory_space<vmem>>, %arg1: memref<8x128xf32, #tpu.memory_space<vmem>>, %arg2: memref<8x128xf32, #tpu.memory_space<vmem>>, %arg3: memref<2304x128xbf16, #tpu.memory_space<vmem>>, %arg4: memref<13x128x128xf32, #tpu.memory_space<vmem>>, %arg5: memref<22x128xf32, #tpu.memory_space<vmem>>, %arg6: memref<8x128xf32, #tpu.memory_space<vmem>>) attributes {dimension_semantics = [], scalar_prefetch = 0 : i64, scratch_operands = 0 : i64, tpu.core_type = #tpu.core_type<tc>} {
    %c0 = arith.constant 0 : index
    %c0_0 = arith.constant 0 : index
    %0 = vector.load %arg5[%c0, %c0_0] : memref<22x128xf32, #tpu.memory_space<vmem>>, vector<22x128xf32>
    %c0_1 = arith.constant 0 : index
    %c0_2 = arith.constant 0 : index
    %1 = vector.load %arg0[%c0_1, %c0_2] : memref<8x2304xbf16, #tpu.memory_space<vmem>>, vector<8x2304xbf16>
    %c0_3 = arith.constant 0 : index
    %c0_4 = arith.constant 0 : index
    %2 = vector.load %arg3[%c0_3, %c0_4] : memref<2304x128xbf16, #tpu.memory_space<vmem>>, vector<2304x128xbf16>
    %cst = arith.constant dense<0.000000e+00> : vector<8x128xf32>
    %3 = tpu.matmul %1, %2, %cst {dimension_numbers = #tpu.dot_dimension_numbers<[1], [0], [0], [1], [0, 0, 1, 1], [], []>} : vector<8x2304xbf16>, vector<2304x128xbf16>, vector<8x128xf32> -> vector<8x128xf32>
    %4 = vector.extract_strided_slice %0 {offsets = [0, 0], sizes = [1, 128], strides = [1, 1]} : vector<22x128xf32> to vector<1x128xf32>
    %5 = vector.broadcast %4 : vector<1x128xf32> to vector<8x128xf32>
    %6 = arith.addf %3, %5 : vector<8x128xf32>
    %cst_5 = arith.constant dense<0.000000e+00> : vector<8xf32>
    %7 = vector.multi_reduction <add>, %6, %cst_5 [1] : vector<8x128xf32> to vector<8xf32>
    %8 = vector.shape_cast %7 : vector<8xf32> to vector<8x1xf32>
    %cst_6 = arith.constant 7.812500e-03 : f32
    %9 = vector.broadcast %cst_6 : f32 to vector<8x1xf32>
    %10 = arith.mulf %8, %9 : vector<8x1xf32>
    %11 = tpu.iota {dimensions = array<i32: 1>} : vector<8x128xi32>
    %c128_i32 = arith.constant 128 : i32
    %12 = vector.broadcast %c128_i32 : i32 to vector<8x128xi32>
    %13 = arith.cmpi slt, %11, %12 : vector<8x128xi32>
    %14 = vector.broadcast %10 : vector<8x1xf32> to vector<8x128xf32>
    %15 = arith.subf %6, %14 : vector<8x128xf32>
    %cst_7 = arith.constant 0.000000e+00 : f32
    %16 = vector.broadcast %cst_7 : f32 to vector<8x128xf32>
    %17 = arith.select %13, %15, %16 : vector<8x128xi1>, vector<8x128xf32>
    %18 = arith.mulf %17, %17 : vector<8x128xf32>
    %cst_8 = arith.constant dense<0.000000e+00> : vector<8xf32>
    %19 = vector.multi_reduction <add>, %18, %cst_8 [1] : vector<8x128xf32> to vector<8xf32>
    %20 = vector.shape_cast %19 : vector<8xf32> to vector<8x1xf32>
    %cst_9 = arith.constant 7.812500e-03 : f32
    %21 = vector.broadcast %cst_9 : f32 to vector<8x1xf32>
    %22 = arith.mulf %20, %21 : vector<8x1xf32>
    %cst_10 = arith.constant 9.99999974E-6 : f32
    %23 = vector.broadcast %cst_10 : f32 to vector<8x1xf32>
    %24 = arith.addf %22, %23 : vector<8x1xf32>
    %25 = math.rsqrt %24 : vector<8x1xf32>
    %26 = vector.broadcast %25 : vector<8x1xf32> to vector<8x128xf32>
    %27 = arith.mulf %17, %26 : vector<8x128xf32>
    %28 = vector.extract_strided_slice %0 {offsets = [1, 0], sizes = [1, 128], strides = [1, 1]} : vector<22x128xf32> to vector<1x128xf32>
    %29 = vector.broadcast %28 : vector<1x128xf32> to vector<8x128xf32>
    %30 = arith.mulf %27, %29 : vector<8x128xf32>
    %31 = vector.extract_strided_slice %0 {offsets = [2, 0], sizes = [1, 128], strides = [1, 1]} : vector<22x128xf32> to vector<1x128xf32>
    %32 = vector.broadcast %31 : vector<1x128xf32> to vector<8x128xf32>
    %33 = arith.addf %30, %32 : vector<8x128xf32>
    %34 = math.tanh %33 : vector<8x128xf32>
    %c0_11 = arith.constant 0 : index
    %c0_12 = arith.constant 0 : index
    %c0_13 = arith.constant 0 : index
    %35 = vector.load %arg4[%c0_11, %c0_12, %c0_13] : memref<13x128x128xf32, #tpu.memory_space<vmem>>, vector<1x128x128xf32>
    %36 = vector.shape_cast %35 : vector<1x128x128xf32> to vector<128x128xf32>
    %cst_14 = arith.constant dense<0.000000e+00> : vector<8x128xf32>
    %37 = tpu.matmul %34, %36, %cst_14 {dimension_numbers = #tpu.dot_dimension_numbers<[1], [0], [0], [1], [0, 0, 1, 1], [], []>} : vector<8x128xf32>, vector<128x128xf32>, vector<8x128xf32> -> vector<8x128xf32>
    %38 = vector.extract_strided_slice %0 {offsets = [3, 0], sizes = [1, 128], strides = [1, 1]} : vector<22x128xf32> to vector<1x128xf32>
    %39 = vector.broadcast %38 : vector<1x128xf32> to vector<8x128xf32>
    %40 = arith.addf %37, %39 : vector<8x128xf32>
    %cst_15 = arith.constant dense<0.000000e+00> : vector<8xf32>
    %41 = vector.multi_reduction <add>, %40, %cst_15 [1] : vector<8x128xf32> to vector<8xf32>
    %42 = vector.shape_cast %41 : vector<8xf32> to vector<8x1xf32>
    %cst_16 = arith.constant 6.250000e-02 : f32
    %43 = vector.broadcast %cst_16 : f32 to vector<8x1xf32>
    %44 = arith.mulf %42, %43 : vector<8x1xf32>
    %45 = tpu.iota {dimensions = array<i32: 1>} : vector<8x128xi32>
    %c16_i32 = arith.constant 16 : i32
    %46 = vector.broadcast %c16_i32 : i32 to vector<8x128xi32>
    %47 = arith.cmpi slt, %45, %46 : vector<8x128xi32>
    %48 = vector.broadcast %44 : vector<8x1xf32> to vector<8x128xf32>
    %49 = arith.subf %40, %48 : vector<8x128xf32>
    %cst_17 = arith.constant 0.000000e+00 : f32
    %50 = vector.broadcast %cst_17 : f32 to vector<8x128xf32>
    %51 = arith.select %47, %49, %50 : vector<8x128xi1>, vector<8x128xf32>
    %52 = arith.mulf %51, %51 : vector<8x128xf32>
    %cst_18 = arith.constant dense<0.000000e+00> : vector<8xf32>
    %53 = vector.multi_reduction <add>, %52, %cst_18 [1] : vector<8x128xf32> to vector<8xf32>
    %54 = vector.shape_cast %53 : vector<8xf32> to vector<8x1xf32>
    %cst_19 = arith.constant 6.250000e-02 : f32
    %55 = vector.broadcast %cst_19 : f32 to vector<8x1xf32>
    %56 = arith.mulf %54, %55 : vector<8x1xf32>
    %cst_20 = arith.constant 9.99999974E-6 : f32
    %57 = vector.broadcast %cst_20 : f32 to vector<8x1xf32>
    %58 = arith.addf %56, %57 : vector<8x1xf32>
    %59 = math.rsqrt %58 : vector<8x1xf32>
    %60 = vector.broadcast %59 : vector<8x1xf32> to vector<8x128xf32>
    %61 = arith.mulf %51, %60 : vector<8x128xf32>
    %62 = vector.extract_strided_slice %0 {offsets = [4, 0], sizes = [1, 128], strides = [1, 1]} : vector<22x128xf32> to vector<1x128xf32>
    %63 = vector.broadcast %62 : vector<1x128xf32> to vector<8x128xf32>
    %64 = arith.mulf %61, %63 : vector<8x128xf32>
    %65 = vector.extract_strided_slice %0 {offsets = [5, 0], sizes = [1, 128], strides = [1, 1]} : vector<22x128xf32> to vector<1x128xf32>
    %66 = vector.broadcast %65 : vector<1x128xf32> to vector<8x128xf32>
    %67 = arith.addf %64, %66 : vector<8x128xf32>
    %68 = math.tanh %67 : vector<8x128xf32>
    %c0_21 = arith.constant 0 : index
    %c0_22 = arith.constant 0 : index
    %69 = vector.load %arg1[%c0_21, %c0_22] : memref<8x128xf32, #tpu.memory_space<vmem>>, vector<8x128xf32>
    %c1 = arith.constant 1 : index
    %c0_23 = arith.constant 0 : index
    %c0_24 = arith.constant 0 : index
    %70 = vector.load %arg4[%c1, %c0_23, %c0_24] : memref<13x128x128xf32, #tpu.memory_space<vmem>>, vector<1x128x128xf32>
    %71 = vector.shape_cast %70 : vector<1x128x128xf32> to vector<128x128xf32>
    %cst_25 = arith.constant dense<0.000000e+00> : vector<8x128xf32>
    %72 = tpu.matmul %69, %71, %cst_25 {dimension_numbers = #tpu.dot_dimension_numbers<[1], [0], [0], [1], [0, 0, 1, 1], [], []>} : vector<8x128xf32>, vector<128x128xf32>, vector<8x128xf32> -> vector<8x128xf32>
    %73 = vector.extract_strided_slice %0 {offsets = [6, 0], sizes = [1, 128], strides = [1, 1]} : vector<22x128xf32> to vector<1x128xf32>
    %74 = vector.broadcast %73 : vector<1x128xf32> to vector<8x128xf32>
    %75 = arith.addf %72, %74 : vector<8x128xf32>
    %cst_26 = arith.constant dense<0.000000e+00> : vector<8xf32>
    %76 = vector.multi_reduction <add>, %75, %cst_26 [1] : vector<8x128xf32> to vector<8xf32>
    %77 = vector.shape_cast %76 : vector<8xf32> to vector<8x1xf32>
    %cst_27 = arith.constant 1.250000e-01 : f32
    %78 = vector.broadcast %cst_27 : f32 to vector<8x1xf32>
    %79 = arith.mulf %77, %78 : vector<8x1xf32>
    %80 = tpu.iota {dimensions = array<i32: 1>} : vector<8x128xi32>
    %c8_i32 = arith.constant 8 : i32
    %81 = vector.broadcast %c8_i32 : i32 to vector<8x128xi32>
    %82 = arith.cmpi slt, %80, %81 : vector<8x128xi32>
    %83 = vector.broadcast %79 : vector<8x1xf32> to vector<8x128xf32>
    %84 = arith.subf %75, %83 : vector<8x128xf32>
    %cst_28 = arith.constant 0.000000e+00 : f32
    %85 = vector.broadcast %cst_28 : f32 to vector<8x128xf32>
    %86 = arith.select %82, %84, %85 : vector<8x128xi1>, vector<8x128xf32>
    %87 = arith.mulf %86, %86 : vector<8x128xf32>
    %cst_29 = arith.constant dense<0.000000e+00> : vector<8xf32>
    %88 = vector.multi_reduction <add>, %87, %cst_29 [1] : vector<8x128xf32> to vector<8xf32>
    %89 = vector.shape_cast %88 : vector<8xf32> to vector<8x1xf32>
    %cst_30 = arith.constant 1.250000e-01 : f32
    %90 = vector.broadcast %cst_30 : f32 to vector<8x1xf32>
    %91 = arith.mulf %89, %90 : vector<8x1xf32>
    %cst_31 = arith.constant 9.99999974E-6 : f32
    %92 = vector.broadcast %cst_31 : f32 to vector<8x1xf32>
    %93 = arith.addf %91, %92 : vector<8x1xf32>
    %94 = math.rsqrt %93 : vector<8x1xf32>
    %95 = vector.broadcast %94 : vector<8x1xf32> to vector<8x128xf32>
    %96 = arith.mulf %86, %95 : vector<8x128xf32>
    %97 = vector.extract_strided_slice %0 {offsets = [7, 0], sizes = [1, 128], strides = [1, 1]} : vector<22x128xf32> to vector<1x128xf32>
    %98 = vector.broadcast %97 : vector<1x128xf32> to vector<8x128xf32>
    %99 = arith.mulf %96, %98 : vector<8x128xf32>
    %100 = vector.extract_strided_slice %0 {offsets = [8, 0], sizes = [1, 128], strides = [1, 1]} : vector<22x128xf32> to vector<1x128xf32>
    %101 = vector.broadcast %100 : vector<1x128xf32> to vector<8x128xf32>
    %102 = arith.addf %99, %101 : vector<8x128xf32>
    %103 = math.tanh %102 : vector<8x128xf32>
    %c2 = arith.constant 2 : index
    %c0_32 = arith.constant 0 : index
    %c0_33 = arith.constant 0 : index
    %104 = vector.load %arg4[%c2, %c0_32, %c0_33] : memref<13x128x128xf32, #tpu.memory_space<vmem>>, vector<1x128x128xf32>
    %105 = vector.shape_cast %104 : vector<1x128x128xf32> to vector<128x128xf32>
    %cst_34 = arith.constant dense<0.000000e+00> : vector<8x128xf32>
    %106 = tpu.matmul %103, %105, %cst_34 {dimension_numbers = #tpu.dot_dimension_numbers<[1], [0], [0], [1], [0, 0, 1, 1], [], []>} : vector<8x128xf32>, vector<128x128xf32>, vector<8x128xf32> -> vector<8x128xf32>
    %107 = vector.extract_strided_slice %0 {offsets = [9, 0], sizes = [1, 128], strides = [1, 1]} : vector<22x128xf32> to vector<1x128xf32>
    %108 = vector.broadcast %107 : vector<1x128xf32> to vector<8x128xf32>
    %109 = arith.addf %106, %108 : vector<8x128xf32>
    %110 = math.tanh %109 : vector<8x128xf32>
    %c0_35 = arith.constant 0 : index
    %c0_36 = arith.constant 0 : index
    %111 = vector.load %arg2[%c0_35, %c0_36] : memref<8x128xf32, #tpu.memory_space<vmem>>, vector<8x128xf32>
    %c3 = arith.constant 3 : index
    %c0_37 = arith.constant 0 : index
    %c0_38 = arith.constant 0 : index
    %112 = vector.load %arg4[%c3, %c0_37, %c0_38] : memref<13x128x128xf32, #tpu.memory_space<vmem>>, vector<1x128x128xf32>
    %113 = vector.shape_cast %112 : vector<1x128x128xf32> to vector<128x128xf32>
    %cst_39 = arith.constant dense<0.000000e+00> : vector<8x128xf32>
    %114 = tpu.matmul %111, %113, %cst_39 {dimension_numbers = #tpu.dot_dimension_numbers<[1], [0], [0], [1], [0, 0, 1, 1], [], []>} : vector<8x128xf32>, vector<128x128xf32>, vector<8x128xf32> -> vector<8x128xf32>
    %115 = vector.extract_strided_slice %0 {offsets = [10, 0], sizes = [1, 128], strides = [1, 1]} : vector<22x128xf32> to vector<1x128xf32>
    %116 = vector.broadcast %115 : vector<1x128xf32> to vector<8x128xf32>
    %117 = arith.addf %114, %116 : vector<8x128xf32>
    %cst_40 = arith.constant dense<0.000000e+00> : vector<8xf32>
    %118 = vector.multi_reduction <add>, %117, %cst_40 [1] : vector<8x128xf32> to vector<8xf32>
    %119 = vector.shape_cast %118 : vector<8xf32> to vector<8x1xf32>
    %cst_41 = arith.constant 1.250000e-01 : f32
    %120 = vector.broadcast %cst_41 : f32 to vector<8x1xf32>
    %121 = arith.mulf %119, %120 : vector<8x1xf32>
    %122 = tpu.iota {dimensions = array<i32: 1>} : vector<8x128xi32>
    %c8_i32_42 = arith.constant 8 : i32
    %123 = vector.broadcast %c8_i32_42 : i32 to vector<8x128xi32>
    %124 = arith.cmpi slt, %122, %123 : vector<8x128xi32>
    %125 = vector.broadcast %121 : vector<8x1xf32> to vector<8x128xf32>
    %126 = arith.subf %117, %125 : vector<8x128xf32>
    %cst_43 = arith.constant 0.000000e+00 : f32
    %127 = vector.broadcast %cst_43 : f32 to vector<8x128xf32>
    %128 = arith.select %124, %126, %127 : vector<8x128xi1>, vector<8x128xf32>
    %129 = arith.mulf %128, %128 : vector<8x128xf32>
    %cst_44 = arith.constant dense<0.000000e+00> : vector<8xf32>
    %130 = vector.multi_reduction <add>, %129, %cst_44 [1] : vector<8x128xf32> to vector<8xf32>
    %131 = vector.shape_cast %130 : vector<8xf32> to vector<8x1xf32>
    %cst_45 = arith.constant 1.250000e-01 : f32
    %132 = vector.broadcast %cst_45 : f32 to vector<8x1xf32>
    %133 = arith.mulf %131, %132 : vector<8x1xf32>
    %cst_46 = arith.constant 9.99999974E-6 : f32
    %134 = vector.broadcast %cst_46 : f32 to vector<8x1xf32>
    %135 = arith.addf %133, %134 : vector<8x1xf32>
    %136 = math.rsqrt %135 : vector<8x1xf32>
    %137 = vector.broadcast %136 : vector<8x1xf32> to vector<8x128xf32>
    %138 = arith.mulf %128, %137 : vector<8x128xf32>
    %139 = vector.extract_strided_slice %0 {offsets = [11, 0], sizes = [1, 128], strides = [1, 1]} : vector<22x128xf32> to vector<1x128xf32>
    %140 = vector.broadcast %139 : vector<1x128xf32> to vector<8x128xf32>
    %141 = arith.mulf %138, %140 : vector<8x128xf32>
    %142 = vector.extract_strided_slice %0 {offsets = [12, 0], sizes = [1, 128], strides = [1, 1]} : vector<22x128xf32> to vector<1x128xf32>
    %143 = vector.broadcast %142 : vector<1x128xf32> to vector<8x128xf32>
    %144 = arith.addf %141, %143 : vector<8x128xf32>
    %145 = math.tanh %144 : vector<8x128xf32>
    %c4 = arith.constant 4 : index
    %c0_47 = arith.constant 0 : index
    %c0_48 = arith.constant 0 : index
    %146 = vector.load %arg4[%c4, %c0_47, %c0_48] : memref<13x128x128xf32, #tpu.memory_space<vmem>>, vector<1x128x128xf32>
    %147 = vector.shape_cast %146 : vector<1x128x128xf32> to vector<128x128xf32>
    %cst_49 = arith.constant dense<0.000000e+00> : vector<8x128xf32>
    %148 = tpu.matmul %145, %147, %cst_49 {dimension_numbers = #tpu.dot_dimension_numbers<[1], [0], [0], [1], [0, 0, 1, 1], [], []>} : vector<8x128xf32>, vector<128x128xf32>, vector<8x128xf32> -> vector<8x128xf32>
    %149 = vector.extract_strided_slice %0 {offsets = [13, 0], sizes = [1, 128], strides = [1, 1]} : vector<22x128xf32> to vector<1x128xf32>
    %150 = vector.broadcast %149 : vector<1x128xf32> to vector<8x128xf32>
    %151 = arith.addf %148, %150 : vector<8x128xf32>
    %152 = math.tanh %151 : vector<8x128xf32>
    %c5 = arith.constant 5 : index
    %c0_50 = arith.constant 0 : index
    %c0_51 = arith.constant 0 : index
    %153 = vector.load %arg4[%c5, %c0_50, %c0_51] : memref<13x128x128xf32, #tpu.memory_space<vmem>>, vector<1x128x128xf32>
    %154 = vector.shape_cast %153 : vector<1x128x128xf32> to vector<128x128xf32>
    %cst_52 = arith.constant dense<0.000000e+00> : vector<8x128xf32>
    %155 = tpu.matmul %110, %154, %cst_52 {dimension_numbers = #tpu.dot_dimension_numbers<[1], [0], [0], [1], [0, 0, 1, 1], [], []>} : vector<8x128xf32>, vector<128x128xf32>, vector<8x128xf32> -> vector<8x128xf32>
    %c6 = arith.constant 6 : index
    %c0_53 = arith.constant 0 : index
    %c0_54 = arith.constant 0 : index
    %156 = vector.load %arg4[%c6, %c0_53, %c0_54] : memref<13x128x128xf32, #tpu.memory_space<vmem>>, vector<1x128x128xf32>
    %157 = vector.shape_cast %156 : vector<1x128x128xf32> to vector<128x128xf32>
    %cst_55 = arith.constant dense<0.000000e+00> : vector<8x128xf32>
    %158 = tpu.matmul %152, %157, %cst_55 {dimension_numbers = #tpu.dot_dimension_numbers<[1], [0], [0], [1], [0, 0, 1, 1], [], []>} : vector<8x128xf32>, vector<128x128xf32>, vector<8x128xf32> -> vector<8x128xf32>
    %159 = arith.addf %155, %158 : vector<8x128xf32>
    %c7 = arith.constant 7 : index
    %c0_56 = arith.constant 0 : index
    %c0_57 = arith.constant 0 : index
    %160 = vector.load %arg4[%c7, %c0_56, %c0_57] : memref<13x128x128xf32, #tpu.memory_space<vmem>>, vector<1x128x128xf32>
    %161 = vector.shape_cast %160 : vector<1x128x128xf32> to vector<128x128xf32>
    %cst_58 = arith.constant dense<0.000000e+00> : vector<8x128xf32>
    %162 = tpu.matmul %68, %161, %cst_58 {dimension_numbers = #tpu.dot_dimension_numbers<[1], [0], [0], [1], [0, 0, 1, 1], [], []>} : vector<8x128xf32>, vector<128x128xf32>, vector<8x128xf32> -> vector<8x128xf32>
    %163 = arith.addf %159, %162 : vector<8x128xf32>
    %164 = vector.extract_strided_slice %0 {offsets = [14, 0], sizes = [1, 128], strides = [1, 1]} : vector<22x128xf32> to vector<1x128xf32>
    %165 = vector.broadcast %164 : vector<1x128xf32> to vector<8x128xf32>
    %166 = arith.addf %163, %165 : vector<8x128xf32>
    %cst_59 = arith.constant dense<0.000000e+00> : vector<8xf32>
    %167 = vector.multi_reduction <add>, %166, %cst_59 [1] : vector<8x128xf32> to vector<8xf32>
    %168 = vector.shape_cast %167 : vector<8xf32> to vector<8x1xf32>
    %cst_60 = arith.constant 6.250000e-02 : f32
    %169 = vector.broadcast %cst_60 : f32 to vector<8x1xf32>
    %170 = arith.mulf %168, %169 : vector<8x1xf32>
    %171 = tpu.iota {dimensions = array<i32: 1>} : vector<8x128xi32>
    %c16_i32_61 = arith.constant 16 : i32
    %172 = vector.broadcast %c16_i32_61 : i32 to vector<8x128xi32>
    %173 = arith.cmpi slt, %171, %172 : vector<8x128xi32>
    %174 = vector.broadcast %170 : vector<8x1xf32> to vector<8x128xf32>
    %175 = arith.subf %166, %174 : vector<8x128xf32>
    %cst_62 = arith.constant 0.000000e+00 : f32
    %176 = vector.broadcast %cst_62 : f32 to vector<8x128xf32>
    %177 = arith.select %173, %175, %176 : vector<8x128xi1>, vector<8x128xf32>
    %178 = arith.mulf %177, %177 : vector<8x128xf32>
    %cst_63 = arith.constant dense<0.000000e+00> : vector<8xf32>
    %179 = vector.multi_reduction <add>, %178, %cst_63 [1] : vector<8x128xf32> to vector<8xf32>
    %180 = vector.shape_cast %179 : vector<8xf32> to vector<8x1xf32>
    %cst_64 = arith.constant 6.250000e-02 : f32
    %181 = vector.broadcast %cst_64 : f32 to vector<8x1xf32>
    %182 = arith.mulf %180, %181 : vector<8x1xf32>
    %cst_65 = arith.constant 9.99999974E-6 : f32
    %183 = vector.broadcast %cst_65 : f32 to vector<8x1xf32>
    %184 = arith.addf %182, %183 : vector<8x1xf32>
    %185 = math.rsqrt %184 : vector<8x1xf32>
    %186 = vector.broadcast %185 : vector<8x1xf32> to vector<8x128xf32>
    %187 = arith.mulf %177, %186 : vector<8x128xf32>
    %188 = vector.extract_strided_slice %0 {offsets = [15, 0], sizes = [1, 128], strides = [1, 1]} : vector<22x128xf32> to vector<1x128xf32>
    %189 = vector.broadcast %188 : vector<1x128xf32> to vector<8x128xf32>
    %190 = arith.mulf %187, %189 : vector<8x128xf32>
    %191 = vector.extract_strided_slice %0 {offsets = [16, 0], sizes = [1, 128], strides = [1, 1]} : vector<22x128xf32> to vector<1x128xf32>
    %192 = vector.broadcast %191 : vector<1x128xf32> to vector<8x128xf32>
    %193 = arith.addf %190, %192 : vector<8x128xf32>
    %194 = math.tanh %193 : vector<8x128xf32>
    %c8 = arith.constant 8 : index
    %c0_66 = arith.constant 0 : index
    %c0_67 = arith.constant 0 : index
    %195 = vector.load %arg4[%c8, %c0_66, %c0_67] : memref<13x128x128xf32, #tpu.memory_space<vmem>>, vector<1x128x128xf32>
    %196 = vector.shape_cast %195 : vector<1x128x128xf32> to vector<128x128xf32>
    %cst_68 = arith.constant dense<0.000000e+00> : vector<8x128xf32>
    %197 = tpu.matmul %194, %196, %cst_68 {dimension_numbers = #tpu.dot_dimension_numbers<[1], [0], [0], [1], [0, 0, 1, 1], [], []>} : vector<8x128xf32>, vector<128x128xf32>, vector<8x128xf32> -> vector<8x128xf32>
    %198 = vector.extract_strided_slice %0 {offsets = [17, 0], sizes = [1, 128], strides = [1, 1]} : vector<22x128xf32> to vector<1x128xf32>
    %199 = vector.broadcast %198 : vector<1x128xf32> to vector<8x128xf32>
    %200 = arith.addf %197, %199 : vector<8x128xf32>
    %c9 = arith.constant 9 : index
    %c0_69 = arith.constant 0 : index
    %c0_70 = arith.constant 0 : index
    %201 = vector.load %arg4[%c9, %c0_69, %c0_70] : memref<13x128x128xf32, #tpu.memory_space<vmem>>, vector<1x128x128xf32>
    %202 = vector.shape_cast %201 : vector<1x128x128xf32> to vector<128x128xf32>
    %cst_71 = arith.constant dense<0.000000e+00> : vector<8x128xf32>
    %203 = tpu.matmul %110, %202, %cst_71 {dimension_numbers = #tpu.dot_dimension_numbers<[1], [0], [0], [1], [0, 0, 1, 1], [], []>} : vector<8x128xf32>, vector<128x128xf32>, vector<8x128xf32> -> vector<8x128xf32>
    %c10 = arith.constant 10 : index
    %c0_72 = arith.constant 0 : index
    %c0_73 = arith.constant 0 : index
    %204 = vector.load %arg4[%c10, %c0_72, %c0_73] : memref<13x128x128xf32, #tpu.memory_space<vmem>>, vector<1x128x128xf32>
    %205 = vector.shape_cast %204 : vector<1x128x128xf32> to vector<128x128xf32>
    %cst_74 = arith.constant dense<0.000000e+00> : vector<8x128xf32>
    %206 = tpu.matmul %152, %205, %cst_74 {dimension_numbers = #tpu.dot_dimension_numbers<[1], [0], [0], [1], [0, 0, 1, 1], [], []>} : vector<8x128xf32>, vector<128x128xf32>, vector<8x128xf32> -> vector<8x128xf32>
    %207 = arith.addf %203, %206 : vector<8x128xf32>
    %c11 = arith.constant 11 : index
    %c0_75 = arith.constant 0 : index
    %c0_76 = arith.constant 0 : index
    %208 = vector.load %arg4[%c11, %c0_75, %c0_76] : memref<13x128x128xf32, #tpu.memory_space<vmem>>, vector<1x128x128xf32>
    %209 = vector.shape_cast %208 : vector<1x128x128xf32> to vector<128x128xf32>
    %cst_77 = arith.constant dense<0.000000e+00> : vector<8x128xf32>
    %210 = tpu.matmul %68, %209, %cst_77 {dimension_numbers = #tpu.dot_dimension_numbers<[1], [0], [0], [1], [0, 0, 1, 1], [], []>} : vector<8x128xf32>, vector<128x128xf32>, vector<8x128xf32> -> vector<8x128xf32>
    %211 = arith.addf %207, %210 : vector<8x128xf32>
    %212 = vector.extract_strided_slice %0 {offsets = [18, 0], sizes = [1, 128], strides = [1, 1]} : vector<22x128xf32> to vector<1x128xf32>
    %213 = vector.broadcast %212 : vector<1x128xf32> to vector<8x128xf32>
    %214 = arith.addf %211, %213 : vector<8x128xf32>
    %cst_78 = arith.constant dense<0.000000e+00> : vector<8xf32>
    %215 = vector.multi_reduction <add>, %214, %cst_78 [1] : vector<8x128xf32> to vector<8xf32>
    %216 = vector.shape_cast %215 : vector<8xf32> to vector<8x1xf32>
    %cst_79 = arith.constant 6.250000e-02 : f32
    %217 = vector.broadcast %cst_79 : f32 to vector<8x1xf32>
    %218 = arith.mulf %216, %217 : vector<8x1xf32>
    %219 = tpu.iota {dimensions = array<i32: 1>} : vector<8x128xi32>
    %c16_i32_80 = arith.constant 16 : i32
    %220 = vector.broadcast %c16_i32_80 : i32 to vector<8x128xi32>
    %221 = arith.cmpi slt, %219, %220 : vector<8x128xi32>
    %222 = vector.broadcast %218 : vector<8x1xf32> to vector<8x128xf32>
    %223 = arith.subf %214, %222 : vector<8x128xf32>
    %cst_81 = arith.constant 0.000000e+00 : f32
    %224 = vector.broadcast %cst_81 : f32 to vector<8x128xf32>
    %225 = arith.select %221, %223, %224 : vector<8x128xi1>, vector<8x128xf32>
    %226 = arith.mulf %225, %225 : vector<8x128xf32>
    %cst_82 = arith.constant dense<0.000000e+00> : vector<8xf32>
    %227 = vector.multi_reduction <add>, %226, %cst_82 [1] : vector<8x128xf32> to vector<8xf32>
    %228 = vector.shape_cast %227 : vector<8xf32> to vector<8x1xf32>
    %cst_83 = arith.constant 6.250000e-02 : f32
    %229 = vector.broadcast %cst_83 : f32 to vector<8x1xf32>
    %230 = arith.mulf %228, %229 : vector<8x1xf32>
    %cst_84 = arith.constant 9.99999974E-6 : f32
    %231 = vector.broadcast %cst_84 : f32 to vector<8x1xf32>
    %232 = arith.addf %230, %231 : vector<8x1xf32>
    %233 = math.rsqrt %232 : vector<8x1xf32>
    %234 = vector.broadcast %233 : vector<8x1xf32> to vector<8x128xf32>
    %235 = arith.mulf %225, %234 : vector<8x128xf32>
    %236 = vector.extract_strided_slice %0 {offsets = [19, 0], sizes = [1, 128], strides = [1, 1]} : vector<22x128xf32> to vector<1x128xf32>
    %237 = vector.broadcast %236 : vector<1x128xf32> to vector<8x128xf32>
    %238 = arith.mulf %235, %237 : vector<8x128xf32>
    %239 = vector.extract_strided_slice %0 {offsets = [20, 0], sizes = [1, 128], strides = [1, 1]} : vector<22x128xf32> to vector<1x128xf32>
    %240 = vector.broadcast %239 : vector<1x128xf32> to vector<8x128xf32>
    %241 = arith.addf %238, %240 : vector<8x128xf32>
    %242 = math.tanh %241 : vector<8x128xf32>
    %c12 = arith.constant 12 : index
    %c0_85 = arith.constant 0 : index
    %c0_86 = arith.constant 0 : index
    %243 = vector.load %arg4[%c12, %c0_85, %c0_86] : memref<13x128x128xf32, #tpu.memory_space<vmem>>, vector<1x128x128xf32>
    %244 = vector.shape_cast %243 : vector<1x128x128xf32> to vector<128x128xf32>
    %cst_87 = arith.constant dense<0.000000e+00> : vector<8x128xf32>
    %245 = tpu.matmul %242, %244, %cst_87 {dimension_numbers = #tpu.dot_dimension_numbers<[1], [0], [0], [1], [0, 0, 1, 1], [], []>} : vector<8x128xf32>, vector<128x128xf32>, vector<8x128xf32> -> vector<8x128xf32>
    %246 = vector.extract_strided_slice %0 {offsets = [21, 0], sizes = [1, 128], strides = [1, 1]} : vector<22x128xf32> to vector<1x128xf32>
    %247 = vector.broadcast %246 : vector<1x128xf32> to vector<8x128xf32>
    %248 = arith.addf %245, %247 : vector<8x128xf32>
    %249 = arith.addf %200, %248 : vector<8x128xf32>
    %c0_88 = arith.constant 0 : index
    %c0_89 = arith.constant 0 : index
    %250 = vector.load %arg6[%c0_88, %c0_89] : memref<8x128xf32, #tpu.memory_space<vmem>>, vector<8x128xf32>
    tpu.vector_store %arg6[%c0_88, %c0_89], %249 {strides = array<i32>} : memref<8x128xf32, #tpu.memory_space<vmem>>, vector<8x128xf32>,
    return
  }
}

</mosaic_0001>

<llo_original>
// kernel: tal_forward.1
$region0: #{tal_forward.1}
  #allocation0 [shape = 'u32[]', space=smem, size = 0x4, offset = 0x4, fixed_abs, tag = 'smem constant byte address 0x4 - core index']
  #allocation1 [shape = 'u32[144,128]{1,0:T(1,128)}', space=vmem, size = 0x12000, scoped, tag = 'internal scratch']
  %s0 = inlined_call_operand.vmem [shape: bf16[8,2304], index: 0, kind: input, shape index: {}]
  %s1 = inlined_call_operand.vmem [shape: f32[8,128], index: 1, kind: input, shape index: {}]
  %s2 = inlined_call_operand.vmem [shape: f32[8,128], index: 2, kind: input, shape index: {}]
  %s3 = inlined_call_operand.vmem [shape: bf16[2304,128], index: 3, kind: input, shape index: {}]
  %s4 = inlined_call_operand.vmem [shape: f32[13,128,128], index: 4, kind: input, shape index: {}]
  %s5 = inlined_call_operand.vmem [shape: f32[22,128], index: 5, kind: input, shape index: {}]
  %s6 = inlined_call_operand.vmem [shape: f32[8,128], index: 6, kind: output, shape index: {}]
  %s7 = sld [smem:[#allocation0]]
  $region34: #{tal_forward.1} parent=0
    _
  %s9 = ssub.s32 1, %s7
  %s10 = scalar_select 0, %s9, %s7
  // Predicated region
  $region2: #{tal_forward.1} parent=0 // pred_check
    _
  $region3: #{tal_forward.1} parent=0 // pred_check_branch
    %12 = sbr.rel (0) target = $region5
  $region4: #{tal_forward.1} parent=0 // pred_region
    _
  $region5: #{tal_forward.1} parent=0 // pred_fallthru
    _
  // Predicated region
  $region6: #{tal_forward.1} parent=0 // pred_check
    _
  $region7: #{tal_forward.1} parent=0 // pred_check_branch
    %14 = sbr.rel (0) target = $region9
  $region8: #{tal_forward.1} parent=0 // pred_region
    _
  $region9: #{tal_forward.1} parent=0 // pred_fallthru
    _
  // Predicated region
  $region10: #{tal_forward.1} parent=0 // pred_check
    _
  $region11: #{tal_forward.1} parent=0 // pred_check_branch
    %16 = sbr.rel (0) target = $region13
  $region12: #{tal_forward.1} parent=0 // pred_region
    _
  $region13: #{tal_forward.1} parent=0 // pred_fallthru
    _
  // Predicated region
  $region14: #{tal_forward.1} parent=0 // pred_check
    _
  $region15: #{tal_forward.1} parent=0 // pred_check_branch
    %18 = sbr.rel (0) target = $region17
  $region16: #{tal_forward.1} parent=0 // pred_region
    _
  $region17: #{tal_forward.1} parent=0 // pred_fallthru
    _
  // Predicated region
  $region18: #{tal_forward.1} parent=0 // pred_check
    _
  $region19: #{tal_forward.1} parent=0 // pred_check_branch
    %20 = sbr.rel (0) target = $region21
  $region20: #{tal_forward.1} parent=0 // pred_region
    _
  $region21: #{tal_forward.1} parent=0 // pred_fallthru
    _
  // Predicated region
  $region22: #{tal_forward.1} parent=0 // pred_check
    _
  $region23: #{tal_forward.1} parent=0 // pred_check_branch
    %22 = sbr.rel (0) target = $region25
  $region24: #{tal_forward.1} parent=0 // pred_region
    _
  $region25: #{tal_forward.1} parent=0 // pred_fallthru
    _
  %v24 = vld [vmem:[%s5] sm:$0xff]
  %v25 = vld [vmem:[%s5 + $0x8] sm:$0xff]
  %v26 = vld [vmem:[%s5 + $0x10] sm:$0x3f]
  %v27 = vld [vmem:[%s0] sm:$0xff]
  %v28 = vld [vmem:[%s0 + $0x8] sm:$0xff]
  %v29 = vld [vmem:[%s0 + $0x10] sm:$0xff]
  %v30 = vld [vmem:[%s0 + $0x18] sm:$0xff]
  %v31 = vld [vmem:[%s0 + $0x20] sm:$0xff]
  %v32 = vld [vmem:[%s0 + $0x28] sm:$0xff]
  %v33 = vld [vmem:[%s0 + $0x30] sm:$0xff]
  %v34 = vld [vmem:[%s0 + $0x38] sm:$0xff]
  %v35 = vld [vmem:[%s0 + $0x40] sm:$0xff]
  %v36 = vld [vmem:[%s3] sm:$0xf]
  %v37 = vld [vmem:[%s3 + $0x4] sm:$0xf]
  %v38 = vld [vmem:[%s3 + $0x8] sm:$0xf]
  %v39 = vld [vmem:[%s3 + $0xc] sm:$0xf]
  %v40 = vld [vmem:[%s3 + $0x10] sm:$0xf]
  %v41 = vld [vmem:[%s3 + $0x14] sm:$0xf]
  %v42 = vld [vmem:[%s3 + $0x18] sm:$0xf]
  %v43 = vld [vmem:[%s3 + $0x1c] sm:$0xf]
  %v44 = vld [vmem:[%s3 + $0x20] sm:$0xf]
  %v45 = vld [vmem:[%s3 + $0x24] sm:$0xf]
  %v46 = vld [vmem:[%s3 + $0x28] sm:$0xf]
  %v47 = vld [vmem:[%s3 + $0x2c] sm:$0xf]
  %v48 = vld [vmem:[%s3 + $0x30] sm:$0xf]
  %v49 = vld [vmem:[%s3 + $0x34] sm:$0xf]
  %v50 = vld [vmem:[%s3 + $0x38] sm:$0xf]
  %v51 = vld [vmem:[%s3 + $0x3c] sm:$0xf]
  %v52 = vld [vmem:[%s3 + $0x40] sm:$0xf]
  %v53 = vld [vmem:[%s3 + $0x44] sm:$0xf]
  %v54 = vld [vmem:[%s3 + $0x48] sm:$0xf]
  %v55 = vld [vmem:[%s3 + $0x4c] sm:$0xf]
  %v56 = vld [vmem:[%s3 + $0x50] sm:$0xf]
  %v57 = vld [vmem:[%s3 + $0x54] sm:$0xf]
  %v58 = vld [vmem:[%s3 + $0x58] sm:$0xf]
  %v59 = vld [vmem:[%s3 + $0x5c] sm:$0xf]
  %v60 = vld [vmem:[%s3 + $0x60] sm:$0xf]
  %v61 = vld [vmem:[%s3 + $0x64] sm:$0xf]
  %v62 = vld [vmem:[%s3 + $0x68] sm:$0xf]
  %v63 = vld [vmem:[%s3 + $0x6c] sm:$0xf]
  %v64 = vld [vmem:[%s3 + $0x70] sm:$0xf]
  %v65 = vld [vmem:[%s3 + $0x74] sm:$0xf]
  %v66 = vld [vmem:[%s3 + $0x78] sm:$0xf]
  %v67 = vld [vmem:[%s3 + $0x7c] sm:$0xf]
  %v68 = vld [vmem:[%s3 + $0x80] sm:$0xf]
  %v69 = vld [vmem:[%s3 + $0x84] sm:$0xf]
  %v70 = vld [vmem:[%s3 + $0x88] sm:$0xf]
  %v71 = vld [vmem:[%s3 + $0x8c] sm:$0xf]
  %v72 = vld [vmem:[%s3 + $0x90] sm:$0xf]
  %v73 = vld [vmem:[%s3 + $0x94] sm:$0xf]
  %v74 = vld [vmem:[%s3 + $0x98] sm:$0xf]
  %v75 = vld [vmem:[%s3 + $0x9c] sm:$0xf]
  %v76 = vld [vmem:[%s3 + $0xa0] sm:$0xf]
  %v77 = vld [vmem:[%s3 + $0xa4] sm:$0xf]
  %v78 = vld [vmem:[%s3 + $0xa8] sm:$0xf]
  %v79 = vld [vmem:[%s3 + $0xac] sm:$0xf]
  %v80 = vld [vmem:[%s3 + $0xb0] sm:$0xf]
  %v81 = vld [vmem:[%s3 + $0xb4] sm:$0xf]
  %v82 = vld [vmem:[%s3 + $0xb8] sm:$0xf]
  %v83 = vld [vmem:[%s3 + $0xbc] sm:$0xf]
  %v84 = vld [vmem:[%s3 + $0xc0] sm:$0xf]
  %v85 = vld [vmem:[%s3 + $0xc4] sm:$0xf]
  %v86 = vld [vmem:[%s3 + $0xc8] sm:$0xf]
  %v87 = vld [vmem:[%s3 + $0xcc] sm:$0xf]
  %v88 = vld [vmem:[%s3 + $0xd0] sm:$0xf]
  %v89 = vld [vmem:[%s3 + $0xd4] sm:$0xf]
  %v90 = vld [vmem:[%s3 + $0xd8] sm:$0xf]
  %v91 = vld [vmem:[%s3 + $0xdc] sm:$0xf]
  %v92 = vld [vmem:[%s3 + $0xe0] sm:$0xf]
  %v93 = vld [vmem:[%s3 + $0xe4] sm:$0xf]
  %v94 = vld [vmem:[%s3 + $0xe8] sm:$0xf]
  %v95 = vld [vmem:[%s3 + $0xec] sm:$0xf]
  %v96 = vld [vmem:[%s3 + $0xf0] sm:$0xf]
  %v97 = vld [vmem:[%s3 + $0xf4] sm:$0xf]
  %v98 = vld [vmem:[%s3 + $0xf8] sm:$0xf]
  %v99 = vld [vmem:[%s3 + $0xfc] sm:$0xf]
  %v100 = vld [vmem:[%s3 + $0x100] sm:$0xf]
  %v101 = vld [vmem:[%s3 + $0x104] sm:$0xf]
  %v102 = vld [vmem:[%s3 + $0x108] sm:$0xf]
  %v103 = vld [vmem:[%s3 + $0x10c] sm:$0xf]
  %v104 = vld [vmem:[%s3 + $0x110] sm:$0xf]
  %v105 = vld [vmem:[%s3 + $0x114] sm:$0xf]
  %v106 = vld [vmem:[%s3 + $0x118] sm:$0xf]
  %v107 = vld [vmem:[%s3 + $0x11c] sm:$0xf]
  %v108 = vld [vmem:[%s3 + $0x120] sm:$0xf]
  %v109 = vld [vmem:[%s3 + $0x124] sm:$0xf]
  %v110 = vld [vmem:[%s3 + $0x128] sm:$0xf]
  %v111 = vld [vmem:[%s3 + $0x12c] sm:$0xf]
  %v112 = vld [vmem:[%s3 + $0x130] sm:$0xf]
  %v113 = vld [vmem:[%s3 + $0x134] sm:$0xf]
  %v114 = vld [vmem:[%s3 + $0x138] sm:$0xf]
  %v115 = vld [vmem:[%s3 + $0x13c] sm:$0xf]
  %v116 = vld [vmem:[%s3 + $0x140] sm:$0xf]
  %v117 = vld [vmem:[%s3 + $0x144] sm:$0xf]
  %v118 = vld [vmem:[%s3 + $0x148] sm:$0xf]
  %v119 = vld [vmem:[%s3 + $0x14c] sm:$0xf]
  %v120 = vld [vmem:[%s3 + $0x150] sm:$0xf]
  %v121 = vld [vmem:[%s3 + $0x154] sm:$0xf]
  %v122 = vld [vmem:[%s3 + $0x158] sm:$0xf]
  %v123 = vld [vmem:[%s3 + $0x15c] sm:$0xf]
  %v124 = vld [vmem:[%s3 + $0x160] sm:$0xf]
  %v125 = vld [vmem:[%s3 + $0x164] sm:$0xf]
  %v126 = vld [vmem:[%s3 + $0x168] sm:$0xf]
  %v127 = vld [vmem:[%s3 + $0x16c] sm:$0xf]
  %v128 = vld [vmem:[%s3 + $0x170] sm:$0xf]
  %v129 = vld [vmem:[%s3 + $0x174] sm:$0xf]
  %v130 = vld [vmem:[%s3 + $0x178] sm:$0xf]
  %v131 = vld [vmem:[%s3 + $0x17c] sm:$0xf]
  %v132 = vld [vmem:[%s3 + $0x180] sm:$0xf]
  %v133 = vld [vmem:[%s3 + $0x184] sm:$0xf]
  %v134 = vld [vmem:[%s3 + $0x188] sm:$0xf]
  %v135 = vld [vmem:[%s3 + $0x18c] sm:$0xf]
  %v136 = vld [vmem:[%s3 + $0x190] sm:$0xf]
  %v137 = vld [vmem:[%s3 + $0x194] sm:$0xf]
  %v138 = vld [vmem:[%s3 + $0x198] sm:$0xf]
  %v139 = vld [vmem:[%s3 + $0x19c] sm:$0xf]
  %v140 = vld [vmem:[%s3 + $0x1a0] sm:$0xf]
  %v141 = vld [vmem:[%s3 + $0x1a4] sm:$0xf]
  %v142 = vld [vmem:[%s3 + $0x1a8] sm:$0xf]
  %v143 = vld [vmem:[%s3 + $0x1ac] sm:$0xf]
  %v144 = vld [vmem:[%s3 + $0x1b0] sm:$0xf]
  %v145 = vld [vmem:[%s3 + $0x1b4] sm:$0xf]
  %v146 = vld [vmem:[%s3 + $0x1b8] sm:$0xf]
  %v147 = vld [vmem:[%s3 + $0x1bc] sm:$0xf]
  %v148 = vld [vmem:[%s3 + $0x1c0] sm:$0xf]
  %v149 = vld [vmem:[%s3 + $0x1c4] sm:$0xf]
  %v150 = vld [vmem:[%s3 + $0x1c8] sm:$0xf]
  %v151 = vld [vmem:[%s3 + $0x1cc] sm:$0xf]
  %v152 = vld [vmem:[%s3 + $0x1d0] sm:$0xf]
  %v153 = vld [vmem:[%s3 + $0x1d4] sm:$0xf]
  %v154 = vld [vmem:[%s3 + $0x1d8] sm:$0xf]
  %v155 = vld [vmem:[%s3 + $0x1dc] sm:$0xf]
  %v156 = vld [vmem:[%s3 + $0x1e0] sm:$0xf]
  %v157 = vld [vmem:[%s3 + $0x1e4] sm:$0xf]
  %v158 = vld [vmem:[%s3 + $0x1e8] sm:$0xf]
  %v159 = vld [vmem:[%s3 + $0x1ec] sm:$0xf]
  %v160 = vld [vmem:[%s3 + $0x1f0] sm:$0xf]
  %v161 = vld [vmem:[%s3 + $0x1f4] sm:$0xf]
  %v162 = vld [vmem:[%s3 + $0x1f8] sm:$0xf]
  %v163 = vld [vmem:[%s3 + $0x1fc] sm:$0xf]
  %v164 = vld [vmem:[%s3 + $0x200] sm:$0xf]
  %v165 = vld [vmem:[%s3 + $0x204] sm:$0xf]
  %v166 = vld [vmem:[%s3 + $0x208] sm:$0xf]
  %v167 = vld [vmem:[%s3 + $0x20c] sm:$0xf]
  %v168 = vld [vmem:[%s3 + $0x210] sm:$0xf]
  %v169 = vld [vmem:[%s3 + $0x214] sm:$0xf]
  %v170 = vld [vmem:[%s3 + $0x218] sm:$0xf]
  %v171 = vld [vmem:[%s3 + $0x21c] sm:$0xf]
  %v172 = vld [vmem:[%s3 + $0x220] sm:$0xf]
  %v173 = vld [vmem:[%s3 + $0x224] sm:$0xf]
  %v174 = vld [vmem:[%s3 + $0x228] sm:$0xf]
  %v175 = vld [vmem:[%s3 + $0x22c] sm:$0xf]
  %v176 = vld [vmem:[%s3 + $0x230] sm:$0xf]
  %v177 = vld [vmem:[%s3 + $0x234] sm:$0xf]
  %v178 = vld [vmem:[%s3 + $0x238] sm:$0xf]
  %v179 = vld [vmem:[%s3 + $0x23c] sm:$0xf]
  %v180 = vld [vmem:[%s3 + $0x240] sm:$0xf]
  %v181 = vld [vmem:[%s3 + $0x244] sm:$0xf]
  %v182 = vld [vmem:[%s3 + $0x248] sm:$0xf]
  %v183 = vld [vmem:[%s3 + $0x24c] sm:$0xf]
  %v184 = vld [vmem:[%s3 + $0x250] sm:$0xf]
  %v185 = vld [vmem:[%s3 + $0x254] sm:$0xf]
  %v186 = vld [vmem:[%s3 + $0x258] sm:$0xf]
  %v187 = vld [vmem:[%s3 + $0x25c] sm:$0xf]
  %v188 = vld [vmem:[%s3 + $0x260] sm:$0xf]
  %v189 = vld [vmem:[%s3 + $0x264] sm:$0xf]
  %v190 = vld [vmem:[%s3 + $0x268] sm:$0xf]
  %v191 = vld [vmem:[%s3 + $0x26c] sm:$0xf]
  %v192 = vld [vmem:[%s3 + $0x270] sm:$0xf]
  %v193 = vld [vmem:[%s3 + $0x274] sm:$0xf]
  %v194 = vld [vmem:[%s3 + $0x278] sm:$0xf]
  %v195 = vld [vmem:[%s3 + $0x27c] sm:$0xf]
  %v196 = vld [vmem:[%s3 + $0x280] sm:$0xf]
  %v197 = vld [vmem:[%s3 + $0x284] sm:$0xf]
  %v198 = vld [vmem:[%s3 + $0x288] sm:$0xf]
  %v199 = vld [vmem:[%s3 + $0x28c] sm:$0xf]
  %v200 = vld [vmem:[%s3 + $0x290] sm:$0xf]
  %v201 = vld [vmem:[%s3 + $0x294] sm:$0xf]
  %v202 = vld [vmem:[%s3 + $0x298] sm:$0xf]
  %v203 = vld [vmem:[%s3 + $0x29c] sm:$0xf]
  %v204 = vld [vmem:[%s3 + $0x2a0] sm:$0xf]
  %v205 = vld [vmem:[%s3 + $0x2a4] sm:$0xf]
  %v206 = vld [vmem:[%s3 + $0x2a8] sm:$0xf]
  %v207 = vld [vmem:[%s3 + $0x2ac] sm:$0xf]
  %v208 = vld [vmem:[%s3 + $0x2b0] sm:$0xf]
  %v209 = vld [vmem:[%s3 + $0x2b4] sm:$0xf]
  %v210 = vld [vmem:[%s3 + $0x2b8] sm:$0xf]
  %v211 = vld [vmem:[%s3 + $0x2bc] sm:$0xf]
  %v212 = vld [vmem:[%s3 + $0x2c0] sm:$0xf]
  %v213 = vld [vmem:[%s3 + $0x2c4] sm:$0xf]
  %v214 = vld [vmem:[%s3 + $0x2c8] sm:$0xf]
  %v215 = vld [vmem:[%s3 + $0x2cc] sm:$0xf]
  %v216 = vld [vmem:[%s3 + $0x2d0] sm:$0xf]
  %v217 = vld [vmem:[%s3 + $0x2d4] sm:$0xf]
  %v218 = vld [vmem:[%s3 + $0x2d8] sm:$0xf]
  %v219 = vld [vmem:[%s3 + $0x2dc] sm:$0xf]
  %v220 = vld [vmem:[%s3 + $0x2e0] sm:$0xf]
  %v221 = vld [vmem:[%s3 + $0x2e4] sm:$0xf]
  %v222 = vld [vmem:[%s3 + $0x2e8] sm:$0xf]
  %v223 = vld [vmem:[%s3 + $0x2ec] sm:$0xf]
  %v224 = vld [vmem:[%s3 + $0x2f0] sm:$0xf]
  %v225 = vld [vmem:[%s3 + $0x2f4] sm:$0xf]
  %v226 = vld [vmem:[%s3 + $0x2f8] sm:$0xf]
  %v227 = vld [vmem:[%s3 + $0x2fc] sm:$0xf]
  %v228 = vld [vmem:[%s3 + $0x300] sm:$0xf]
  %v229 = vld [vmem:[%s3 + $0x304] sm:$0xf]
  %v230 = vld [vmem:[%s3 + $0x308] sm:$0xf]
  %v231 = vld [vmem:[%s3 + $0x30c] sm:$0xf]
  %v232 = vld [vmem:[%s3 + $0x310] sm:$0xf]
  %v233 = vld [vmem:[%s3 + $0x314] sm:$0xf]
  %v234 = vld [vmem:[%s3 + $0x318] sm:$0xf]
  %v235 = vld [vmem:[%s3 + $0x31c] sm:$0xf]
  %v236 = vld [vmem:[%s3 + $0x320] sm:$0xf]
  %v237 = vld [vmem:[%s3 + $0x324] sm:$0xf]
  %v238 = vld [vmem:[%s3 + $0x328] sm:$0xf]
  %v239 = vld [vmem:[%s3 + $0x32c] sm:$0xf]
  %v240 = vld [vmem:[%s3 + $0x330] sm:$0xf]
  %v241 = vld [vmem:[%s3 + $0x334] sm:$0xf]
  %v242 = vld [vmem:[%s3 + $0x338] sm:$0xf]
  %v243 = vld [vmem:[%s3 + $0x33c] sm:$0xf]
  %v244 = vld [vmem:[%s3 + $0x340] sm:$0xf]
  %v245 = vld [vmem:[%s3 + $0x344] sm:$0xf]
  %v246 = vld [vmem:[%s3 + $0x348] sm:$0xf]
  %v247 = vld [vmem:[%s3 + $0x34c] sm:$0xf]
  %v248 = vld [vmem:[%s3 + $0x350] sm:$0xf]
  %v249 = vld [vmem:[%s3 + $0x354] sm:$0xf]
  %v250 = vld [vmem:[%s3 + $0x358] sm:$0xf]
  %v251 = vld [vmem:[%s3 + $0x35c] sm:$0xf]
  %v252 = vld [vmem:[%s3 + $0x360] sm:$0xf]
  %v253 = vld [vmem:[%s3 + $0x364] sm:$0xf]
  %v254 = vld [vmem:[%s3 + $0x368] sm:$0xf]
  %v255 = vld [vmem:[%s3 + $0x36c] sm:$0xf]
  %v256 = vld [vmem:[%s3 + $0x370] sm:$0xf]
  %v257 = vld [vmem:[%s3 + $0x374] sm:$0xf]
  %v258 = vld [vmem:[%s3 + $0x378] sm:$0xf]
  %v259 = vld [vmem:[%s3 + $0x37c] sm:$0xf]
  %v260 = vld [vmem:[%s3 + $0x380] sm:$0xf]
  %v261 = vld [vmem:[%s3 + $0x384] sm:$0xf]
  %v262 = vld [vmem:[%s3 + $0x388] sm:$0xf]
  %v263 = vld [vmem:[%s3 + $0x38c] sm:$0xf]
  %v264 = vld [vmem:[%s3 + $0x390] sm:$0xf]
  %v265 = vld [vmem:[%s3 + $0x394] sm:$0xf]
  %v266 = vld [vmem:[%s3 + $0x398] sm:$0xf]
  %v267 = vld [vmem:[%s3 + $0x39c] sm:$0xf]
  %v268 = vld [vmem:[%s3 + $0x3a0] sm:$0xf]
  %v269 = vld [vmem:[%s3 + $0x3a4] sm:$0xf]
  %v270 = vld [vmem:[%s3 + $0x3a8] sm:$0xf]
  %v271 = vld [vmem:[%s3 + $0x3ac] sm:$0xf]
  %v272 = vld [vmem:[%s3 + $0x3b0] sm:$0xf]
  %v273 = vld [vmem:[%s3 + $0x3b4] sm:$0xf]
  %v274 = vld [vmem:[%s3 + $0x3b8] sm:$0xf]
  %v275 = vld [vmem:[%s3 + $0x3bc] sm:$0xf]
  %v276 = vld [vmem:[%s3 + $0x3c0] sm:$0xf]
  %v277 = vld [vmem:[%s3 + $0x3c4] sm:$0xf]
  %v278 = vld [vmem:[%s3 + $0x3c8] sm:$0xf]
  %v279 = vld [vmem:[%s3 + $0x3cc] sm:$0xf]
  %v280 = vld [vmem:[%s3 + $0x3d0] sm:$0xf]
  %v281 = vld [vmem:[%s3 + $0x3d4] sm:$0xf]
  %v282 = vld [vmem:[%s3 + $0x3d8] sm:$0xf]
  %v283 = vld [vmem:[%s3 + $0x3dc] sm:$0xf]
  %v284 = vld [vmem:[%s3 + $0x3e0] sm:$0xf]
  %v285 = vld [vmem:[%s3 + $0x3e4] sm:$0xf]
  %v286 = vld [vmem:[%s3 + $0x3e8] sm:$0xf]
  %v287 = vld [vmem:[%s3 + $0x3ec] sm:$0xf]
  %v288 = vld [vmem:[%s3 + $0x3f0] sm:$0xf]
  %v289 = vld [vmem:[%s3 + $0x3f4] sm:$0xf]
  %v290 = vld [vmem:[%s3 + $0x3f8] sm:$0xf]
  %v291 = vld [vmem:[%s3 + $0x3fc] sm:$0xf]
  %v292 = vld [vmem:[%s3 + $0x400] sm:$0xf]
  %v293 = vld [vmem:[%s3 + $0x404] sm:$0xf]
  %v294 = vld [vmem:[%s3 + $0x408] sm:$0xf]
  %v295 = vld [vmem:[%s3 + $0x40c] sm:$0xf]
  %v296 = vld [vmem:[%s3 + $0x410] sm:$0xf]
  %v297 = vld [vmem:[%s3 + $0x414] sm:$0xf]
  %v298 = vld [vmem:[%s3 + $0x418] sm:$0xf]
  %v299 = vld [vmem:[%s3 + $0x41c] sm:$0xf]
  %v300 = vld [vmem:[%s3 + $0x420] sm:$0xf]
  %v301 = vld [vmem:[%s3 + $0x424] sm:$0xf]
  %v302 = vld [vmem:[%s3 + $0x428] sm:$0xf]
  %v303 = vld [vmem:[%s3 + $0x42c] sm:$0xf]
  %v304 = vld [vmem:[%s3 + $0x430] sm:$0xf]
  %v305 = vld [vmem:[%s3 + $0x434] sm:$0xf]
  %v306 = vld [vmem:[%s3 + $0x438] sm:$0xf]
  %v307 = vld [vmem:[%s3 + $0x43c] sm:$0xf]
  %v308 = vld [vmem:[%s3 + $0x440] sm:$0xf]
  %v309 = vld [vmem:[%s3 + $0x444] sm:$0xf]
  %v310 = vld [vmem:[%s3 + $0x448] sm:$0xf]
  %v311 = vld [vmem:[%s3 + $0x44c] sm:$0xf]
  %v312 = vld [vmem:[%s3 + $0x450] sm:$0xf]
  %v313 = vld [vmem:[%s3 + $0x454] sm:$0xf]
  %v314 = vld [vmem:[%s3 + $0x458] sm:$0xf]
  %v315 = vld [vmem:[%s3 + $0x45c] sm:$0xf]
  %v316 = vld [vmem:[%s3 + $0x460] sm:$0xf]
  %v317 = vld [vmem:[%s3 + $0x464] sm:$0xf]
  %v318 = vld [vmem:[%s3 + $0x468] sm:$0xf]
  %v319 = vld [vmem:[%s3 + $0x46c] sm:$0xf]
  %v320 = vld [vmem:[%s3 + $0x470] sm:$0xf]
  %v321 = vld [vmem:[%s3 + $0x474] sm:$0xf]
  %v322 = vld [vmem:[%s3 + $0x478] sm:$0xf]
  %v323 = vld [vmem:[%s3 + $0x47c] sm:$0xf]
  %v324 = vlaneseq
  %v325 = vshrl.u32 %v324, 7
  %v326 = vsub.s32 0, %v325
  %v327 = vrot.slane %v24, %v326
  %v337 = vunpack.c.l.b16 %v27
  %v338 = vunpack.c.h.b16 %v27
  %v339 = vunpack.c.l.b16 %v28
  %v340 = vunpack.c.h.b16 %v28
  %v341 = vunpack.c.l.b16 %v29
  %v342 = vunpack.c.h.b16 %v29
  %v343 = vunpack.c.l.b16 %v30
  %v344 = vunpack.c.h.b16 %v30
  %v345 = vunpack.c.l.b16 %v31
  %v346 = vunpack.c.h.b16 %v31
  %v347 = vunpack.c.l.b16 %v32
  %v348 = vunpack.c.h.b16 %v32
  %v349 = vunpack.c.l.b16 %v33
  %v350 = vunpack.c.h.b16 %v33
  %v351 = vunpack.c.l.b16 %v34
  %v352 = vunpack.c.h.b16 %v34
  %v353 = vunpack.c.l.b16 %v35
  %v354 = vunpack.c.h.b16 %v35
  %v355 = vpack.c.b16 %v337, %v337
  %v356 = vpack.c.b16 %v338, %v338
  %v357 = vpack.c.b16 %v339, %v339
  %v358 = vpack.c.b16 %v340, %v340
  %v359 = vpack.c.b16 %v341, %v341
  %v360 = vpack.c.b16 %v342, %v342
  %v361 = vpack.c.b16 %v343, %v343
  %v362 = vpack.c.b16 %v344, %v344
  %v363 = vpack.c.b16 %v345, %v345
  %v364 = vpack.c.b16 %v346, %v346
  %v365 = vpack.c.b16 %v347, %v347
  %v366 = vpack.c.b16 %v348, %v348
  %v367 = vpack.c.b16 %v349, %v349
  %v368 = vpack.c.b16 %v350, %v350
  %v369 = vpack.c.b16 %v351, %v351
  %v370 = vpack.c.b16 %v352, %v352
  %v371 = vpack.c.b16 %v353, %v353
  %v372 = vpack.c.b16 %v354, %v354
  %v679 = vunpack.c.l.b16 %v36
  %v680 = vunpack.c.l.b16 %v37
  %v681 = vunpack.c.l.b16 %v38
  %v682 = vunpack.c.l.b16 %v39
  %v683 = vunpack.c.l.b16 %v40
  %v684 = vunpack.c.l.b16 %v41
  %v685 = vunpack.c.l.b16 %v42
  %v686 = vunpack.c.l.b16 %v43
  %v687 = vunpack.c.l.b16 %v44
  %v688 = vunpack.c.l.b16 %v45
  %v689 = vunpack.c.l.b16 %v46
  %v690 = vunpack.c.l.b16 %v47
  %v691 = vunpack.c.l.b16 %v48
  %v692 = vunpack.c.l.b16 %v49
  %v693 = vunpack.c.l.b16 %v50
  %v694 = vunpack.c.l.b16 %v51
  %v695 = vunpack.c.l.b16 %v52
  %v696 = vunpack.c.l.b16 %v53
  %v697 = vunpack.c.l.b16 %v54
  %v698 = vunpack.c.l.b16 %v55
  %v699 = vunpack.c.l.b16 %v56
  %v700 = vunpack.c.l.b16 %v57
  %v701 = vunpack.c.l.b16 %v58
  %v702 = vunpack.c.l.b16 %v59
  %v703 = vunpack.c.l.b16 %v60
  %v704 = vunpack.c.l.b16 %v61
  %v705 = vunpack.c.l.b16 %v62
  %v706 = vunpack.c.l.b16 %v63
  %v707 = vunpack.c.l.b16 %v64
  %v708 = vunpack.c.l.b16 %v65
  %v709 = vunpack.c.l.b16 %v66
  %v710 = vunpack.c.l.b16 %v67
  %v711 = vunpack.c.l.b16 %v68
  %v712 = vunpack.c.l.b16 %v69
  %v713 = vunpack.c.l.b16 %v70
  %v714 = vunpack.c.l.b16 %v71
  %v715 = vunpack.c.l.b16 %v72
  %v716 = vunpack.c.l.b16 %v73
  %v717 = vunpack.c.l.b16 %v74
  %v718 = vunpack.c.l.b16 %v75
  %v719 = vunpack.c.l.b16 %v76
  %v720 = vunpack.c.l.b16 %v77
  %v721 = vunpack.c.l.b16 %v78
  %v722 = vunpack.c.l.b16 %v79
  %v723 = vunpack.c.l.b16 %v80
  %v724 = vunpack.c.l.b16 %v81
  %v725 = vunpack.c.l.b16 %v82
  %v726 = vunpack.c.l.b16 %v83
  %v727 = vunpack.c.l.b16 %v84
  %v728 = vunpack.c.l.b16 %v85
  %v729 = vunpack.c.l.b16 %v86
  %v730 = vunpack.c.l.b16 %v87
  %v731 = vunpack.c.l.b16 %v88
  %v732 = vunpack.c.l.b16 %v89
  %v733 = vunpack.c.l.b16 %v90
  %v734 = vunpack.c.l.b16 %v91
  %v735 = vunpack.c.l.b16 %v92
  %v736 = vunpack.c.l.b16 %v93
  %v737 = vunpack.c.l.b16 %v94
  %v738 = vunpack.c.l.b16 %v95
  %v739 = vunpack.c.l.b16 %v96
  %v740 = vunpack.c.l.b16 %v97
  %v741 = vunpack.c.l.b16 %v98
  %v742 = vunpack.c.l.b16 %v99
  %v743 = vunpack.c.l.b16 %v100
  %v744 = vunpack.c.l.b16 %v101
  %v745 = vunpack.c.l.b16 %v102
  %v746 = vunpack.c.l.b16 %v103
  %v747 = vunpack.c.l.b16 %v104
  %v748 = vunpack.c.l.b16 %v105
  %v749 = vunpack.c.l.b16 %v106
  %v750 = vunpack.c.l.b16 %v107
  %v751 = vunpack.c.l.b16 %v108
  %v752 = vunpack.c.l.b16 %v109
  %v753 = vunpack.c.l.b16 %v110
  %v754 = vunpack.c.l.b16 %v111
  %v755 = vunpack.c.l.b16 %v112
  %v756 = vunpack.c.l.b16 %v113
  %v757 = vunpack.c.l.b16 %v114
  %v758 = vunpack.c.l.b16 %v115
  %v759 = vunpack.c.l.b16 %v116
  %v760 = vunpack.c.l.b16 %v117
  %v761 = vunpack.c.l.b16 %v118
  %v762 = vunpack.c.l.b16 %v119
  %v763 = vunpack.c.l.b16 %v120
  %v764 = vunpack.c.l.b16 %v121
  %v765 = vunpack.c.l.b16 %v122
  %v766 = vunpack.c.l.b16 %v123
  %v767 = vunpack.c.l.b16 %v124
  %v768 = vunpack.c.l.b16 %v125
  %v769 = vunpack.c.l.b16 %v126
  %v770 = vunpack.c.l.b16 %v127
  %v771 = vunpack.c.l.b16 %v128
  %v772 = vunpack.c.l.b16 %v129
  %v773 = vunpack.c.l.b16 %v130
  %v774 = vunpack.c.l.b16 %v131
  %v775 = vunpack.c.l.b16 %v132
  %v776 = vunpack.c.l.b16 %v133
  %v777 = vunpack.c.l.b16 %v134
  %v778 = vunpack.c.l.b16 %v135
  %v779 = vunpack.c.l.b16 %v136
  %v780 = vunpack.c.l.b16 %v137
  %v781 = vunpack.c.l.b16 %v138
  %v782 = vunpack.c.l.b16 %v139
  %v783 = vunpack.c.l.b16 %v140
  %v784 = vunpack.c.l.b16 %v141
  %v785 = vunpack.c.l.b16 %v142
  %v786 = vunpack.c.l.b16 %v143
  %v787 = vunpack.c.l.b16 %v144
  %v788 = vunpack.c.l.b16 %v145
  %v789 = vunpack.c.l.b16 %v146
  %v790 = vunpack.c.l.b16 %v147
  %v791 = vunpack.c.l.b16 %v148
  %v792 = vunpack.c.l.b16 %v149
  %v793 = vunpack.c.l.b16 %v150
  %v794 = vunpack.c.l.b16 %v151
  %v795 = vunpack.c.l.b16 %v152
  %v796 = vunpack.c.l.b16 %v153
  %v797 = vunpack.c.l.b16 %v154
  %v798 = vunpack.c.l.b16 %v155
  %v799 = vunpack.c.l.b16 %v156
  %v800 = vunpack.c.l.b16 %v157
  %v801 = vunpack.c.l.b16 %v158
  %v802 = vunpack.c.l.b16 %v159
  %v803 = vunpack.c.l.b16 %v160
  %v804 = vunpack.c.l.b16 %v161
  %v805 = vunpack.c.l.b16 %v162
  %v806 = vunpack.c.l.b16 %v163
  %v807 = vunpack.c.l.b16 %v164
  %v808 = vunpack.c.l.b16 %v165
  %v809 = vunpack.c.l.b16 %v166
  %v810 = vunpack.c.l.b16 %v167
  %v811 = vunpack.c.l.b16 %v168
  %v812 = vunpack.c.l.b16 %v169
  %v813 = vunpack.c.l.b16 %v170
  %v814 = vunpack.c.l.b16 %v171
  %v815 = vunpack.c.l.b16 %v172
  %v816 = vunpack.c.l.b16 %v173
  %v817 = vunpack.c.l.b16 %v174
  %v818 = vunpack.c.l.b16 %v175
  %v819 = vunpack.c.l.b16 %v176
  %v820 = vunpack.c.l.b16 %v177
  %v821 = vunpack.c.l.b16 %v178
  %v822 = vunpack.c.l.b16 %v179
  %v823 = vunpack.c.l.b16 %v180
  %v824 = vunpack.c.l.b16 %v181
  %v825 = vunpack.c.l.b16 %v182
  %v826 = vunpack.c.l.b16 %v183
  %v827 = vunpack.c.l.b16 %v184
  %v828 = vunpack.c.l.b16 %v185
  %v829 = vunpack.c.l.b16 %v186
  %v830 = vunpack.c.l.b16 %v187
  %v831 = vunpack.c.l.b16 %v188
  %v832 = vunpack.c.l.b16 %v189
  %v833 = vunpack.c.l.b16 %v190
  %v834 = vunpack.c.l.b16 %v191
  %v835 = vunpack.c.l.b16 %v192
  %v836 = vunpack.c.l.b16 %v193
  %v837 = vunpack.c.l.b16 %v194
  %v838 = vunpack.c.l.b16 %v195
  %v839 = vunpack.c.l.b16 %v196
  %v840 = vunpack.c.l.b16 %v197
  %v841 = vunpack.c.l.b16 %v198
  %v842 = vunpack.c.l.b16 %v199
  %v843 = vunpack.c.l.b16 %v200
  %v844 = vunpack.c.l.b16 %v201
  %v845 = vunpack.c.l.b16 %v202
  %v846 = vunpack.c.l.b16 %v203
  %v847 = vunpack.c.l.b16 %v204
  %v848 = vunpack.c.l.b16 %v205
  %v849 = vunpack.c.l.b16 %v206
  %v850 = vunpack.c.l.b16 %v207
  %v851 = vunpack.c.l.b16 %v208
  %v852 = vunpack.c.l.b16 %v209
  %v853 = vunpack.c.l.b16 %v210
  %v854 = vunpack.c.l.b16 %v211
  %v855 = vunpack.c.l.b16 %v212
  %v856 = vunpack.c.l.b16 %v213
  %v857 = vunpack.c.l.b16 %v214
  %v858 = vunpack.c.l.b16 %v215
  %v859 = vunpack.c.l.b16 %v216
  %v860 = vunpack.c.l.b16 %v217
  %v861 = vunpack.c.l.b16 %v218
  %v862 = vunpack.c.l.b16 %v219
  %v863 = vunpack.c.l.b16 %v220
  %v864 = vunpack.c.l.b16 %v221
  %v865 = vunpack.c.l.b16 %v222
  %v866 = vunpack.c.l.b16 %v223
  %v867 = vunpack.c.l.b16 %v224
  %v868 = vunpack.c.l.b16 %v225
  %v869 = vunpack.c.l.b16 %v226
  %v870 = vunpack.c.l.b16 %v227
  %v871 = vunpack.c.l.b16 %v228
  %v872 = vunpack.c.l.b16 %v229
  %v873 = vunpack.c.l.b16 %v230
  %v874 = vunpack.c.l.b16 %v231
  %v875 = vunpack.c.l.b16 %v232
  %v876 = vunpack.c.l.b16 %v233
  %v877 = vunpack.c.l.b16 %v234
  %v878 = vunpack.c.l.b16 %v235
  %v879 = vunpack.c.l.b16 %v236
  %v880 = vunpack.c.l.b16 %v237
  %v881 = vunpack.c.l.b16 %v238
  %v882 = vunpack.c.l.b16 %v239
  %v883 = vunpack.c.l.b16 %v240
  %v884 = vunpack.c.l.b16 %v241
  %v885 = vunpack.c.l.b16 %v242
  %v886 = vunpack.c.l.b16 %v243
  %v887 = vunpack.c.l.b16 %v244
  %v888 = vunpack.c.l.b16 %v245
  %v889 = vunpack.c.l.b16 %v246
  %v890 = vunpack.c.l.b16 %v247
  %v891 = vunpack.c.l.b16 %v248
  %v892 = vunpack.c.l.b16 %v249
  %v893 = vunpack.c.l.b16 %v250
  %v894 = vunpack.c.l.b16 %v251
  %v895 = vunpack.c.l.b16 %v252
  %v896 = vunpack.c.l.b16 %v253
  %v897 = vunpack.c.l.b16 %v254
  %v898 = vunpack.c.l.b16 %v255
  %v899 = vunpack.c.l.b16 %v256
  %v900 = vunpack.c.l.b16 %v257
  %v901 = vunpack.c.l.b16 %v258
  %v902 = vunpack.c.l.b16 %v259
  %v903 = vunpack.c.l.b16 %v260
  %v904 = vunpack.c.l.b16 %v261
  %v905 = vunpack.c.l.b16 %v262
  %v906 = vunpack.c.l.b16 %v263
  %v907 = vunpack.c.l.b16 %v264
  %v908 = vunpack.c.l.b16 %v265
  %v909 = vunpack.c.l.b16 %v266
  %v910 = vunpack.c.l.b16 %v267
  %v911 = vunpack.c.l.b16 %v268
  %v912 = vunpack.c.l.b16 %v269
  %v913 = vunpack.c.l.b16 %v270
  %v914 = vunpack.c.l.b16 %v271
  %v915 = vunpack.c.l.b16 %v272
  %v916 = vunpack.c.l.b16 %v273
  %v917 = vunpack.c.l.b16 %v274
  %v918 = vunpack.c.l.b16 %v275
  %v919 = vunpack.c.l.b16 %v276
  %v920 = vunpack.c.l.b16 %v277
  %v921 = vunpack.c.l.b16 %v278
  %v922 = vunpack.c.l.b16 %v279
  %v923 = vunpack.c.l.b16 %v280
  %v924 = vunpack.c.l.b16 %v281
  %v925 = vunpack.c.l.b16 %v282
  %v926 = vunpack.c.l.b16 %v283
  %v927 = vunpack.c.l.b16 %v284
  %v928 = vunpack.c.l.b16 %v285
  %v929 = vunpack.c.l.b16 %v286
  %v930 = vunpack.c.l.b16 %v287
  %v931 = vunpack.c.l.b16 %v288
  %v932 = vunpack.c.l.b16 %v289
  %v933 = vunpack.c.l.b16 %v290
  %v934 = vunpack.c.l.b16 %v291
  %v935 = vunpack.c.l.b16 %v292
  %v936 = vunpack.c.l.b16 %v293
  %v937 = vunpack.c.l.b16 %v294
  %v938 = vunpack.c.l.b16 %v295
  %v939 = vunpack.c.l.b16 %v296
  %v940 = vunpack.c.l.b16 %v297
  %v941 = vunpack.c.l.b16 %v298
  %v942 = vunpack.c.l.b16 %v299
  %v943 = vunpack.c.l.b16 %v300
  %v944 = vunpack.c.l.b16 %v301
  %v945 = vunpack.c.l.b16 %v302
  %v946 = vunpack.c.l.b16 %v303
  %v947 = vunpack.c.l.b16 %v304
  %v948 = vunpack.c.l.b16 %v305
  %v949 = vunpack.c.l.b16 %v306
  %v950 = vunpack.c.l.b16 %v307
  %v951 = vunpack.c.l.b16 %v308
  %v952 = vunpack.c.l.b16 %v309
  %v953 = vunpack.c.l.b16 %v310
  %v954 = vunpack.c.l.b16 %v311
  %v955 = vunpack.c.l.b16 %v312
  %v956 = vunpack.c.l.b16 %v313
  %v957 = vunpack.c.l.b16 %v314
  %v958 = vunpack.c.l.b16 %v315
  %v959 = vunpack.c.l.b16 %v316
  %v960 = vunpack.c.l.b16 %v317
  %v961 = vunpack.c.l.b16 %v318
  %v962 = vunpack.c.l.b16 %v319
  %v963 = vunpack.c.l.b16 %v320
  %v964 = vunpack.c.l.b16 %v321
  %v965 = vunpack.c.l.b16 %v322
  %v966 = vunpack.c.l.b16 %v323
  %v967 = vpack.c.b16 %v680, %v679
  %v968 = vpack.c.b16 %v682, %v681
  %v969 = vpack.c.b16 %v684, %v683
  %v970 = vpack.c.b16 %v686, %v685
  %v971 = vpack.c.b16 %v688, %v687
  %v972 = vpack.c.b16 %v690, %v689
  %v973 = vpack.c.b16 %v692, %v691
  %v974 = vpack.c.b16 %v694, %v693
  %v975 = vpack.c.b16 %v696, %v695
  %v976 = vpack.c.b16 %v698, %v697
  %v977 = vpack.c.b16 %v700, %v699
  %v978 = vpack.c.b16 %v702, %v701
  %v979 = vpack.c.b16 %v704, %v703
  %v980 = vpack.c.b16 %v706, %v705
  %v981 = vpack.c.b16 %v708, %v707
  %v982 = vpack.c.b16 %v710, %v709
  %v983 = vpack.c.b16 %v712, %v711
  %v984 = vpack.c.b16 %v714, %v713
  %v985 = vpack.c.b16 %v716, %v715
  %v986 = vpack.c.b16 %v718, %v717
  %v987 = vpack.c.b16 %v720, %v719
  %v988 = vpack.c.b16 %v722, %v721
  %v989 = vpack.c.b16 %v724, %v723
  %v990 = vpack.c.b16 %v726, %v725
  %v991 = vpack.c.b16 %v728, %v727
  %v992 = vpack.c.b16 %v730, %v729
  %v993 = vpack.c.b16 %v732, %v731
  %v994 = vpack.c.b16 %v734, %v733
  %v995 = vpack.c.b16 %v736, %v735
  %v996 = vpack.c.b16 %v738, %v737
  %v997 = vpack.c.b16 %v740, %v739
  %v998 = vpack.c.b16 %v742, %v741
  %v999 = vpack.c.b16 %v744, %v743
  %v1000 = vpack.c.b16 %v746, %v745
  %v1001 = vpack.c.b16 %v748, %v747
  %v1002 = vpack.c.b16 %v750, %v749
  %v1003 = vpack.c.b16 %v752, %v751
  %v1004 = vpack.c.b16 %v754, %v753
  %v1005 = vpack.c.b16 %v756, %v755
  %v1006 = vpack.c.b16 %v758, %v757
  %v1007 = vpack.c.b16 %v760, %v759
  %v1008 = vpack.c.b16 %v762, %v761
  %v1009 = vpack.c.b16 %v764, %v763
  %v1010 = vpack.c.b16 %v766, %v765
  %v1011 = vpack.c.b16 %v768, %v767
  %v1012 = vpack.c.b16 %v770, %v769
  %v1013 = vpack.c.b16 %v772, %v771
  %v1014 = vpack.c.b16 %v774, %v773
  %v1015 = vpack.c.b16 %v776, %v775
  %v1016 = vpack.c.b16 %v778, %v777
  %v1017 = vpack.c.b16 %v780, %v779
  %v1018 = vpack.c.b16 %v782, %v781
  %v1019 = vpack.c.b16 %v784, %v783
  %v1020 = vpack.c.b16 %v786, %v785
  %v1021 = vpack.c.b16 %v788, %v787
  %v1022 = vpack.c.b16 %v790, %v789
  %v1023 = vpack.c.b16 %v792, %v791
  %v1024 = vpack.c.b16 %v794, %v793
  %v1025 = vpack.c.b16 %v796, %v795
  %v1026 = vpack.c.b16 %v798, %v797
  %v1027 = vpack.c.b16 %v800, %v799
  %v1028 = vpack.c.b16 %v802, %v801
  %v1029 = vpack.c.b16 %v804, %v803
  %v1030 = vpack.c.b16 %v806, %v805
  %v1031 = vpack.c.b16 %v808, %v807
  %v1032 = vpack.c.b16 %v810, %v809
  %v1033 = vpack.c.b16 %v812, %v811
  %v1034 = vpack.c.b16 %v814, %v813
  %v1035 = vpack.c.b16 %v816, %v815
  %v1036 = vpack.c.b16 %v818, %v817
  %v1037 = vpack.c.b16 %v820, %v819
  %v1038 = vpack.c.b16 %v822, %v821
  %v1039 = vpack.c.b16 %v824, %v823
  %v1040 = vpack.c.b16 %v826, %v825
  %v1041 = vpack.c.b16 %v828, %v827
  %v1042 = vpack.c.b16 %v830, %v829
  %v1043 = vpack.c.b16 %v832, %v831
  %v1044 = vpack.c.b16 %v834, %v833
  %v1045 = vpack.c.b16 %v836, %v835
  %v1046 = vpack.c.b16 %v838, %v837
  %v1047 = vpack.c.b16 %v840, %v839
  %v1048 = vpack.c.b16 %v842, %v841
  %v1049 = vpack.c.b16 %v844, %v843
  %v1050 = vpack.c.b16 %v846, %v845
  %v1051 = vpack.c.b16 %v848, %v847
  %v1052 = vpack.c.b16 %v850, %v849
  %v1053 = vpack.c.b16 %v852, %v851
  %v1054 = vpack.c.b16 %v854, %v853
  %v1055 = vpack.c.b16 %v856, %v855
  %v1056 = vpack.c.b16 %v858, %v857
  %v1057 = vpack.c.b16 %v860, %v859
  %v1058 = vpack.c.b16 %v862, %v861
  %v1059 = vpack.c.b16 %v864, %v863
  %v1060 = vpack.c.b16 %v866, %v865
  %v1061 = vpack.c.b16 %v868, %v867
  %v1062 = vpack.c.b16 %v870, %v869
  %v1063 = vpack.c.b16 %v872, %v871
  %v1064 = vpack.c.b16 %v874, %v873
  %v1065 = vpack.c.b16 %v876, %v875
  %v1066 = vpack.c.b16 %v878, %v877
  %v1067 = vpack.c.b16 %v880, %v879
  %v1068 = vpack.c.b16 %v882, %v881
  %v1069 = vpack.c.b16 %v884, %v883
  %v1070 = vpack.c.b16 %v886, %v885
  %v1071 = vpack.c.b16 %v888, %v887
  %v1072 = vpack.c.b16 %v890, %v889
  %v1073 = vpack.c.b16 %v892, %v891
  %v1074 = vpack.c.b16 %v894, %v893
  %v1075 = vpack.c.b16 %v896, %v895
  %v1076 = vpack.c.b16 %v898, %v897
  %v1077 = vpack.c.b16 %v900, %v899
  %v1078 = vpack.c.b16 %v902, %v901
  %v1079 = vpack.c.b16 %v904, %v903
  %v1080 = vpack.c.b16 %v906, %v905
  %v1081 = vpack.c.b16 %v908, %v907
  %v1082 = vpack.c.b16 %v910, %v909
  %v1083 = vpack.c.b16 %v912, %v911
  %v1084 = vpack.c.b16 %v914, %v913
  %v1085 = vpack.c.b16 %v916, %v915
  %v1086 = vpack.c.b16 %v918, %v917
  %v1087 = vpack.c.b16 %v920, %v919
  %v1088 = vpack.c.b16 %v922, %v921
  %v1089 = vpack.c.b16 %v924, %v923
  %v1090 = vpack.c.b16 %v926, %v925
  %v1091 = vpack.c.b16 %v928, %v927
  %v1092 = vpack.c.b16 %v930, %v929
  %v1093 = vpack.c.b16 %v932, %v931
  %v1094 = vpack.c.b16 %v934, %v933
  %v1095 = vpack.c.b16 %v936, %v935
  %v1096 = vpack.c.b16 %v938, %v937
  %v1097 = vpack.c.b16 %v940, %v939
  %v1098 = vpack.c.b16 %v942, %v941
  %v1099 = vpack.c.b16 %v944, %v943
  %v1100 = vpack.c.b16 %v946, %v945
  %v1101 = vpack.c.b16 %v948, %v947
  %v1102 = vpack.c.b16 %v950, %v949
  %v1103 = vpack.c.b16 %v952, %v951
  %v1104 = vpack.c.b16 %v954, %v953
  %v1105 = vpack.c.b16 %v956, %v955
  %v1106 = vpack.c.b16 %v958, %v957
  %v1107 = vpack.c.b16 %v960, %v959
  %v1108 = vpack.c.b16 %v962, %v961
  %v1109 = vpack.c.b16 %v964, %v963
  %v1110 = vpack.c.b16 %v966, %v965
  %1255 = vmatprep.subr.bf16.mxu0 0
  %1256 = vmatpush1.bf16.msra.mxu0 %v967
  %1257 = vmatprep.subr.bf16.mxu0 0
  %1258 = vmatpush1.bf16.msra.mxu0 %v968
  %1259 = vmatprep.subr.bf16.mxu0 0
  %1260 = vmatpush1.bf16.msra.mxu0 %v969
  %1261 = vmatprep.subr.bf16.mxu0 0
  %1262 = vmatpush1.bf16.msra.mxu0 %v970
  %1263 = vmatprep.subr.bf16.mxu0 0
  %1264 = vmatpush1.bf16.msra.mxu0 %v971
  %1265 = vmatprep.subr.bf16.mxu0 0
  %1266 = vmatpush1.bf16.msra.mxu0 %v972
  %1267 = vmatprep.subr.bf16.mxu0 0
  %1268 = vmatpush1.bf16.msra.mxu0 %v973
  %1269 = vmatprep.subr.bf16.mxu0 0
  %1270 = vmatpush1.bf16.msra.mxu0 %v974
  %1271 = vmatprep.subr.bf16.mxu0 0
  %1272 = vmatpush1.bf16.msra.mxu0 %v975
  %1273 = vmatprep.subr.bf16.mxu0 0
  %1274 = vmatpush1.bf16.msra.mxu0 %v976
  %1275 = vmatprep.subr.bf16.mxu0 0
  %1276 = vmatpush1.bf16.msra.mxu0 %v977
  %1277 = vmatprep.subr.bf16.mxu0 0
  %1278 = vmatpush1.bf16.msra.mxu0 %v978
  %1279 = vmatprep.subr.bf16.mxu0 0
  %1280 = vmatpush1.bf16.msra.mxu0 %v979
  %1281 = vmatprep.subr.bf16.mxu0 0
  %1282 = vmatpush1.bf16.msra.mxu0 %v980
  %1283 = vmatprep.subr.bf16.mxu0 0
  %1284 = vmatpush1.bf16.msra.mxu0 %v981
  %1285 = vmatprep.subr.bf16.mxu0 0
  %1286 = vmatpush1.bf16.msra.mxu0 %v982
  %1287 = vmatprep.mubr.bf16.mxu0 %v356
  %1288 = vmatmul.mubr.bf16.gmra.mrb[0].mxu0 %v355
  %v1289 = vpop.f32.mrb[0].mxu0
  %v1290 = vadd.f32 %v327, %v1289
  %v1291 = vpop.f32.mrb[0].mxu0
  %v1292 = vpop.f32.mrb[0].mxu0
  %v1293 = vpop.f32.mrb[0].mxu0
  %1294 = vdwg.mxu0
  %1295 = vmatprep.subr.bf16.mxu0 0
  %1296 = vmatpush1.bf16.msra.mxu0 %v983
  %1297 = vmatprep.subr.bf16.mxu0 0
  %1298 = vmatpush1.bf16.msra.mxu0 %v984
  %1299 = vmatprep.subr.bf16.mxu0 0
  %1300 = vmatpush1.bf16.msra.mxu0 %v985
  %1301 = vmatprep.subr.bf16.mxu0 0
  %1302 = vmatpush1.bf16.msra.mxu0 %v986
  %1303 = vmatprep.subr.bf16.mxu0 0
  %1304 = vmatpush1.bf16.msra.mxu0 %v987
  %1305 = vmatprep.subr.bf16.mxu0 0
  %1306 = vmatpush1.bf16.msra.mxu0 %v988
  %1307 = vmatprep.subr.bf16.mxu0 0
  %1308 = vmatpush1.bf16.msra.mxu0 %v989
  %1309 = vmatprep.subr.bf16.mxu0 0
  %1310 = vmatpush1.bf16.msra.mxu0 %v990
  %1311 = vmatprep.subr.bf16.mxu0 0
  %1312 = vmatpush1.bf16.msra.mxu0 %v991
  %1313 = vmatprep.subr.bf16.mxu0 0
  %1314 = vmatpush1.bf16.msra.mxu0 %v992
  %1315 = vmatprep.subr.bf16.mxu0 0
  %1316 = vmatpush1.bf16.msra.mxu0 %v993
  %1317 = vmatprep.subr.bf16.mxu0 0
  %1318 = vmatpush1.bf16.msra.mxu0 %v994
  %1319 = vmatprep.subr.bf16.mxu0 0
  %1320 = vmatpush1.bf16.msra.mxu0 %v995
  %1321 = vmatprep.subr.bf16.mxu0 0
  %1322 = vmatpush1.bf16.msra.mxu0 %v996
  %1323 = vmatprep.subr.bf16.mxu0 0
  %1324 = vmatpush1.bf16.msra.mxu0 %v997
  %1325 = vmatprep.subr.bf16.mxu0 0
  %1326 = vmatpush1.bf16.msra.mxu0 %v998
  %1327 = vmatprep.mubr.bf16.mxu0 %v358
  %1328 = vmatmul.mubr.bf16.gmra.mrb[0].mxu0 %v357
  %v1329 = vpop.f32.mrb[0].mxu0
  %v1330 = vadd.f32 %v1290, %v1329
  %v1331 = vpop.f32.mrb[0].mxu0
  %v1332 = vpop.f32.mrb[0].mxu0
  %v1333 = vpop.f32.mrb[0].mxu0
  %1334 = vdwg.mxu0
  %1335 = vmatprep.subr.bf16.mxu0 0
  %1336 = vmatpush1.bf16.msra.mxu0 %v999
  %1337 = vmatprep.subr.bf16.mxu0 0
  %1338 = vmatpush1.bf16.msra.mxu0 %v1000
  %1339 = vmatprep.subr.bf16.mxu0 0
  %1340 = vmatpush1.bf16.msra.mxu0 %v1001
  %1341 = vmatprep.subr.bf16.mxu0 0
  %1342 = vmatpush1.bf16.msra.mxu0 %v1002
  %1343 = vmatprep.subr.bf16.mxu0 0
  %1344 = vmatpush1.bf16.msra.mxu0 %v1003
  %1345 = vmatprep.subr.bf16.mxu0 0
  %1346 = vmatpush1.bf16.msra.mxu0 %v1004
  %1347 = vmatprep.subr.bf16.mxu0 0
  %1348 = vmatpush1.bf16.msra.mxu0 %v1005
  %1349 = vmatprep.subr.bf16.mxu0 0
  %1350 = vmatpush1.bf16.msra.mxu0 %v1006
  %1351 = vmatprep.subr.bf16.mxu0 0
  %1352 = vmatpush1.bf16.msra.mxu0 %v1007
  %1353 = vmatprep.subr.bf16.mxu0 0
  %1354 = vmatpush1.bf16.msra.mxu0 %v1008
  %1355 = vmatprep.subr.bf16.mxu0 0
  %1356 = vmatpush1.bf16.msra.mxu0 %v1009
  %1357 = vmatprep.subr.bf16.mxu0 0
  %1358 = vmatpush1.bf16.msra.mxu0 %v1010
  %1359 = vmatprep.subr.bf16.mxu0 0
  %1360 = vmatpush1.bf16.msra.mxu0 %v1011
  %1361 = vmatprep.subr.bf16.mxu0 0
  %1362 = vmatpush1.bf16.msra.mxu0 %v1012
  %1363 = vmatprep.subr.bf16.mxu0 0
  %1364 = vmatpush1.bf16.msra.mxu0 %v1013
  %1365 = vmatprep.subr.bf16.mxu0 0
  %1366 = vmatpush1.bf16.msra.mxu0 %v1014
  %1367 = vmatprep.mubr.bf16.mxu0 %v360
  %1368 = vmatmul.mubr.bf16.gmra.mrb[0].mxu0 %v359
  %v1369 = vpop.f32.mrb[0].mxu0
  %v1370 = vadd.f32 %v1330, %v1369
  %v1371 = vpop.f32.mrb[0].mxu0
  %v1372 = vpop.f32.mrb[0].mxu0
  %v1373 = vpop.f32.mrb[0].mxu0
  %1374 = vdwg.mxu0
  %1375 = vmatprep.subr.bf16.mxu0 0
  %1376 = vmatpush1.bf16.msra.mxu0 %v1015
  %1377 = vmatprep.subr.bf16.mxu0 0
  %1378 = vmatpush1.bf16.msra.mxu0 %v1016
  %1379 = vmatprep.subr.bf16.mxu0 0
  %1380 = vmatpush1.bf16.msra.mxu0 %v1017
  %1381 = vmatprep.subr.bf16.mxu0 0
  %1382 = vmatpush1.bf16.msra.mxu0 %v1018
  %1383 = vmatprep.subr.bf16.mxu0 0
  %1384 = vmatpush1.bf16.msra.mxu0 %v1019
  %1385 = vmatprep.subr.bf16.mxu0 0
  %1386 = vmatpush1.bf16.msra.mxu0 %v1020
  %1387 = vmatprep.subr.bf16.mxu0 0
  %1388 = vmatpush1.bf16.msra.mxu0 %v1021
  %1389 = vmatprep.subr.bf16.mxu0 0
  %1390 = vmatpush1.bf16.msra.mxu0 %v1022
  %1391 = vmatprep.subr.bf16.mxu0 0
  %1392 = vmatpush1.bf16.msra.mxu0 %v1023
  %1393 = vmatprep.subr.bf16.mxu0 0
  %1394 = vmatpush1.bf16.msra.mxu0 %v1024
  %1395 = vmatprep.subr.bf16.mxu0 0
  %1396 = vmatpush1.bf16.msra.mxu0 %v1025
  %1397 = vmatprep.subr.bf16.mxu0 0
  %1398 = vmatpush1.bf16.msra.mxu0 %v1026
  %1399 = vmatprep.subr.bf16.mxu0 0
  %1400 = vmatpush1.bf16.msra.mxu0 %v1027
  %1401 = vmatprep.subr.bf16.mxu0 0
  %1402 = vmatpush1.bf16.msra.mxu0 %v1028
  %1403 = vmatprep.subr.bf16.mxu0 0
  %1404 = vmatpush1.bf16.msra.mxu0 %v1029
  %1405 = vmatprep.subr.bf16.mxu0 0
  %1406 = vmatpush1.bf16.msra.mxu0 %v1030
  %1407 = vmatprep.mubr.bf16.mxu0 %v362
  %1408 = vmatmul.mubr.bf16.gmra.mrb[0].mxu0 %v361
  %v1409 = vpop.f32.mrb[0].mxu0
  %v1410 = vadd.f32 %v1370, %v1409
  %v1411 = vpop.f32.mrb[0].mxu0
  %v1412 = vpop.f32.mrb[0].mxu0
  %v1413 = vpop.f32.mrb[0].mxu0
  %1414 = vdwg.mxu0
  %1415 = vmatprep.subr.bf16.mxu0 0
  %1416 = vmatpush1.bf16.msra.mxu0 %v1031
  %1417 = vmatprep.subr.bf16.mxu0 0
  %1418 = vmatpush1.bf16.msra.mxu0 %v1032
  %1419 = vmatprep.subr.bf16.mxu0 0
  %1420 = vmatpush1.bf16.msra.mxu0 %v1033
  %1421 = vmatprep.subr.bf16.mxu0 0
  %1422 = vmatpush1.bf16.msra.mxu0 %v1034
  %1423 = vmatprep.subr.bf16.mxu0 0
  %1424 = vmatpush1.bf16.msra.mxu0 %v1035
  %1425 = vmatprep.subr.bf16.mxu0 0
  %1426 = vmatpush1.bf16.msra.mxu0 %v1036
  %1427 = vmatprep.subr.bf16.mxu0 0
  %1428 = vmatpush1.bf16.msra.mxu0 %v1037
  %1429 = vmatprep.subr.bf16.mxu0 0
  %1430 = vmatpush1.bf16.msra.mxu0 %v1038
  %1431 = vmatprep.subr.bf16.mxu0 0
  %1432 = vmatpush1.bf16.msra.mxu0 %v1039
  %1433 = vmatprep.subr.bf16.mxu0 0
  %1434 = vmatpush1.bf16.msra.mxu0 %v1040
  %1435 = vmatprep.subr.bf16.mxu0 0
  %1436 = vmatpush1.bf16.msra.mxu0 %v1041
  %1437 = vmatprep.subr.bf16.mxu0 0
  %1438 = vmatpush1.bf16.msra.mxu0 %v1042
  %1439 = vmatprep.subr.bf16.mxu0 0
  %1440 = vmatpush1.bf16.msra.mxu0 %v1043
  %1441 = vmatprep.subr.bf16.mxu0 0
  %1442 = vmatpush1.bf16.msra.mxu0 %v1044
  %1443 = vmatprep.subr.bf16.mxu0 0
  %1444 = vmatpush1.bf16.msra.mxu0 %v1045
  %1445 = vmatprep.subr.bf16.mxu0 0
  %1446 = vmatpush1.bf16.msra.mxu0 %v1046
  %1447 = vmatprep.mubr.bf16.mxu0 %v364
  %1448 = vmatmul.mubr.bf16.gmra.mrb[0].mxu0 %v363
  %v1449 = vpop.f32.mrb[0].mxu0
  %v1450 = vadd.f32 %v1410, %v1449
  %v1451 = vpop.f32.mrb[0].mxu0
  %v1452 = vpop.f32.mrb[0].mxu0
  %v1453 = vpop.f32.mrb[0].mxu0
  %1454 = vdwg.mxu0
  %1455 = vmatprep.subr.bf16.mxu0 0
  %1456 = vmatpush1.bf16.msra.mxu0 %v1047
  %1457 = vmatprep.subr.bf16.mxu0 0
  %1458 = vmatpush1.bf16.msra.mxu0 %v1048
  %1459 = vmatprep.subr.bf16.mxu0 0
  %1460 = vmatpush1.bf16.msra.mxu0 %v1049
  %1461 = vmatprep.subr.bf16.mxu0 0
  %1462 = vmatpush1.bf16.msra.mxu0 %v1050
  %1463 = vmatprep.subr.bf16.mxu0 0
  %1464 = vmatpush1.bf16.msra.mxu0 %v1051
  %1465 = vmatprep.subr.bf16.mxu0 0
  %1466 = vmatpush1.bf16.msra.mxu0 %v1052
  %1467 = vmatprep.subr.bf16.mxu0 0
  %1468 = vmatpush1.bf16.msra.mxu0 %v1053
  %1469 = vmatprep.subr.bf16.mxu0 0
  %1470 = vmatpush1.bf16.msra.mxu0 %v1054
  %1471 = vmatprep.subr.bf16.mxu0 0
  %1472 = vmatpush1.bf16.msra.mxu0 %v1055
  %1473 = vmatprep.subr.bf16.mxu0 0
  %1474 = vmatpush1.bf16.msra.mxu0 %v1056
  %1475 = vmatprep.subr.bf16.mxu0 0
  %1476 = vmatpush1.bf16.msra.mxu0 %v1057
  %1477 = vmatprep.subr.bf16.mxu0 0
  %1478 = vmatpush1.bf16.msra.mxu0 %v1058
  %1479 = vmatprep.subr.bf16.mxu0 0
  %1480 = vmatpush1.bf16.msra.mxu0 %v1059
  %1481 = vmatprep.subr.bf16.mxu0 0
  %1482 = vmatpush1.bf16.msra.mxu0 %v1060
  %1483 = vmatprep.subr.bf16.mxu0 0
  %1484 = vmatpush1.bf16.msra.mxu0 %v1061
  %1485 = vmatprep.subr.bf16.mxu0 0
  %1486 = vmatpush1.bf16.msra.mxu0 %v1062
  %1487 = vmatprep.mubr.bf16.mxu0 %v366
  %1488 = vmatmul.mubr.bf16.gmra.mrb[0].mxu0 %v365
  %v1489 = vpop.f32.mrb[0].mxu0
  %v1490 = vadd.f32 %v1450, %v1489
  %v1491 = vpop.f32.mrb[0].mxu0
  %v1492 = vpop.f32.mrb[0].mxu0
  %v1493 = vpop.f32.mrb[0].mxu0
  %1494 = vdwg.mxu0
  %1495 = vmatprep.subr.bf16.mxu0 0
  %1496 = vmatpush1.bf16.msra.mxu0 %v1063
  %1497 = vmatprep.subr.bf16.mxu0 0
  %1498 = vmatpush1.bf16.msra.mxu0 %v1064
  %1499 = vmatprep.subr.bf16.mxu0 0
  %1500 = vmatpush1.bf16.msra.mxu0 %v1065
  %1501 = vmatprep.subr.bf16.mxu0 0
  %1502 = vmatpush1.bf16.msra.mxu0 %v1066
  %1503 = vmatprep.subr.bf16.mxu0 0
  %1504 = vmatpush1.bf16.msra.mxu0 %v1067
  %1505 = vmatprep.subr.bf16.mxu0 0
  %1506 = vmatpush1.bf16.msra.mxu0 %v1068
  %1507 = vmatprep.subr.bf16.mxu0 0
  %1508 = vmatpush1.bf16.msra.mxu0 %v1069
  %1509 = vmatprep.subr.bf16.mxu0 0
  %1510 = vmatpush1.bf16.msra.mxu0 %v1070
  %1511 = vmatprep.subr.bf16.mxu0 0
  %1512 = vmatpush1.bf16.msra.mxu0 %v1071
  %1513 = vmatprep.subr.bf16.mxu0 0
  %1514 = vmatpush1.bf16.msra.mxu0 %v1072
  %1515 = vmatprep.subr.bf16.mxu0 0
  %1516 = vmatpush1.bf16.msra.mxu0 %v1073
  %1517 = vmatprep.subr.bf16.mxu0 0
  %1518 = vmatpush1.bf16.msra.mxu0 %v1074
  %1519 = vmatprep.subr.bf16.mxu0 0
  %1520 = vmatpush1.bf16.msra.mxu0 %v1075
  %1521 = vmatprep.subr.bf16.mxu0 0
  %1522 = vmatpush1.bf16.msra.mxu0 %v1076
  %1523 = vmatprep.subr.bf16.mxu0 0
  %1524 = vmatpush1.bf16.msra.mxu0 %v1077
  %1525 = vmatprep.subr.bf16.mxu0 0
  %1526 = vmatpush1.bf16.msra.mxu0 %v1078
  %1527 = vmatprep.mubr.bf16.mxu0 %v368
  %1528 = vmatmul.mubr.bf16.gmra.mrb[0].mxu0 %v367
  %v1529 = vpop.f32.mrb[0].mxu0
  %v1530 = vadd.f32 %v1490, %v1529
  %v1531 = vpop.f32.mrb[0].mxu0
  %v1532 = vpop.f32.mrb[0].mxu0
  %v1533 = vpop.f32.mrb[0].mxu0
  %1534 = vdwg.mxu0
  %1535 = vmatprep.subr.bf16.mxu0 0
  %1536 = vmatpush1.bf16.msra.mxu0 %v1079
  %1537 = vmatprep.subr.bf16.mxu0 0
  %1538 = vmatpush1.bf16.msra.mxu0 %v1080
  %1539 = vmatprep.subr.bf16.mxu0 0
  %1540 = vmatpush1.bf16.msra.mxu0 %v1081
  %1541 = vmatprep.subr.bf16.mxu0 0
  %1542 = vmatpush1.bf16.msra.mxu0 %v1082
  %1543 = vmatprep.subr.bf16.mxu0 0
  %1544 = vmatpush1.bf16.msra.mxu0 %v1083
  %1545 = vmatprep.subr.bf16.mxu0 0
  %1546 = vmatpush1.bf16.msra.mxu0 %v1084
  %1547 = vmatprep.subr.bf16.mxu0 0
  %1548 = vmatpush1.bf16.msra.mxu0 %v1085
  %1549 = vmatprep.subr.bf16.mxu0 0
  %1550 = vmatpush1.bf16.msra.mxu0 %v1086
  %1551 = vmatprep.subr.bf16.mxu0 0
  %1552 = vmatpush1.bf16.msra.mxu0 %v1087
  %1553 = vmatprep.subr.bf16.mxu0 0
  %1554 = vmatpush1.bf16.msra.mxu0 %v1088
  %1555 = vmatprep.subr.bf16.mxu0 0
  %1556 = vmatpush1.bf16.msra.mxu0 %v1089
  %1557 = vmatprep.subr.bf16.mxu0 0
  %1558 = vmatpush1.bf16.msra.mxu0 %v1090
  %1559 = vmatprep.subr.bf16.mxu0 0
  %1560 = vmatpush1.bf16.msra.mxu0 %v1091
  %1561 = vmatprep.subr.bf16.mxu0 0
  %1562 = vmatpush1.bf16.msra.mxu0 %v1092
  %1563 = vmatprep.subr.bf16.mxu0 0
  %1564 = vmatpush1.bf16.msra.mxu0 %v1093
  %1565 = vmatprep.subr.bf16.mxu0 0
  %1566 = vmatpush1.bf16.msra.mxu0 %v1094
  %1567 = vmatprep.mubr.bf16.mxu0 %v370
  %1568 = vmatmul.mubr.bf16.gmra.mrb[0].mxu0 %v369
  %v1569 = vpop.f32.mrb[0].mxu0
  %v1570 = vadd.f32 %v1530, %v1569
  %v1571 = vpop.f32.mrb[0].mxu0
  %v1572 = vpop.f32.mrb[0].mxu0
  %v1573 = vpop.f32.mrb[0].mxu0
  %1574 = vdwg.mxu0
  %1575 = vmatprep.subr.bf16.mxu0 0
  %1576 = vmatpush1.bf16.msra.mxu0 %v1095
  %1577 = vmatprep.subr.bf16.mxu0 0
  %1578 = vmatpush1.bf16.msra.mxu0 %v1096
  %1579 = vmatprep.subr.bf16.mxu0 0
  %1580 = vmatpush1.bf16.msra.mxu0 %v1097
  %1581 = vmatprep.subr.bf16.mxu0 0
  %1582 = vmatpush1.bf16.msra.mxu0 %v1098
  %1583 = vmatprep.subr.bf16.mxu0 0
  %1584 = vmatpush1.bf16.msra.mxu0 %v1099
  %1585 = vmatprep.subr.bf16.mxu0 0
  %1586 = vmatpush1.bf16.msra.mxu0 %v1100
  %1587 = vmatprep.subr.bf16.mxu0 0
  %1588 = vmatpush1.bf16.msra.mxu0 %v1101
  %1589 = vmatprep.subr.bf16.mxu0 0
  %1590 = vmatpush1.bf16.msra.mxu0 %v1102
  %1591 = vmatprep.subr.bf16.mxu0 0
  %1592 = vmatpush1.bf16.msra.mxu0 %v1103
  %1593 = vmatprep.subr.bf16.mxu0 0
  %1594 = vmatpush1.bf16.msra.mxu0 %v1104
  %1595 = vmatprep.subr.bf16.mxu0 0
  %1596 = vmatpush1.bf16.msra.mxu0 %v1105
  %1597 = vmatprep.subr.bf16.mxu0 0
  %1598 = vmatpush1.bf16.msra.mxu0 %v1106
  %1599 = vmatprep.subr.bf16.mxu0 0
  %1600 = vmatpush1.bf16.msra.mxu0 %v1107
  %1601 = vmatprep.subr.bf16.mxu0 0
  %1602 = vmatpush1.bf16.msra.mxu0 %v1108
  %1603 = vmatprep.subr.bf16.mxu0 0
  %1604 = vmatpush1.bf16.msra.mxu0 %v1109
  %1605 = vmatprep.subr.bf16.mxu0 0
  %1606 = vmatpush1.bf16.msra.mxu0 %v1110
  %1607 = vmatprep.mubr.bf16.mxu0 %v372
  %1608 = vmatmul.mubr.bf16.gmra.mrb[0].mxu0 %v371
  %v1609 = vpop.f32.mrb[0].mxu0
  %v1610 = vadd.f32 %v1570, %v1609
  %v1611 = vpop.f32.mrb[0].mxu0
  %v1612 = vpop.f32.mrb[0].mxu0
  %v1613 = vpop.f32.mrb[0].mxu0
  %1614 = vdwg.mxu0
  %1615 = vadd.xlane.f32.xlu0 %v1610
  %v1616 = vpop.xlane.xlu0 %1615
  %v1617 = vmul.f32 %v1616, 0.0078125
  %v1618 = vlaneseq
  %v1619 = vand.u32 %v1618, 127
  %vm1620 = vcmp.lt.s32.totalorder %v1619, 128
  %v1621 = vsub.f32 %v1610, %v1617
  %v1622 = vsel %vm1620, %v1621, 0.0
  %v1623 = vmul.f32 %v1622, %v1622
  %1624 = vadd.xlane.f32.xlu0 %v1623
  %v1625 = vpop.xlane.xlu0 %1624
  %v1626 = vmul.f32 %v1625, 0.0078125
  %v1627 = vadd.f32 %v1626, 1e-05
  %v1628 = vrsqrt.pop %v1627
  %v1629 = vmul.f32 %v1622, %v1628
  %v1630 = vlaneseq
  %v1631 = vshrl.u32 %v1630, 7
  %v1632 = vsub.s32 1, %v1631
  %v1633 = vrot.slane %v24, %v1632
  %v1634 = vmul.f32 %v1629, %v1633
  %v1635 = vlaneseq
  %v1636 = vshrl.u32 %v1635, 7
  %v1637 = vsub.s32 2, %v1636
  %v1638 = vrot.slane %v24, %v1637
  %v1639 = vadd.f32 %v1634, %v1638
  %v1640 = vtanh.pop %v1639
  %v1641 = vld [vmem:[%s4] sm:$0xff]
  %v1642 = vld [vmem:[%s4 + $0x8] sm:$0xff]
  %v1643 = vld [vmem:[%s4 + $0x10] sm:$0xff]
  %v1644 = vld [vmem:[%s4 + $0x18] sm:$0xff]
  %v1645 = vld [vmem:[%s4 + $0x20] sm:$0xff]
  %v1646 = vld [vmem:[%s4 + $0x28] sm:$0xff]
  %v1647 = vld [vmem:[%s4 + $0x30] sm:$0xff]
  %v1648 = vld [vmem:[%s4 + $0x38] sm:$0xff]
  %v1649 = vld [vmem:[%s4 + $0x40] sm:$0xff]
  %v1650 = vld [vmem:[%s4 + $0x48] sm:$0xff]
  %v1651 = vld [vmem:[%s4 + $0x50] sm:$0xff]
  %v1652 = vld [vmem:[%s4 + $0x58] sm:$0xff]
  %v1653 = vld [vmem:[%s4 + $0x60] sm:$0xff]
  %v1654 = vld [vmem:[%s4 + $0x68] sm:$0xff]
  %v1655 = vld [vmem:[%s4 + $0x70] sm:$0xff]
  %v1656 = vld [vmem:[%s4 + $0x78] sm:$0xff]
  %v1657 = vlaneseq
  %v1658 = vshrl.u32 %v1657, 7
  %v1659 = vsub.s32 3, %v1658
  %v1660 = vrot.slane %v24, %v1659
  %1661 = vmatprep.subr.mxu0 0.0
  %1662 = vmatpush1.msra.mxu0 %v1641
  %1663 = vmatprep.subr.mxu0 0.0
  %1664 = vmatpush1.msra.mxu0 %v1642
  %1665 = vmatprep.subr.mxu0 0.0
  %1666 = vmatpush1.msra.mxu0 %v1643
  %1667 = vmatprep.subr.mxu0 0.0
  %1668 = vmatpush1.msra.mxu0 %v1644
  %1669 = vmatprep.subr.mxu0 0.0
  %1670 = vmatpush1.msra.mxu0 %v1645
  %1671 = vmatprep.subr.mxu0 0.0
  %1672 = vmatpush1.msra.mxu0 %v1646
  %1673 = vmatprep.subr.mxu0 0.0
  %1674 = vmatpush1.msra.mxu0 %v1647
  %1675 = vmatprep.subr.mxu0 0.0
  %1676 = vmatpush1.msra.mxu0 %v1648
  %1677 = vmatprep.subr.mxu0 0.0
  %1678 = vmatpush1.msra.mxu0 %v1649
  %1679 = vmatprep.subr.mxu0 0.0
  %1680 = vmatpush1.msra.mxu0 %v1650
  %1681 = vmatprep.subr.mxu0 0.0
  %1682 = vmatpush1.msra.mxu0 %v1651
  %1683 = vmatprep.subr.mxu0 0.0
  %1684 = vmatpush1.msra.mxu0 %v1652
  %1685 = vmatprep.subr.mxu0 0.0
  %1686 = vmatpush1.msra.mxu0 %v1653
  %1687 = vmatprep.subr.mxu0 0.0
  %1688 = vmatpush1.msra.mxu0 %v1654
  %1689 = vmatprep.subr.mxu0 0.0
  %1690 = vmatpush1.msra.mxu0 %v1655
  %1691 = vmatprep.subr.mxu0 0.0
  %1692 = vmatpush1.msra.mxu0 %v1656
  %1693 = vmatprep.subr.mxu0 0.0
  %1694 = vmatpush1.msra.mxu0 0.0
  %1695 = vmatprep.subr.mxu0 0.0
  %1696 = vmatpush1.msra.mxu0 0.0
  %1697 = vmatprep.subr.mxu0 0.0
  %1698 = vmatpush1.msra.mxu0 0.0
  %1699 = vmatprep.subr.mxu0 0.0
  %1700 = vmatpush1.msra.mxu0 0.0
  %1701 = vmatprep.subr.mxu0 0.0
  %1702 = vmatpush1.msra.mxu0 0.0
  %1703 = vmatprep.subr.mxu0 0.0
  %1704 = vmatpush1.msra.mxu0 0.0
  %1705 = vmatprep.subr.mxu0 0.0
  %1706 = vmatpush1.msra.mxu0 0.0
  %1707 = vmatprep.subr.mxu0 0.0
  %1708 = vmatpush1.msra.mxu0 0.0
  %1709 = vmatprep.subr.mxu0 0.0
  %1710 = vmatpush1.msra.mxu0 0.0
  %1711 = vmatprep.subr.mxu0 0.0
  %1712 = vmatpush1.msra.mxu0 0.0
  %1713 = vmatprep.subr.mxu0 0.0
  %1714 = vmatpush1.msra.mxu0 0.0
  %1715 = vmatprep.subr.mxu0 0.0
  %1716 = vmatpush1.msra.mxu0 0.0
  %1717 = vmatprep.subr.mxu0 0.0
  %1718 = vmatpush1.msra.mxu0 0.0
  %1719 = vmatprep.subr.mxu0 0.0
  %1720 = vmatpush1.msra.mxu0 0.0
  %1721 = vmatprep.subr.mxu0 0.0
  %1722 = vmatpush1.msra.mxu0 0.0
  %1723 = vmatprep.subr.mxu0 0.0
  %1724 = vmatpush1.msra.mxu0 0.0
  %1725 = vmatprep.mubr.f32.mxu0 0.0
  %1726 = vmatmul.mubr.f32.gmra.mrb[0].mxu0 %v1640
  %v1727 = vpop.f32.mrb[0].mxu0
  %v1728 = vadd.f32 %v1660, %v1727
  %v1729 = vpop.f32.mrb[0].mxu0
  %1730 = vdwg.mxu0
  %1731 = vadd.xlane.f32.xlu0 %v1728
  %v1732 = vpop.xlane.xlu0 %1731
  %v1733 = vmul.f32 %v1732, 0.0625
  %vm1734 = vcmp.lt.s32.totalorder %v1619, 16
  %v1735 = vsub.f32 %v1728, %v1733
  %v1736 = vsel %vm1734, %v1735, 0.0
  %v1737 = vmul.f32 %v1736, %v1736
  %1738 = vadd.xlane.f32.xlu0 %v1737
  %v1739 = vpop.xlane.xlu0 %1738
  %v1740 = vmul.f32 %v1739, 0.0625
  %v1741 = vadd.f32 %v1740, 1e-05
  %v1742 = vrsqrt.pop %v1741
  %v1743 = vmul.f32 %v1736, %v1742
  %v1744 = vlaneseq
  %v1745 = vshrl.u32 %v1744, 7
  %v1746 = vsub.s32 4, %v1745
  %v1747 = vrot.slane %v24, %v1746
  %v1748 = vmul.f32 %v1743, %v1747
  %v1749 = vlaneseq
  %v1750 = vshrl.u32 %v1749, 7
  %v1751 = vsub.s32 5, %v1750
  %v1752 = vrot.slane %v24, %v1751
  %v1753 = vadd.f32 %v1748, %v1752
  %v1754 = vtanh.pop %v1753
  %v1755 = vld [vmem:[%s1] sm:$0xff]
  %s1756 = scalar_lea.vmem %s4, 128
  %v1757 = vld [vmem:[%s1756] sm:$0xff]
  %v1758 = vld [vmem:[%s1756 + $0x8] sm:$0xff]
  %v1759 = vld [vmem:[%s1756 + $0x10] sm:$0xff]
  %v1760 = vld [vmem:[%s1756 + $0x18] sm:$0xff]
  %v1761 = vld [vmem:[%s1756 + $0x20] sm:$0xff]
  %v1762 = vld [vmem:[%s1756 + $0x28] sm:$0xff]
  %v1763 = vld [vmem:[%s1756 + $0x30] sm:$0xff]
  %v1764 = vld [vmem:[%s1756 + $0x38] sm:$0xff]
  %v1765 = vld [vmem:[%s1756 + $0x40] sm:$0xff]
  %v1766 = vld [vmem:[%s1756 + $0x48] sm:$0xff]
  %v1767 = vld [vmem:[%s1756 + $0x50] sm:$0xff]
  %v1768 = vld [vmem:[%s1756 + $0x58] sm:$0xff]
  %v1769 = vld [vmem:[%s1756 + $0x60] sm:$0xff]
  %v1770 = vld [vmem:[%s1756 + $0x68] sm:$0xff]
  %v1771 = vld [vmem:[%s1756 + $0x70] sm:$0xff]
  %v1772 = vld [vmem:[%s1756 + $0x78] sm:$0xff]
  %v1773 = vlaneseq
  %v1774 = vshrl.u32 %v1773, 7
  %v1775 = vsub.s32 6, %v1774
  %v1776 = vrot.slane %v24, %v1775
  %1777 = vmatprep.subr.mxu0 0.0
  %1778 = vmatpush1.msra.mxu0 %v1757
  %1779 = vmatprep.subr.mxu0 0.0
  %1780 = vmatpush1.msra.mxu0 %v1758
  %1781 = vmatprep.subr.mxu0 0.0
  %1782 = vmatpush1.msra.mxu0 %v1759
  %1783 = vmatprep.subr.mxu0 0.0
  %1784 = vmatpush1.msra.mxu0 %v1760
  %1785 = vmatprep.subr.mxu0 0.0
  %1786 = vmatpush1.msra.mxu0 %v1761
  %1787 = vmatprep.subr.mxu0 0.0
  %1788 = vmatpush1.msra.mxu0 %v1762
  %1789 = vmatprep.subr.mxu0 0.0
  %1790 = vmatpush1.msra.mxu0 %v1763
  %1791 = vmatprep.subr.mxu0 0.0
  %1792 = vmatpush1.msra.mxu0 %v1764
  %1793 = vmatprep.subr.mxu0 0.0
  %1794 = vmatpush1.msra.mxu0 %v1765
  %1795 = vmatprep.subr.mxu0 0.0
  %1796 = vmatpush1.msra.mxu0 %v1766
  %1797 = vmatprep.subr.mxu0 0.0
  %1798 = vmatpush1.msra.mxu0 %v1767
  %1799 = vmatprep.subr.mxu0 0.0
  %1800 = vmatpush1.msra.mxu0 %v1768
  %1801 = vmatprep.subr.mxu0 0.0
  %1802 = vmatpush1.msra.mxu0 %v1769
  %1803 = vmatprep.subr.mxu0 0.0
  %1804 = vmatpush1.msra.mxu0 %v1770
  %1805 = vmatprep.subr.mxu0 0.0
  %1806 = vmatpush1.msra.mxu0 %v1771
  %1807 = vmatprep.subr.mxu0 0.0
  %1808 = vmatpush1.msra.mxu0 %v1772
  %1809 = vmatprep.subr.mxu0 0.0
  %1810 = vmatpush1.msra.mxu0 0.0
  %1811 = vmatprep.subr.mxu0 0.0
  %1812 = vmatpush1.msra.mxu0 0.0
  %1813 = vmatprep.subr.mxu0 0.0
  %1814 = vmatpush1.msra.mxu0 0.0
  %1815 = vmatprep.subr.mxu0 0.0
  %1816 = vmatpush1.msra.mxu0 0.0
  %1817 = vmatprep.subr.mxu0 0.0
  %1818 = vmatpush1.msra.mxu0 0.0
  %1819 = vmatprep.subr.mxu0 0.0
  %1820 = vmatpush1.msra.mxu0 0.0
  %1821 = vmatprep.subr.mxu0 0.0
  %1822 = vmatpush1.msra.mxu0 0.0
  %1823 = vmatprep.subr.mxu0 0.0
  %1824 = vmatpush1.msra.mxu0 0.0
  %1825 = vmatprep.subr.mxu0 0.0
  %1826 = vmatpush1.msra.mxu0 0.0
  %1827 = vmatprep.subr.mxu0 0.0
  %1828 = vmatpush1.msra.mxu0 0.0
  %1829 = vmatprep.subr.mxu0 0.0
  %1830 = vmatpush1.msra.mxu0 0.0
  %1831 = vmatprep.subr.mxu0 0.0
  %1832 = vmatpush1.msra.mxu0 0.0
  %1833 = vmatprep.subr.mxu0 0.0
  %1834 = vmatpush1.msra.mxu0 0.0
  %1835 = vmatprep.subr.mxu0 0.0
  %1836 = vmatpush1.msra.mxu0 0.0
  %1837 = vmatprep.subr.mxu0 0.0
  %1838 = vmatpush1.msra.mxu0 0.0
  %1839 = vmatprep.subr.mxu0 0.0
  %1840 = vmatpush1.msra.mxu0 0.0
  %1841 = vmatprep.mubr.f32.mxu0 0.0
  %1842 = vmatmul.mubr.f32.gmra.mrb[0].mxu0 %v1755
  %v1843 = vpop.f32.mrb[0].mxu0
  %v1844 = vadd.f32 %v1776, %v1843
  %v1845 = vpop.f32.mrb[0].mxu0
  %1846 = vdwg.mxu0
  %1847 = vadd.xlane.f32.xlu0 %v1844
  %v1848 = vpop.xlane.xlu0 %1847
  %v1849 = vmul.f32 %v1848, 0.125
  %vm1850 = vcmp.lt.s32.totalorder %v1619, 8
  %v1851 = vsub.f32 %v1844, %v1849
  %v1852 = vsel %vm1850, %v1851, 0.0
  %v1853 = vmul.f32 %v1852, %v1852
  %1854 = vadd.xlane.f32.xlu0 %v1853
  %v1855 = vpop.xlane.xlu0 %1854
  %v1856 = vmul.f32 %v1855, 0.125
  %v1857 = vadd.f32 %v1856, 1e-05
  %v1858 = vrsqrt.pop %v1857
  %v1859 = vmul.f32 %v1852, %v1858
  %v1860 = vlaneseq
  %v1861 = vshrl.u32 %v1860, 7
  %v1862 = vsub.s32 7, %v1861
  %v1863 = vrot.slane %v24, %v1862
  %v1864 = vmul.f32 %v1859, %v1863
  %v1865 = vlaneseq
  %v1866 = vshrl.u32 %v1865, 7
  %v1867 = vsub.s32 0, %v1866
  %v1868 = vrot.slane %v25, %v1867
  %v1869 = vadd.f32 %v1864, %v1868
  %v1870 = vtanh.pop %v1869
  %s1871 = scalar_lea.vmem %s4, 256
  %v1872 = vld [vmem:[%s1871] sm:$0xff]
  %v1873 = vld [vmem:[%s1871 + $0x8] sm:$0xff]
  %v1874 = vld [vmem:[%s1871 + $0x10] sm:$0xff]
  %v1875 = vld [vmem:[%s1871 + $0x18] sm:$0xff]
  %v1876 = vld [vmem:[%s1871 + $0x20] sm:$0xff]
  %v1877 = vld [vmem:[%s1871 + $0x28] sm:$0xff]
  %v1878 = vld [vmem:[%s1871 + $0x30] sm:$0xff]
  %v1879 = vld [vmem:[%s1871 + $0x38] sm:$0xff]
  %v1880 = vld [vmem:[%s1871 + $0x40] sm:$0xff]
  %v1881 = vld [vmem:[%s1871 + $0x48] sm:$0xff]
  %v1882 = vld [vmem:[%s1871 + $0x50] sm:$0xff]
  %v1883 = vld [vmem:[%s1871 + $0x58] sm:$0xff]
  %v1884 = vld [vmem:[%s1871 + $0x60] sm:$0xff]
  %v1885 = vld [vmem:[%s1871 + $0x68] sm:$0xff]
  %v1886 = vld [vmem:[%s1871 + $0x70] sm:$0xff]
  %v1887 = vld [vmem:[%s1871 + $0x78] sm:$0xff]
  %v1888 = vlaneseq
  %v1889 = vshrl.u32 %v1888, 7
  %v1890 = vsub.s32 1, %v1889
  %v1891 = vrot.slane %v25, %v1890
  %1892 = vmatprep.subr.mxu0 0.0
  %1893 = vmatpush1.msra.mxu0 %v1872
  %1894 = vmatprep.subr.mxu0 0.0
  %1895 = vmatpush1.msra.mxu0 %v1873
  %1896 = vmatprep.subr.mxu0 0.0
  %1897 = vmatpush1.msra.mxu0 %v1874
  %1898 = vmatprep.subr.mxu0 0.0
  %1899 = vmatpush1.msra.mxu0 %v1875
  %1900 = vmatprep.subr.mxu0 0.0
  %1901 = vmatpush1.msra.mxu0 %v1876
  %1902 = vmatprep.subr.mxu0 0.0
  %1903 = vmatpush1.msra.mxu0 %v1877
  %1904 = vmatprep.subr.mxu0 0.0
  %1905 = vmatpush1.msra.mxu0 %v1878
  %1906 = vmatprep.subr.mxu0 0.0
  %1907 = vmatpush1.msra.mxu0 %v1879
  %1908 = vmatprep.subr.mxu0 0.0
  %1909 = vmatpush1.msra.mxu0 %v1880
  %1910 = vmatprep.subr.mxu0 0.0
  %1911 = vmatpush1.msra.mxu0 %v1881
  %1912 = vmatprep.subr.mxu0 0.0
  %1913 = vmatpush1.msra.mxu0 %v1882
  %1914 = vmatprep.subr.mxu0 0.0
  %1915 = vmatpush1.msra.mxu0 %v1883
  %1916 = vmatprep.subr.mxu0 0.0
  %1917 = vmatpush1.msra.mxu0 %v1884
  %1918 = vmatprep.subr.mxu0 0.0
  %1919 = vmatpush1.msra.mxu0 %v1885
  %1920 = vmatprep.subr.mxu0 0.0
  %1921 = vmatpush1.msra.mxu0 %v1886
  %1922 = vmatprep.subr.mxu0 0.0
  %1923 = vmatpush1.msra.mxu0 %v1887
  %1924 = vmatprep.subr.mxu0 0.0
  %1925 = vmatpush1.msra.mxu0 0.0
  %1926 = vmatprep.subr.mxu0 0.0
  %1927 = vmatpush1.msra.mxu0 0.0
  %1928 = vmatprep.subr.mxu0 0.0
  %1929 = vmatpush1.msra.mxu0 0.0
  %1930 = vmatprep.subr.mxu0 0.0
  %1931 = vmatpush1.msra.mxu0 0.0
  %1932 = vmatprep.subr.mxu0 0.0
  %1933 = vmatpush1.msra.mxu0 0.0
  %1934 = vmatprep.subr.mxu0 0.0
  %1935 = vmatpush1.msra.mxu0 0.0
  %1936 = vmatprep.subr.mxu0 0.0
  %1937 = vmatpush1.msra.mxu0 0.0
  %1938 = vmatprep.subr.mxu0 0.0
  %1939 = vmatpush1.msra.mxu0 0.0
  %1940 = vmatprep.subr.mxu0 0.0
  %1941 = vmatpush1.msra.mxu0 0.0
  %1942 = vmatprep.subr.mxu0 0.0
  %1943 = vmatpush1.msra.mxu0 0.0
  %1944 = vmatprep.subr.mxu0 0.0
  %1945 = vmatpush1.msra.mxu0 0.0
  %1946 = vmatprep.subr.mxu0 0.0
  %1947 = vmatpush1.msra.mxu0 0.0
  %1948 = vmatprep.subr.mxu0 0.0
  %1949 = vmatpush1.msra.mxu0 0.0
  %1950 = vmatprep.subr.mxu0 0.0
  %1951 = vmatpush1.msra.mxu0 0.0
  %1952 = vmatprep.subr.mxu0 0.0
  %1953 = vmatpush1.msra.mxu0 0.0
  %1954 = vmatprep.subr.mxu0 0.0
  %1955 = vmatpush1.msra.mxu0 0.0
  %1956 = vmatprep.mubr.f32.mxu0 0.0
  %1957 = vmatmul.mubr.f32.gmra.mrb[0].mxu0 %v1870
  %v1958 = vpop.f32.mrb[0].mxu0
  %v1959 = vadd.f32 %v1891, %v1958
  %v1960 = vpop.f32.mrb[0].mxu0
  %1961 = vdwg.mxu0
  %v1962 = vtanh.pop %v1959
  %v1963 = vld [vmem:[%s2] sm:$0xff]
  %s1964 = scalar_lea.vmem %s4, 384
  %v1965 = vld [vmem:[%s1964] sm:$0xff]
  %v1966 = vld [vmem:[%s1964 + $0x8] sm:$0xff]
  %v1967 = vld [vmem:[%s1964 + $0x10] sm:$0xff]
  %v1968 = vld [vmem:[%s1964 + $0x18] sm:$0xff]
  %v1969 = vld [vmem:[%s1964 + $0x20] sm:$0xff]
  %v1970 = vld [vmem:[%s1964 + $0x28] sm:$0xff]
  %v1971 = vld [vmem:[%s1964 + $0x30] sm:$0xff]
  %v1972 = vld [vmem:[%s1964 + $0x38] sm:$0xff]
  %v1973 = vld [vmem:[%s1964 + $0x40] sm:$0xff]
  %v1974 = vld [vmem:[%s1964 + $0x48] sm:$0xff]
  %v1975 = vld [vmem:[%s1964 + $0x50] sm:$0xff]
  %v1976 = vld [vmem:[%s1964 + $0x58] sm:$0xff]
  %v1977 = vld [vmem:[%s1964 + $0x60] sm:$0xff]
  %v1978 = vld [vmem:[%s1964 + $0x68] sm:$0xff]
  %v1979 = vld [vmem:[%s1964 + $0x70] sm:$0xff]
  %v1980 = vld [vmem:[%s1964 + $0x78] sm:$0xff]
  %v1981 = vlaneseq
  %v1982 = vshrl.u32 %v1981, 7
  %v1983 = vsub.s32 2, %v1982
  %v1984 = vrot.slane %v25, %v1983
  %1985 = vmatprep.subr.mxu0 0.0
  %1986 = vmatpush1.msra.mxu0 %v1965
  %1987 = vmatprep.subr.mxu0 0.0
  %1988 = vmatpush1.msra.mxu0 %v1966
  %1989 = vmatprep.subr.mxu0 0.0
  %1990 = vmatpush1.msra.mxu0 %v1967
  %1991 = vmatprep.subr.mxu0 0.0
  %1992 = vmatpush1.msra.mxu0 %v1968
  %1993 = vmatprep.subr.mxu0 0.0
  %1994 = vmatpush1.msra.mxu0 %v1969
  %1995 = vmatprep.subr.mxu0 0.0
  %1996 = vmatpush1.msra.mxu0 %v1970
  %1997 = vmatprep.subr.mxu0 0.0
  %1998 = vmatpush1.msra.mxu0 %v1971
  %1999 = vmatprep.subr.mxu0 0.0
  %2000 = vmatpush1.msra.mxu0 %v1972
  %2001 = vmatprep.subr.mxu0 0.0
  %2002 = vmatpush1.msra.mxu0 %v1973
  %2003 = vmatprep.subr.mxu0 0.0
  %2004 = vmatpush1.msra.mxu0 %v1974
  %2005 = vmatprep.subr.mxu0 0.0
  %2006 = vmatpush1.msra.mxu0 %v1975
  %2007 = vmatprep.subr.mxu0 0.0
  %2008 = vmatpush1.msra.mxu0 %v1976
  %2009 = vmatprep.subr.mxu0 0.0
  %2010 = vmatpush1.msra.mxu0 %v1977
  %2011 = vmatprep.subr.mxu0 0.0
  %2012 = vmatpush1.msra.mxu0 %v1978
  %2013 = vmatprep.subr.mxu0 0.0
  %2014 = vmatpush1.msra.mxu0 %v1979
  %2015 = vmatprep.subr.mxu0 0.0
  %2016 = vmatpush1.msra.mxu0 %v1980
  %2017 = vmatprep.subr.mxu0 0.0
  %2018 = vmatpush1.msra.mxu0 0.0
  %2019 = vmatprep.subr.mxu0 0.0
  %2020 = vmatpush1.msra.mxu0 0.0
  %2021 = vmatprep.subr.mxu0 0.0
  %2022 = vmatpush1.msra.mxu0 0.0
  %2023 = vmatprep.subr.mxu0 0.0
  %2024 = vmatpush1.msra.mxu0 0.0
  %2025 = vmatprep.subr.mxu0 0.0
  %2026 = vmatpush1.msra.mxu0 0.0
  %2027 = vmatprep.subr.mxu0 0.0
  %2028 = vmatpush1.msra.mxu0 0.0
  %2029 = vmatprep.subr.mxu0 0.0
  %2030 = vmatpush1.msra.mxu0 0.0
  %2031 = vmatprep.subr.mxu0 0.0
  %2032 = vmatpush1.msra.mxu0 0.0
  %2033 = vmatprep.subr.mxu0 0.0
  %2034 = vmatpush1.msra.mxu0 0.0
  %2035 = vmatprep.subr.mxu0 0.0
  %2036 = vmatpush1.msra.mxu0 0.0
  %2037 = vmatprep.subr.mxu0 0.0
  %2038 = vmatpush1.msra.mxu0 0.0
  %2039 = vmatprep.subr.mxu0 0.0
  %2040 = vmatpush1.msra.mxu0 0.0
  %2041 = vmatprep.subr.mxu0 0.0
  %2042 = vmatpush1.msra.mxu0 0.0
  %2043 = vmatprep.subr.mxu0 0.0
  %2044 = vmatpush1.msra.mxu0 0.0
  %2045 = vmatprep.subr.mxu0 0.0
  %2046 = vmatpush1.msra.mxu0 0.0
  %2047 = vmatprep.subr.mxu0 0.0
  %2048 = vmatpush1.msra.mxu0 0.0
  %2049 = vmatprep.mubr.f32.mxu0 0.0
  %2050 = vmatmul.mubr.f32.gmra.mrb[0].mxu0 %v1963
  %v2051 = vpop.f32.mrb[0].mxu0
  %v2052 = vadd.f32 %v1984, %v2051
  %v2053 = vpop.f32.mrb[0].mxu0
  %2054 = vdwg.mxu0
  %2055 = vadd.xlane.f32.xlu0 %v2052
  %v2056 = vpop.xlane.xlu0 %2055
  %v2057 = vmul.f32 %v2056, 0.125
  %v2058 = vsub.f32 %v2052, %v2057
  %v2059 = vsel %vm1850, %v2058, 0.0
  %v2060 = vmul.f32 %v2059, %v2059
  %2061 = vadd.xlane.f32.xlu0 %v2060
  %v2062 = vpop.xlane.xlu0 %2061
  %v2063 = vmul.f32 %v2062, 0.125
  %v2064 = vadd.f32 %v2063, 1e-05
  %v2065 = vrsqrt.pop %v2064
  %v2066 = vmul.f32 %v2059, %v2065
  %v2067 = vlaneseq
  %v2068 = vshrl.u32 %v2067, 7
  %v2069 = vsub.s32 3, %v2068
  %v2070 = vrot.slane %v25, %v2069
  %v2071 = vmul.f32 %v2066, %v2070
  %v2072 = vlaneseq
  %v2073 = vshrl.u32 %v2072, 7
  %v2074 = vsub.s32 4, %v2073
  %v2075 = vrot.slane %v25, %v2074
  %v2076 = vadd.f32 %v2071, %v2075
  %v2077 = vtanh.pop %v2076
  %s2078 = scalar_lea.vmem %s4, 512
  %v2079 = vld [vmem:[%s2078] sm:$0xff]
  %v2080 = vld [vmem:[%s2078 + $0x8] sm:$0xff]
  %v2081 = vld [vmem:[%s2078 + $0x10] sm:$0xff]
  %v2082 = vld [vmem:[%s2078 + $0x18] sm:$0xff]
  %v2083 = vld [vmem:[%s2078 + $0x20] sm:$0xff]
  %v2084 = vld [vmem:[%s2078 + $0x28] sm:$0xff]
  %v2085 = vld [vmem:[%s2078 + $0x30] sm:$0xff]
  %v2086 = vld [vmem:[%s2078 + $0x38] sm:$0xff]
  %v2087 = vld [vmem:[%s2078 + $0x40] sm:$0xff]
  %v2088 = vld [vmem:[%s2078 + $0x48] sm:$0xff]
  %v2089 = vld [vmem:[%s2078 + $0x50] sm:$0xff]
  %v2090 = vld [vmem:[%s2078 + $0x58] sm:$0xff]
  %v2091 = vld [vmem:[%s2078 + $0x60] sm:$0xff]
  %v2092 = vld [vmem:[%s2078 + $0x68] sm:$0xff]
  %v2093 = vld [vmem:[%s2078 + $0x70] sm:$0xff]
  %v2094 = vld [vmem:[%s2078 + $0x78] sm:$0xff]
  %v2095 = vlaneseq
  %v2096 = vshrl.u32 %v2095, 7
  %v2097 = vsub.s32 5, %v2096
  %v2098 = vrot.slane %v25, %v2097
  %2099 = vmatprep.subr.mxu0 0.0
  %2100 = vmatpush1.msra.mxu0 %v2079
  %2101 = vmatprep.subr.mxu0 0.0
  %2102 = vmatpush1.msra.mxu0 %v2080
  %2103 = vmatprep.subr.mxu0 0.0
  %2104 = vmatpush1.msra.mxu0 %v2081
  %2105 = vmatprep.subr.mxu0 0.0
  %2106 = vmatpush1.msra.mxu0 %v2082
  %2107 = vmatprep.subr.mxu0 0.0
  %2108 = vmatpush1.msra.mxu0 %v2083
  %2109 = vmatprep.subr.mxu0 0.0
  %2110 = vmatpush1.msra.mxu0 %v2084
  %2111 = vmatprep.subr.mxu0 0.0
  %2112 = vmatpush1.msra.mxu0 %v2085
  %2113 = vmatprep.subr.mxu0 0.0
  %2114 = vmatpush1.msra.mxu0 %v2086
  %2115 = vmatprep.subr.mxu0 0.0
  %2116 = vmatpush1.msra.mxu0 %v2087
  %2117 = vmatprep.subr.mxu0 0.0
  %2118 = vmatpush1.msra.mxu0 %v2088
  %2119 = vmatprep.subr.mxu0 0.0
  %2120 = vmatpush1.msra.mxu0 %v2089
  %2121 = vmatprep.subr.mxu0 0.0
  %2122 = vmatpush1.msra.mxu0 %v2090
  %2123 = vmatprep.subr.mxu0 0.0
  %2124 = vmatpush1.msra.mxu0 %v2091
  %2125 = vmatprep.subr.mxu0 0.0
  %2126 = vmatpush1.msra.mxu0 %v2092
  %2127 = vmatprep.subr.mxu0 0.0
  %2128 = vmatpush1.msra.mxu0 %v2093
  %2129 = vmatprep.subr.mxu0 0.0
  %2130 = vmatpush1.msra.mxu0 %v2094
  %2131 = vmatprep.subr.mxu0 0.0
  %2132 = vmatpush1.msra.mxu0 0.0
  %2133 = vmatprep.subr.mxu0 0.0
  %2134 = vmatpush1.msra.mxu0 0.0
  %2135 = vmatprep.subr.mxu0 0.0
  %2136 = vmatpush1.msra.mxu0 0.0
  %2137 = vmatprep.subr.mxu0 0.0
  %2138 = vmatpush1.msra.mxu0 0.0
  %2139 = vmatprep.subr.mxu0 0.0
  %2140 = vmatpush1.msra.mxu0 0.0
  %2141 = vmatprep.subr.mxu0 0.0
  %2142 = vmatpush1.msra.mxu0 0.0
  %2143 = vmatprep.subr.mxu0 0.0
  %2144 = vmatpush1.msra.mxu0 0.0
  %2145 = vmatprep.subr.mxu0 0.0
  %2146 = vmatpush1.msra.mxu0 0.0
  %2147 = vmatprep.subr.mxu0 0.0
  %2148 = vmatpush1.msra.mxu0 0.0
  %2149 = vmatprep.subr.mxu0 0.0
  %2150 = vmatpush1.msra.mxu0 0.0
  %2151 = vmatprep.subr.mxu0 0.0
  %2152 = vmatpush1.msra.mxu0 0.0
  %2153 = vmatprep.subr.mxu0 0.0
  %2154 = vmatpush1.msra.mxu0 0.0
  %2155 = vmatprep.subr.mxu0 0.0
  %2156 = vmatpush1.msra.mxu0 0.0
  %2157 = vmatprep.subr.mxu0 0.0
  %2158 = vmatpush1.msra.mxu0 0.0
  %2159 = vmatprep.subr.mxu0 0.0
  %2160 = vmatpush1.msra.mxu0 0.0
  %2161 = vmatprep.subr.mxu0 0.0
  %2162 = vmatpush1.msra.mxu0 0.0
  %2163 = vmatprep.mubr.f32.mxu0 0.0
  %2164 = vmatmul.mubr.f32.gmra.mrb[0].mxu0 %v2077
  %v2165 = vpop.f32.mrb[0].mxu0
  %v2166 = vadd.f32 %v2098, %v2165
  %v2167 = vpop.f32.mrb[0].mxu0
  %2168 = vdwg.mxu0
  %v2169 = vtanh.pop %v2166
  %s2170 = scalar_lea.vmem %s4, 640
  %v2171 = vld [vmem:[%s2170] sm:$0xff]
  %v2172 = vld [vmem:[%s2170 + $0x8] sm:$0xff]
  %v2173 = vld [vmem:[%s2170 + $0x10] sm:$0xff]
  %v2174 = vld [vmem:[%s2170 + $0x18] sm:$0xff]
  %v2175 = vld [vmem:[%s2170 + $0x20] sm:$0xff]
  %v2176 = vld [vmem:[%s2170 + $0x28] sm:$0xff]
  %v2177 = vld [vmem:[%s2170 + $0x30] sm:$0xff]
  %v2178 = vld [vmem:[%s2170 + $0x38] sm:$0xff]
  %v2179 = vld [vmem:[%s2170 + $0x40] sm:$0xff]
  %v2180 = vld [vmem:[%s2170 + $0x48] sm:$0xff]
  %v2181 = vld [vmem:[%s2170 + $0x50] sm:$0xff]
  %v2182 = vld [vmem:[%s2170 + $0x58] sm:$0xff]
  %v2183 = vld [vmem:[%s2170 + $0x60] sm:$0xff]
  %v2184 = vld [vmem:[%s2170 + $0x68] sm:$0xff]
  %v2185 = vld [vmem:[%s2170 + $0x70] sm:$0xff]
  %v2186 = vld [vmem:[%s2170 + $0x78] sm:$0xff]
  %s2187 = scalar_lea.vmem %s4, 768
  %v2188 = vld [vmem:[%s2187] sm:$0xff]
  %v2189 = vld [vmem:[%s2187 + $0x8] sm:$0xff]
  %v2190 = vld [vmem:[%s2187 + $0x10] sm:$0xff]
  %v2191 = vld [vmem:[%s2187 + $0x18] sm:$0xff]
  %v2192 = vld [vmem:[%s2187 + $0x20] sm:$0xff]
  %v2193 = vld [vmem:[%s2187 + $0x28] sm:$0xff]
  %v2194 = vld [vmem:[%s2187 + $0x30] sm:$0xff]
  %v2195 = vld [vmem:[%s2187 + $0x38] sm:$0xff]
  %v2196 = vld [vmem:[%s2187 + $0x40] sm:$0xff]
  %v2197 = vld [vmem:[%s2187 + $0x48] sm:$0xff]
  %v2198 = vld [vmem:[%s2187 + $0x50] sm:$0xff]
  %v2199 = vld [vmem:[%s2187 + $0x58] sm:$0xff]
  %v2200 = vld [vmem:[%s2187 + $0x60] sm:$0xff]
  %v2201 = vld [vmem:[%s2187 + $0x68] sm:$0xff]
  %v2202 = vld [vmem:[%s2187 + $0x70] sm:$0xff]
  %v2203 = vld [vmem:[%s2187 + $0x78] sm:$0xff]
  %2204 = vmatprep.subr.mxu0 0.0
  %2205 = vmatpush1.msra.mxu0 %v2188
  %2206 = vmatprep.subr.mxu0 0.0
  %2207 = vmatpush1.msra.mxu0 %v2189
  %2208 = vmatprep.subr.mxu0 0.0
  %2209 = vmatpush1.msra.mxu0 %v2190
  %2210 = vmatprep.subr.mxu0 0.0
  %2211 = vmatpush1.msra.mxu0 %v2191
  %2212 = vmatprep.subr.mxu0 0.0
  %2213 = vmatpush1.msra.mxu0 %v2192
  %2214 = vmatprep.subr.mxu0 0.0
  %2215 = vmatpush1.msra.mxu0 %v2193
  %2216 = vmatprep.subr.mxu0 0.0
  %2217 = vmatpush1.msra.mxu0 %v2194
  %2218 = vmatprep.subr.mxu0 0.0
  %2219 = vmatpush1.msra.mxu0 %v2195
  %2220 = vmatprep.subr.mxu0 0.0
  %2221 = vmatpush1.msra.mxu0 %v2196
  %2222 = vmatprep.subr.mxu0 0.0
  %2223 = vmatpush1.msra.mxu0 %v2197
  %2224 = vmatprep.subr.mxu0 0.0
  %2225 = vmatpush1.msra.mxu0 %v2198
  %2226 = vmatprep.subr.mxu0 0.0
  %2227 = vmatpush1.msra.mxu0 %v2199
  %2228 = vmatprep.subr.mxu0 0.0
  %2229 = vmatpush1.msra.mxu0 %v2200
  %2230 = vmatprep.subr.mxu0 0.0
  %2231 = vmatpush1.msra.mxu0 %v2201
  %2232 = vmatprep.subr.mxu0 0.0
  %2233 = vmatpush1.msra.mxu0 %v2202
  %2234 = vmatprep.subr.mxu0 0.0
  %2235 = vmatpush1.msra.mxu0 %v2203
  %2236 = vmatprep.subr.mxu0 0.0
  %2237 = vmatpush1.msra.mxu0 0.0
  %2238 = vmatprep.subr.mxu0 0.0
  %2239 = vmatpush1.msra.mxu0 0.0
  %2240 = vmatprep.subr.mxu0 0.0
  %2241 = vmatpush1.msra.mxu0 0.0
  %2242 = vmatprep.subr.mxu0 0.0
  %2243 = vmatpush1.msra.mxu0 0.0
  %2244 = vmatprep.subr.mxu0 0.0
  %2245 = vmatpush1.msra.mxu0 0.0
  %2246 = vmatprep.subr.mxu0 0.0
  %2247 = vmatpush1.msra.mxu0 0.0
  %2248 = vmatprep.subr.mxu0 0.0
  %2249 = vmatpush1.msra.mxu0 0.0
  %2250 = vmatprep.subr.mxu0 0.0
  %2251 = vmatpush1.msra.mxu0 0.0
  %2252 = vmatprep.subr.mxu0 0.0
  %2253 = vmatpush1.msra.mxu0 0.0
  %2254 = vmatprep.subr.mxu0 0.0
  %2255 = vmatpush1.msra.mxu0 0.0
  %2256 = vmatprep.subr.mxu0 0.0
  %2257 = vmatpush1.msra.mxu0 0.0
  %2258 = vmatprep.subr.mxu0 0.0
  %2259 = vmatpush1.msra.mxu0 0.0
  %2260 = vmatprep.subr.mxu0 0.0
  %2261 = vmatpush1.msra.mxu0 0.0
  %2262 = vmatprep.subr.mxu0 0.0
  %2263 = vmatpush1.msra.mxu0 0.0
  %2264 = vmatprep.subr.mxu0 0.0
  %2265 = vmatpush1.msra.mxu0 0.0
  %2266 = vmatprep.subr.mxu0 0.0
  %2267 = vmatpush1.msra.mxu0 0.0
  %2268 = vmatprep.mubr.f32.mxu0 0.0
  %2269 = vmatmul.mubr.f32.gmra.mrb[0].mxu0 %v2169
  %v2270 = vpop.f32.mrb[0].mxu0
  %v2271 = vadd.f32 0.0, %v2270
  %v2272 = vpop.f32.mrb[0].mxu0
  %2273 = vdwg.mxu0
  %2274 = vmatprep.subr.mxu0 0.0
  %2275 = vmatpush1.msra.mxu0 %v2171
  %2276 = vmatprep.subr.mxu0 0.0
  %2277 = vmatpush1.msra.mxu0 %v2172
  %2278 = vmatprep.subr.mxu0 0.0
  %2279 = vmatpush1.msra.mxu0 %v2173
  %2280 = vmatprep.subr.mxu0 0.0
  %2281 = vmatpush1.msra.mxu0 %v2174
  %2282 = vmatprep.subr.mxu0 0.0
  %2283 = vmatpush1.msra.mxu0 %v2175
  %2284 = vmatprep.subr.mxu0 0.0
  %2285 = vmatpush1.msra.mxu0 %v2176
  %2286 = vmatprep.subr.mxu0 0.0
  %2287 = vmatpush1.msra.mxu0 %v2177
  %2288 = vmatprep.subr.mxu0 0.0
  %2289 = vmatpush1.msra.mxu0 %v2178
  %2290 = vmatprep.subr.mxu0 0.0
  %2291 = vmatpush1.msra.mxu0 %v2179
  %2292 = vmatprep.subr.mxu0 0.0
  %2293 = vmatpush1.msra.mxu0 %v2180
  %2294 = vmatprep.subr.mxu0 0.0
  %2295 = vmatpush1.msra.mxu0 %v2181
  %2296 = vmatprep.subr.mxu0 0.0
  %2297 = vmatpush1.msra.mxu0 %v2182
  %2298 = vmatprep.subr.mxu0 0.0
  %2299 = vmatpush1.msra.mxu0 %v2183
  %2300 = vmatprep.subr.mxu0 0.0
  %2301 = vmatpush1.msra.mxu0 %v2184
  %2302 = vmatprep.subr.mxu0 0.0
  %2303 = vmatpush1.msra.mxu0 %v2185
  %2304 = vmatprep.subr.mxu0 0.0
  %2305 = vmatpush1.msra.mxu0 %v2186
  %2306 = vmatprep.subr.mxu0 0.0
  %2307 = vmatpush1.msra.mxu0 0.0
  %2308 = vmatprep.subr.mxu0 0.0
  %2309 = vmatpush1.msra.mxu0 0.0
  %2310 = vmatprep.subr.mxu0 0.0
  %2311 = vmatpush1.msra.mxu0 0.0
  %2312 = vmatprep.subr.mxu0 0.0
  %2313 = vmatpush1.msra.mxu0 0.0
  %2314 = vmatprep.subr.mxu0 0.0
  %2315 = vmatpush1.msra.mxu0 0.0
  %2316 = vmatprep.subr.mxu0 0.0
  %2317 = vmatpush1.msra.mxu0 0.0
  %2318 = vmatprep.subr.mxu0 0.0
  %2319 = vmatpush1.msra.mxu0 0.0
  %2320 = vmatprep.subr.mxu0 0.0
  %2321 = vmatpush1.msra.mxu0 0.0
  %2322 = vmatprep.subr.mxu0 0.0
  %2323 = vmatpush1.msra.mxu0 0.0
  %2324 = vmatprep.subr.mxu0 0.0
  %2325 = vmatpush1.msra.mxu0 0.0
  %2326 = vmatprep.subr.mxu0 0.0
  %2327 = vmatpush1.msra.mxu0 0.0
  %2328 = vmatprep.subr.mxu0 0.0
  %2329 = vmatpush1.msra.mxu0 0.0
  %2330 = vmatprep.subr.mxu0 0.0
  %2331 = vmatpush1.msra.mxu0 0.0
  %2332 = vmatprep.subr.mxu0 0.0
  %2333 = vmatpush1.msra.mxu0 0.0
  %2334 = vmatprep.subr.mxu0 0.0
  %2335 = vmatpush1.msra.mxu0 0.0
  %2336 = vmatprep.subr.mxu0 0.0
  %2337 = vmatpush1.msra.mxu0 0.0
  %2338 = vmatprep.mubr.f32.mxu0 0.0
  %2339 = vmatmul.mubr.f32.gmra.mrb[0].mxu0 %v1962
  %v2340 = vpop.f32.mrb[0].mxu0
  %v2341 = vadd.f32 %v2271, %v2340
  %v2342 = vpop.f32.mrb[0].mxu0
  %2343 = vdwg.mxu0
  %s2344 = scalar_lea.vmem %s4, 896
  %v2345 = vld [vmem:[%s2344] sm:$0xff]
  %v2346 = vld [vmem:[%s2344 + $0x8] sm:$0xff]
  %v2347 = vld [vmem:[%s2344 + $0x10] sm:$0xff]
  %v2348 = vld [vmem:[%s2344 + $0x18] sm:$0xff]
  %v2349 = vld [vmem:[%s2344 + $0x20] sm:$0xff]
  %v2350 = vld [vmem:[%s2344 + $0x28] sm:$0xff]
  %v2351 = vld [vmem:[%s2344 + $0x30] sm:$0xff]
  %v2352 = vld [vmem:[%s2344 + $0x38] sm:$0xff]
  %v2353 = vld [vmem:[%s2344 + $0x40] sm:$0xff]
  %v2354 = vld [vmem:[%s2344 + $0x48] sm:$0xff]
  %v2355 = vld [vmem:[%s2344 + $0x50] sm:$0xff]
  %v2356 = vld [vmem:[%s2344 + $0x58] sm:$0xff]
  %v2357 = vld [vmem:[%s2344 + $0x60] sm:$0xff]
  %v2358 = vld [vmem:[%s2344 + $0x68] sm:$0xff]
  %v2359 = vld [vmem:[%s2344 + $0x70] sm:$0xff]
  %v2360 = vld [vmem:[%s2344 + $0x78] sm:$0xff]
  %2361 = vmatprep.subr.mxu0 0.0
  %2362 = vmatpush1.msra.mxu0 %v2345
  %2363 = vmatprep.subr.mxu0 0.0
  %2364 = vmatpush1.msra.mxu0 %v2346
  %2365 = vmatprep.subr.mxu0 0.0
  %2366 = vmatpush1.msra.mxu0 %v2347
  %2367 = vmatprep.subr.mxu0 0.0
  %2368 = vmatpush1.msra.mxu0 %v2348
  %2369 = vmatprep.subr.mxu0 0.0
  %2370 = vmatpush1.msra.mxu0 %v2349
  %2371 = vmatprep.subr.mxu0 0.0
  %2372 = vmatpush1.msra.mxu0 %v2350
  %2373 = vmatprep.subr.mxu0 0.0
  %2374 = vmatpush1.msra.mxu0 %v2351
  %2375 = vmatprep.subr.mxu0 0.0
  %2376 = vmatpush1.msra.mxu0 %v2352
  %2377 = vmatprep.subr.mxu0 0.0
  %2378 = vmatpush1.msra.mxu0 %v2353
  %2379 = vmatprep.subr.mxu0 0.0
  %2380 = vmatpush1.msra.mxu0 %v2354
  %2381 = vmatprep.subr.mxu0 0.0
  %2382 = vmatpush1.msra.mxu0 %v2355
  %2383 = vmatprep.subr.mxu0 0.0
  %2384 = vmatpush1.msra.mxu0 %v2356
  %2385 = vmatprep.subr.mxu0 0.0
  %2386 = vmatpush1.msra.mxu0 %v2357
  %2387 = vmatprep.subr.mxu0 0.0
  %2388 = vmatpush1.msra.mxu0 %v2358
  %2389 = vmatprep.subr.mxu0 0.0
  %2390 = vmatpush1.msra.mxu0 %v2359
  %2391 = vmatprep.subr.mxu0 0.0
  %2392 = vmatpush1.msra.mxu0 %v2360
  %2393 = vmatprep.subr.mxu0 0.0
  %2394 = vmatpush1.msra.mxu0 0.0
  %2395 = vmatprep.subr.mxu0 0.0
  %2396 = vmatpush1.msra.mxu0 0.0
  %2397 = vmatprep.subr.mxu0 0.0
  %2398 = vmatpush1.msra.mxu0 0.0
  %2399 = vmatprep.subr.mxu0 0.0
  %2400 = vmatpush1.msra.mxu0 0.0
  %2401 = vmatprep.subr.mxu0 0.0
  %2402 = vmatpush1.msra.mxu0 0.0
  %2403 = vmatprep.subr.mxu0 0.0
  %2404 = vmatpush1.msra.mxu0 0.0
  %2405 = vmatprep.subr.mxu0 0.0
  %2406 = vmatpush1.msra.mxu0 0.0
  %2407 = vmatprep.subr.mxu0 0.0
  %2408 = vmatpush1.msra.mxu0 0.0
  %2409 = vmatprep.subr.mxu0 0.0
  %2410 = vmatpush1.msra.mxu0 0.0
  %2411 = vmatprep.subr.mxu0 0.0
  %2412 = vmatpush1.msra.mxu0 0.0
  %2413 = vmatprep.subr.mxu0 0.0
  %2414 = vmatpush1.msra.mxu0 0.0
  %2415 = vmatprep.subr.mxu0 0.0
  %2416 = vmatpush1.msra.mxu0 0.0
  %2417 = vmatprep.subr.mxu0 0.0
  %2418 = vmatpush1.msra.mxu0 0.0
  %2419 = vmatprep.subr.mxu0 0.0
  %2420 = vmatpush1.msra.mxu0 0.0
  %2421 = vmatprep.subr.mxu0 0.0
  %2422 = vmatpush1.msra.mxu0 0.0
  %2423 = vmatprep.subr.mxu0 0.0
  %2424 = vmatpush1.msra.mxu0 0.0
  %2425 = vmatprep.mubr.f32.mxu0 0.0
  %2426 = vmatmul.mubr.f32.gmra.mrb[0].mxu0 %v1754
  %v2427 = vpop.f32.mrb[0].mxu0
  %v2428 = vadd.f32 0.0, %v2427
  %v2429 = vpop.f32.mrb[0].mxu0
  %2430 = vdwg.mxu0
  %v2431 = vadd.f32 %v2341, %v2428
  %v2432 = vlaneseq
  %v2433 = vshrl.u32 %v2432, 7
  %v2434 = vsub.s32 6, %v2433
  %v2435 = vrot.slane %v25, %v2434
  %v2436 = vadd.f32 %v2431, %v2435
  %2437 = vadd.xlane.f32.xlu0 %v2436
  %v2438 = vpop.xlane.xlu0 %2437
  %v2439 = vmul.f32 %v2438, 0.0625
  %v2440 = vsub.f32 %v2436, %v2439
  %v2441 = vsel %vm1734, %v2440, 0.0
  %v2442 = vmul.f32 %v2441, %v2441
  %2443 = vadd.xlane.f32.xlu0 %v2442
  %v2444 = vpop.xlane.xlu0 %2443
  %v2445 = vmul.f32 %v2444, 0.0625
  %v2446 = vadd.f32 %v2445, 1e-05
  %v2447 = vrsqrt.pop %v2446
  %v2448 = vmul.f32 %v2441, %v2447
  %v2449 = vlaneseq
  %v2450 = vshrl.u32 %v2449, 7
  %v2451 = vsub.s32 7, %v2450
  %v2452 = vrot.slane %v25, %v2451
  %v2453 = vmul.f32 %v2448, %v2452
  %v2454 = vlaneseq
  %v2455 = vshrl.u32 %v2454, 7
  %v2456 = vsub.s32 0, %v2455
  %v2457 = vrot.slane %v26, %v2456
  %v2458 = vadd.f32 %v2453, %v2457
  %v2459 = vtanh.pop %v2458
  %s2460 = scalar_lea.vmem %s4, 1024
  %v2461 = vld [vmem:[%s2460] sm:$0xff]
  %v2462 = vld [vmem:[%s2460 + $0x8] sm:$0xff]
  %v2463 = vld [vmem:[%s2460 + $0x10] sm:$0xff]
  %v2464 = vld [vmem:[%s2460 + $0x18] sm:$0xff]
  %v2465 = vld [vmem:[%s2460 + $0x20] sm:$0xff]
  %v2466 = vld [vmem:[%s2460 + $0x28] sm:$0xff]
  %v2467 = vld [vmem:[%s2460 + $0x30] sm:$0xff]
  %v2468 = vld [vmem:[%s2460 + $0x38] sm:$0xff]
  %v2469 = vld [vmem:[%s2460 + $0x40] sm:$0xff]
  %v2470 = vld [vmem:[%s2460 + $0x48] sm:$0xff]
  %v2471 = vld [vmem:[%s2460 + $0x50] sm:$0xff]
  %v2472 = vld [vmem:[%s2460 + $0x58] sm:$0xff]
  %v2473 = vld [vmem:[%s2460 + $0x60] sm:$0xff]
  %v2474 = vld [vmem:[%s2460 + $0x68] sm:$0xff]
  %v2475 = vld [vmem:[%s2460 + $0x70] sm:$0xff]
  %v2476 = vld [vmem:[%s2460 + $0x78] sm:$0xff]
  %v2477 = vlaneseq
  %v2478 = vshrl.u32 %v2477, 7
  %v2479 = vsub.s32 1, %v2478
  %v2480 = vrot.slane %v26, %v2479
  %2481 = vmatprep.subr.mxu0 0.0
  %2482 = vmatpush1.msra.mxu0 %v2461
  %2483 = vmatprep.subr.mxu0 0.0
  %2484 = vmatpush1.msra.mxu0 %v2462
  %2485 = vmatprep.subr.mxu0 0.0
  %2486 = vmatpush1.msra.mxu0 %v2463
  %2487 = vmatprep.subr.mxu0 0.0
  %2488 = vmatpush1.msra.mxu0 %v2464
  %2489 = vmatprep.subr.mxu0 0.0
  %2490 = vmatpush1.msra.mxu0 %v2465
  %2491 = vmatprep.subr.mxu0 0.0
  %2492 = vmatpush1.msra.mxu0 %v2466
  %2493 = vmatprep.subr.mxu0 0.0
  %2494 = vmatpush1.msra.mxu0 %v2467
  %2495 = vmatprep.subr.mxu0 0.0
  %2496 = vmatpush1.msra.mxu0 %v2468
  %2497 = vmatprep.subr.mxu0 0.0
  %2498 = vmatpush1.msra.mxu0 %v2469
  %2499 = vmatprep.subr.mxu0 0.0
  %2500 = vmatpush1.msra.mxu0 %v2470
  %2501 = vmatprep.subr.mxu0 0.0
  %2502 = vmatpush1.msra.mxu0 %v2471
  %2503 = vmatprep.subr.mxu0 0.0
  %2504 = vmatpush1.msra.mxu0 %v2472
  %2505 = vmatprep.subr.mxu0 0.0
  %2506 = vmatpush1.msra.mxu0 %v2473
  %2507 = vmatprep.subr.mxu0 0.0
  %2508 = vmatpush1.msra.mxu0 %v2474
  %2509 = vmatprep.subr.mxu0 0.0
  %2510 = vmatpush1.msra.mxu0 %v2475
  %2511 = vmatprep.subr.mxu0 0.0
  %2512 = vmatpush1.msra.mxu0 %v2476
  %2513 = vmatprep.subr.mxu0 0.0
  %2514 = vmatpush1.msra.mxu0 0.0
  %2515 = vmatprep.subr.mxu0 0.0
  %2516 = vmatpush1.msra.mxu0 0.0
  %2517 = vmatprep.subr.mxu0 0.0
  %2518 = vmatpush1.msra.mxu0 0.0
  %2519 = vmatprep.subr.mxu0 0.0
  %2520 = vmatpush1.msra.mxu0 0.0
  %2521 = vmatprep.subr.mxu0 0.0
  %2522 = vmatpush1.msra.mxu0 0.0
  %2523 = vmatprep.subr.mxu0 0.0
  %2524 = vmatpush1.msra.mxu0 0.0
  %2525 = vmatprep.subr.mxu0 0.0
  %2526 = vmatpush1.msra.mxu0 0.0
  %2527 = vmatprep.subr.mxu0 0.0
  %2528 = vmatpush1.msra.mxu0 0.0
  %2529 = vmatprep.subr.mxu0 0.0
  %2530 = vmatpush1.msra.mxu0 0.0
  %2531 = vmatprep.subr.mxu0 0.0
  %2532 = vmatpush1.msra.mxu0 0.0
  %2533 = vmatprep.subr.mxu0 0.0
  %2534 = vmatpush1.msra.mxu0 0.0
  %2535 = vmatprep.subr.mxu0 0.0
  %2536 = vmatpush1.msra.mxu0 0.0
  %2537 = vmatprep.subr.mxu0 0.0
  %2538 = vmatpush1.msra.mxu0 0.0
  %2539 = vmatprep.subr.mxu0 0.0
  %2540 = vmatpush1.msra.mxu0 0.0
  %2541 = vmatprep.subr.mxu0 0.0
  %2542 = vmatpush1.msra.mxu0 0.0
  %2543 = vmatprep.subr.mxu0 0.0
  %2544 = vmatpush1.msra.mxu0 0.0
  %2545 = vmatprep.mubr.f32.mxu0 0.0
  %2546 = vmatmul.mubr.f32.gmra.mrb[0].mxu0 %v2459
  %v2547 = vpop.f32.mrb[0].mxu0
  %v2548 = vadd.f32 %v2480, %v2547
  %v2549 = vpop.f32.mrb[0].mxu0
  %2550 = vdwg.mxu0
  %s2551 = scalar_lea.vmem %s4, 1152
  %v2552 = vld [vmem:[%s2551] sm:$0xff]
  %v2553 = vld [vmem:[%s2551 + $0x8] sm:$0xff]
  %v2554 = vld [vmem:[%s2551 + $0x10] sm:$0xff]
  %v2555 = vld [vmem:[%s2551 + $0x18] sm:$0xff]
  %v2556 = vld [vmem:[%s2551 + $0x20] sm:$0xff]
  %v2557 = vld [vmem:[%s2551 + $0x28] sm:$0xff]
  %v2558 = vld [vmem:[%s2551 + $0x30] sm:$0xff]
  %v2559 = vld [vmem:[%s2551 + $0x38] sm:$0xff]
  %v2560 = vld [vmem:[%s2551 + $0x40] sm:$0xff]
  %v2561 = vld [vmem:[%s2551 + $0x48] sm:$0xff]
  %v2562 = vld [vmem:[%s2551 + $0x50] sm:$0xff]
  %v2563 = vld [vmem:[%s2551 + $0x58] sm:$0xff]
  %v2564 = vld [vmem:[%s2551 + $0x60] sm:$0xff]
  %v2565 = vld [vmem:[%s2551 + $0x68] sm:$0xff]
  %v2566 = vld [vmem:[%s2551 + $0x70] sm:$0xff]
  %v2567 = vld [vmem:[%s2551 + $0x78] sm:$0xff]
  %s2568 = scalar_lea.vmem %s4, 1280
  %v2569 = vld [vmem:[%s2568] sm:$0xff]
  %v2570 = vld [vmem:[%s2568 + $0x8] sm:$0xff]
  %v2571 = vld [vmem:[%s2568 + $0x10] sm:$0xff]
  %v2572 = vld [vmem:[%s2568 + $0x18] sm:$0xff]
  %v2573 = vld [vmem:[%s2568 + $0x20] sm:$0xff]
  %v2574 = vld [vmem:[%s2568 + $0x28] sm:$0xff]
  %v2575 = vld [vmem:[%s2568 + $0x30] sm:$0xff]
  %v2576 = vld [vmem:[%s2568 + $0x38] sm:$0xff]
  %v2577 = vld [vmem:[%s2568 + $0x40] sm:$0xff]
  %v2578 = vld [vmem:[%s2568 + $0x48] sm:$0xff]
  %v2579 = vld [vmem:[%s2568 + $0x50] sm:$0xff]
  %v2580 = vld [vmem:[%s2568 + $0x58] sm:$0xff]
  %v2581 = vld [vmem:[%s2568 + $0x60] sm:$0xff]
  %v2582 = vld [vmem:[%s2568 + $0x68] sm:$0xff]
  %v2583 = vld [vmem:[%s2568 + $0x70] sm:$0xff]
  %v2584 = vld [vmem:[%s2568 + $0x78] sm:$0xff]
  %2585 = vmatprep.subr.mxu0 0.0
  %2586 = vmatpush1.msra.mxu0 %v2569
  %2587 = vmatprep.subr.mxu0 0.0
  %2588 = vmatpush1.msra.mxu0 %v2570
  %2589 = vmatprep.subr.mxu0 0.0
  %2590 = vmatpush1.msra.mxu0 %v2571
  %2591 = vmatprep.subr.mxu0 0.0
  %2592 = vmatpush1.msra.mxu0 %v2572
  %2593 = vmatprep.subr.mxu0 0.0
  %2594 = vmatpush1.msra.mxu0 %v2573
  %2595 = vmatprep.subr.mxu0 0.0
  %2596 = vmatpush1.msra.mxu0 %v2574
  %2597 = vmatprep.subr.mxu0 0.0
  %2598 = vmatpush1.msra.mxu0 %v2575
  %2599 = vmatprep.subr.mxu0 0.0
  %2600 = vmatpush1.msra.mxu0 %v2576
  %2601 = vmatprep.subr.mxu0 0.0
  %2602 = vmatpush1.msra.mxu0 %v2577
  %2603 = vmatprep.subr.mxu0 0.0
  %2604 = vmatpush1.msra.mxu0 %v2578
  %2605 = vmatprep.subr.mxu0 0.0
  %2606 = vmatpush1.msra.mxu0 %v2579
  %2607 = vmatprep.subr.mxu0 0.0
  %2608 = vmatpush1.msra.mxu0 %v2580
  %2609 = vmatprep.subr.mxu0 0.0
  %2610 = vmatpush1.msra.mxu0 %v2581
  %2611 = vmatprep.subr.mxu0 0.0
  %2612 = vmatpush1.msra.mxu0 %v2582
  %2613 = vmatprep.subr.mxu0 0.0
  %2614 = vmatpush1.msra.mxu0 %v2583
  %2615 = vmatprep.subr.mxu0 0.0
  %2616 = vmatpush1.msra.mxu0 %v2584
  %2617 = vmatprep.subr.mxu0 0.0
  %2618 = vmatpush1.msra.mxu0 0.0
  %2619 = vmatprep.subr.mxu0 0.0
  %2620 = vmatpush1.msra.mxu0 0.0
  %2621 = vmatprep.subr.mxu0 0.0
  %2622 = vmatpush1.msra.mxu0 0.0
  %2623 = vmatprep.subr.mxu0 0.0
  %2624 = vmatpush1.msra.mxu0 0.0
  %2625 = vmatprep.subr.mxu0 0.0
  %2626 = vmatpush1.msra.mxu0 0.0
  %2627 = vmatprep.subr.mxu0 0.0
  %2628 = vmatpush1.msra.mxu0 0.0
  %2629 = vmatprep.subr.mxu0 0.0
  %2630 = vmatpush1.msra.mxu0 0.0
  %2631 = vmatprep.subr.mxu0 0.0
  %2632 = vmatpush1.msra.mxu0 0.0
  %2633 = vmatprep.subr.mxu0 0.0
  %2634 = vmatpush1.msra.mxu0 0.0
  %2635 = vmatprep.subr.mxu0 0.0
  %2636 = vmatpush1.msra.mxu0 0.0
  %2637 = vmatprep.subr.mxu0 0.0
  %2638 = vmatpush1.msra.mxu0 0.0
  %2639 = vmatprep.subr.mxu0 0.0
  %2640 = vmatpush1.msra.mxu0 0.0
  %2641 = vmatprep.subr.mxu0 0.0
  %2642 = vmatpush1.msra.mxu0 0.0
  %2643 = vmatprep.subr.mxu0 0.0
  %2644 = vmatpush1.msra.mxu0 0.0
  %2645 = vmatprep.subr.mxu0 0.0
  %2646 = vmatpush1.msra.mxu0 0.0
  %2647 = vmatprep.subr.mxu0 0.0
  %2648 = vmatpush1.msra.mxu0 0.0
  %2649 = vmatprep.mubr.f32.mxu0 0.0
  %2650 = vmatmul.mubr.f32.gmra.mrb[0].mxu0 %v2169
  %v2651 = vpop.f32.mrb[0].mxu0
  %v2652 = vadd.f32 0.0, %v2651
  %v2653 = vpop.f32.mrb[0].mxu0
  %2654 = vdwg.mxu0
  %2655 = vmatprep.subr.mxu0 0.0
  %2656 = vmatpush1.msra.mxu0 %v2552
  %2657 = vmatprep.subr.mxu0 0.0
  %2658 = vmatpush1.msra.mxu0 %v2553
  %2659 = vmatprep.subr.mxu0 0.0
  %2660 = vmatpush1.msra.mxu0 %v2554
  %2661 = vmatprep.subr.mxu0 0.0
  %2662 = vmatpush1.msra.mxu0 %v2555
  %2663 = vmatprep.subr.mxu0 0.0
  %2664 = vmatpush1.msra.mxu0 %v2556
  %2665 = vmatprep.subr.mxu0 0.0
  %2666 = vmatpush1.msra.mxu0 %v2557
  %2667 = vmatprep.subr.mxu0 0.0
  %2668 = vmatpush1.msra.mxu0 %v2558
  %2669 = vmatprep.subr.mxu0 0.0
  %2670 = vmatpush1.msra.mxu0 %v2559
  %2671 = vmatprep.subr.mxu0 0.0
  %2672 = vmatpush1.msra.mxu0 %v2560
  %2673 = vmatprep.subr.mxu0 0.0
  %2674 = vmatpush1.msra.mxu0 %v2561
  %2675 = vmatprep.subr.mxu0 0.0
  %2676 = vmatpush1.msra.mxu0 %v2562
  %2677 = vmatprep.subr.mxu0 0.0
  %2678 = vmatpush1.msra.mxu0 %v2563
  %2679 = vmatprep.subr.mxu0 0.0
  %2680 = vmatpush1.msra.mxu0 %v2564
  %2681 = vmatprep.subr.mxu0 0.0
  %2682 = vmatpush1.msra.mxu0 %v2565
  %2683 = vmatprep.subr.mxu0 0.0
  %2684 = vmatpush1.msra.mxu0 %v2566
  %2685 = vmatprep.subr.mxu0 0.0
  %2686 = vmatpush1.msra.mxu0 %v2567
  %2687 = vmatprep.subr.mxu0 0.0
  %2688 = vmatpush1.msra.mxu0 0.0
  %2689 = vmatprep.subr.mxu0 0.0
  %2690 = vmatpush1.msra.mxu0 0.0
  %2691 = vmatprep.subr.mxu0 0.0
  %2692 = vmatpush1.msra.mxu0 0.0
  %2693 = vmatprep.subr.mxu0 0.0
  %2694 = vmatpush1.msra.mxu0 0.0
  %2695 = vmatprep.subr.mxu0 0.0
  %2696 = vmatpush1.msra.mxu0 0.0
  %2697 = vmatprep.subr.mxu0 0.0
  %2698 = vmatpush1.msra.mxu0 0.0
  %2699 = vmatprep.subr.mxu0 0.0
  %2700 = vmatpush1.msra.mxu0 0.0
  %2701 = vmatprep.subr.mxu0 0.0
  %2702 = vmatpush1.msra.mxu0 0.0
  %2703 = vmatprep.subr.mxu0 0.0
  %2704 = vmatpush1.msra.mxu0 0.0
  %2705 = vmatprep.subr.mxu0 0.0
  %2706 = vmatpush1.msra.mxu0 0.0
  %2707 = vmatprep.subr.mxu0 0.0
  %2708 = vmatpush1.msra.mxu0 0.0
  %2709 = vmatprep.subr.mxu0 0.0
  %2710 = vmatpush1.msra.mxu0 0.0
  %2711 = vmatprep.subr.mxu0 0.0
  %2712 = vmatpush1.msra.mxu0 0.0
  %2713 = vmatprep.subr.mxu0 0.0
  %2714 = vmatpush1.msra.mxu0 0.0
  %2715 = vmatprep.subr.mxu0 0.0
  %2716 = vmatpush1.msra.mxu0 0.0
  %2717 = vmatprep.subr.mxu0 0.0
  %2718 = vmatpush1.msra.mxu0 0.0
  %2719 = vmatprep.mubr.f32.mxu0 0.0
  %2720 = vmatmul.mubr.f32.gmra.mrb[0].mxu0 %v1962
  %v2721 = vpop.f32.mrb[0].mxu0
  %v2722 = vadd.f32 %v2652, %v2721
  %v2723 = vpop.f32.mrb[0].mxu0
  %2724 = vdwg.mxu0
  %s2725 = scalar_lea.vmem %s4, 1408
  %v2726 = vld [vmem:[%s2725] sm:$0xff]
  %v2727 = vld [vmem:[%s2725 + $0x8] sm:$0xff]
  %v2728 = vld [vmem:[%s2725 + $0x10] sm:$0xff]
  %v2729 = vld [vmem:[%s2725 + $0x18] sm:$0xff]
  %v2730 = vld [vmem:[%s2725 + $0x20] sm:$0xff]
  %v2731 = vld [vmem:[%s2725 + $0x28] sm:$0xff]
  %v2732 = vld [vmem:[%s2725 + $0x30] sm:$0xff]
  %v2733 = vld [vmem:[%s2725 + $0x38] sm:$0xff]
  %v2734 = vld [vmem:[%s2725 + $0x40] sm:$0xff]
  %v2735 = vld [vmem:[%s2725 + $0x48] sm:$0xff]
  %v2736 = vld [vmem:[%s2725 + $0x50] sm:$0xff]
  %v2737 = vld [vmem:[%s2725 + $0x58] sm:$0xff]
  %v2738 = vld [vmem:[%s2725 + $0x60] sm:$0xff]
  %v2739 = vld [vmem:[%s2725 + $0x68] sm:$0xff]
  %v2740 = vld [vmem:[%s2725 + $0x70] sm:$0xff]
  %v2741 = vld [vmem:[%s2725 + $0x78] sm:$0xff]
  %2742 = vmatprep.subr.mxu0 0.0
  %2743 = vmatpush1.msra.mxu0 %v2726
  %2744 = vmatprep.subr.mxu0 0.0
  %2745 = vmatpush1.msra.mxu0 %v2727
  %2746 = vmatprep.subr.mxu0 0.0
  %2747 = vmatpush1.msra.mxu0 %v2728
  %2748 = vmatprep.subr.mxu0 0.0
  %2749 = vmatpush1.msra.mxu0 %v2729
  %2750 = vmatprep.subr.mxu0 0.0
  %2751 = vmatpush1.msra.mxu0 %v2730
  %2752 = vmatprep.subr.mxu0 0.0
  %2753 = vmatpush1.msra.mxu0 %v2731
  %2754 = vmatprep.subr.mxu0 0.0
  %2755 = vmatpush1.msra.mxu0 %v2732
  %2756 = vmatprep.subr.mxu0 0.0
  %2757 = vmatpush1.msra.mxu0 %v2733
  %2758 = vmatprep.subr.mxu0 0.0
  %2759 = vmatpush1.msra.mxu0 %v2734
  %2760 = vmatprep.subr.mxu0 0.0
  %2761 = vmatpush1.msra.mxu0 %v2735
  %2762 = vmatprep.subr.mxu0 0.0
  %2763 = vmatpush1.msra.mxu0 %v2736
  %2764 = vmatprep.subr.mxu0 0.0
  %2765 = vmatpush1.msra.mxu0 %v2737
  %2766 = vmatprep.subr.mxu0 0.0
  %2767 = vmatpush1.msra.mxu0 %v2738
  %2768 = vmatprep.subr.mxu0 0.0
  %2769 = vmatpush1.msra.mxu0 %v2739
  %2770 = vmatprep.subr.mxu0 0.0
  %2771 = vmatpush1.msra.mxu0 %v2740
  %2772 = vmatprep.subr.mxu0 0.0
  %2773 = vmatpush1.msra.mxu0 %v2741
  %2774 = vmatprep.subr.mxu0 0.0
  %2775 = vmatpush1.msra.mxu0 0.0
  %2776 = vmatprep.subr.mxu0 0.0
  %2777 = vmatpush1.msra.mxu0 0.0
  %2778 = vmatprep.subr.mxu0 0.0
  %2779 = vmatpush1.msra.mxu0 0.0
  %2780 = vmatprep.subr.mxu0 0.0
  %2781 = vmatpush1.msra.mxu0 0.0
  %2782 = vmatprep.subr.mxu0 0.0
  %2783 = vmatpush1.msra.mxu0 0.0
  %2784 = vmatprep.subr.mxu0 0.0
  %2785 = vmatpush1.msra.mxu0 0.0
  %2786 = vmatprep.subr.mxu0 0.0
  %2787 = vmatpush1.msra.mxu0 0.0
  %2788 = vmatprep.subr.mxu0 0.0
  %2789 = vmatpush1.msra.mxu0 0.0
  %2790 = vmatprep.subr.mxu0 0.0
  %2791 = vmatpush1.msra.mxu0 0.0
  %2792 = vmatprep.subr.mxu0 0.0
  %2793 = vmatpush1.msra.mxu0 0.0
  %2794 = vmatprep.subr.mxu0 0.0
  %2795 = vmatpush1.msra.mxu0 0.0
  %2796 = vmatprep.subr.mxu0 0.0
  %2797 = vmatpush1.msra.mxu0 0.0
  %2798 = vmatprep.subr.mxu0 0.0
  %2799 = vmatpush1.msra.mxu0 0.0
  %2800 = vmatprep.subr.mxu0 0.0
  %2801 = vmatpush1.msra.mxu0 0.0
  %2802 = vmatprep.subr.mxu0 0.0
  %2803 = vmatpush1.msra.mxu0 0.0
  %2804 = vmatprep.subr.mxu0 0.0
  %2805 = vmatpush1.msra.mxu0 0.0
  %2806 = vmatprep.mubr.f32.mxu0 0.0
  %2807 = vmatmul.mubr.f32.gmra.mrb[0].mxu0 %v1754
  %v2808 = vpop.f32.mrb[0].mxu0
  %v2809 = vadd.f32 0.0, %v2808
  %v2810 = vpop.f32.mrb[0].mxu0
  %2811 = vdwg.mxu0
  %v2812 = vadd.f32 %v2722, %v2809
  %v2813 = vlaneseq
  %v2814 = vshrl.u32 %v2813, 7
  %v2815 = vsub.s32 2, %v2814
  %v2816 = vrot.slane %v26, %v2815
  %v2817 = vadd.f32 %v2812, %v2816
  %2818 = vadd.xlane.f32.xlu0 %v2817
  %v2819 = vpop.xlane.xlu0 %2818
  %v2820 = vmul.f32 %v2819, 0.0625
  %v2821 = vsub.f32 %v2817, %v2820
  %v2822 = vsel %vm1734, %v2821, 0.0
  %v2823 = vmul.f32 %v2822, %v2822
  %2824 = vadd.xlane.f32.xlu0 %v2823
  %v2825 = vpop.xlane.xlu0 %2824
  %v2826 = vmul.f32 %v2825, 0.0625
  %v2827 = vadd.f32 %v2826, 1e-05
  %v2828 = vrsqrt.pop %v2827
  %v2829 = vmul.f32 %v2822, %v2828
  %v2830 = vlaneseq
  %v2831 = vshrl.u32 %v2830, 7
  %v2832 = vsub.s32 3, %v2831
  %v2833 = vrot.slane %v26, %v2832
  %v2834 = vmul.f32 %v2829, %v2833
  %v2835 = vlaneseq
  %v2836 = vshrl.u32 %v2835, 7
  %v2837 = vsub.s32 4, %v2836
  %v2838 = vrot.slane %v26, %v2837
  %v2839 = vadd.f32 %v2834, %v2838
  %v2840 = vtanh.pop %v2839
  %s2841 = scalar_lea.vmem %s4, 1536
  %v2842 = vld [vmem:[%s2841] sm:$0xff]
  %v2843 = vld [vmem:[%s2841 + $0x8] sm:$0xff]
  %v2844 = vld [vmem:[%s2841 + $0x10] sm:$0xff]
  %v2845 = vld [vmem:[%s2841 + $0x18] sm:$0xff]
  %v2846 = vld [vmem:[%s2841 + $0x20] sm:$0xff]
  %v2847 = vld [vmem:[%s2841 + $0x28] sm:$0xff]
  %v2848 = vld [vmem:[%s2841 + $0x30] sm:$0xff]
  %v2849 = vld [vmem:[%s2841 + $0x38] sm:$0xff]
  %v2850 = vld [vmem:[%s2841 + $0x40] sm:$0xff]
  %v2851 = vld [vmem:[%s2841 + $0x48] sm:$0xff]
  %v2852 = vld [vmem:[%s2841 + $0x50] sm:$0xff]
  %v2853 = vld [vmem:[%s2841 + $0x58] sm:$0xff]
  %v2854 = vld [vmem:[%s2841 + $0x60] sm:$0xff]
  %v2855 = vld [vmem:[%s2841 + $0x68] sm:$0xff]
  %v2856 = vld [vmem:[%s2841 + $0x70] sm:$0xff]
  %v2857 = vld [vmem:[%s2841 + $0x78] sm:$0xff]
  %v2858 = vlaneseq
  %v2859 = vshrl.u32 %v2858, 7
  %v2860 = vsub.s32 5, %v2859
  %v2861 = vrot.slane %v26, %v2860
  %2862 = vmatprep.subr.mxu0 0.0
  %2863 = vmatpush1.msra.mxu0 %v2842
  %2864 = vmatprep.subr.mxu0 0.0
  %2865 = vmatpush1.msra.mxu0 %v2843
  %2866 = vmatprep.subr.mxu0 0.0
  %2867 = vmatpush1.msra.mxu0 %v2844
  %2868 = vmatprep.subr.mxu0 0.0
  %2869 = vmatpush1.msra.mxu0 %v2845
  %2870 = vmatprep.subr.mxu0 0.0
  %2871 = vmatpush1.msra.mxu0 %v2846
  %2872 = vmatprep.subr.mxu0 0.0
  %2873 = vmatpush1.msra.mxu0 %v2847
  %2874 = vmatprep.subr.mxu0 0.0
  %2875 = vmatpush1.msra.mxu0 %v2848
  %2876 = vmatprep.subr.mxu0 0.0
  %2877 = vmatpush1.msra.mxu0 %v2849
  %2878 = vmatprep.subr.mxu0 0.0
  %2879 = vmatpush1.msra.mxu0 %v2850
  %2880 = vmatprep.subr.mxu0 0.0
  %2881 = vmatpush1.msra.mxu0 %v2851
  %2882 = vmatprep.subr.mxu0 0.0
  %2883 = vmatpush1.msra.mxu0 %v2852
  %2884 = vmatprep.subr.mxu0 0.0
  %2885 = vmatpush1.msra.mxu0 %v2853
  %2886 = vmatprep.subr.mxu0 0.0
  %2887 = vmatpush1.msra.mxu0 %v2854
  %2888 = vmatprep.subr.mxu0 0.0
  %2889 = vmatpush1.msra.mxu0 %v2855
  %2890 = vmatprep.subr.mxu0 0.0
  %2891 = vmatpush1.msra.mxu0 %v2856
  %2892 = vmatprep.subr.mxu0 0.0
  %2893 = vmatpush1.msra.mxu0 %v2857
  %2894 = vmatprep.subr.mxu0 0.0
  %2895 = vmatpush1.msra.mxu0 0.0
  %2896 = vmatprep.subr.mxu0 0.0
  %2897 = vmatpush1.msra.mxu0 0.0
  %2898 = vmatprep.subr.mxu0 0.0
  %2899 = vmatpush1.msra.mxu0 0.0
  %2900 = vmatprep.subr.mxu0 0.0
  %2901 = vmatpush1.msra.mxu0 0.0
  %2902 = vmatprep.subr.mxu0 0.0
  %2903 = vmatpush1.msra.mxu0 0.0
  %2904 = vmatprep.subr.mxu0 0.0
  %2905 = vmatpush1.msra.mxu0 0.0
  %2906 = vmatprep.subr.mxu0 0.0
  %2907 = vmatpush1.msra.mxu0 0.0
  %2908 = vmatprep.subr.mxu0 0.0
  %2909 = vmatpush1.msra.mxu0 0.0
  %2910 = vmatprep.subr.mxu0 0.0
  %2911 = vmatpush1.msra.mxu0 0.0
  %2912 = vmatprep.subr.mxu0 0.0
  %2913 = vmatpush1.msra.mxu0 0.0
  %2914 = vmatprep.subr.mxu0 0.0
  %2915 = vmatpush1.msra.mxu0 0.0
  %2916 = vmatprep.subr.mxu0 0.0
  %2917 = vmatpush1.msra.mxu0 0.0
  %2918 = vmatprep.subr.mxu0 0.0
  %2919 = vmatpush1.msra.mxu0 0.0
  %2920 = vmatprep.subr.mxu0 0.0
  %2921 = vmatpush1.msra.mxu0 0.0
  %2922 = vmatprep.subr.mxu0 0.0
  %2923 = vmatpush1.msra.mxu0 0.0
  %2924 = vmatprep.subr.mxu0 0.0
  %2925 = vmatpush1.msra.mxu0 0.0
  %2926 = vmatprep.mubr.f32.mxu0 0.0
  %2927 = vmatmul.mubr.f32.gmra.mrb[0].mxu0 %v2840
  %v2928 = vpop.f32.mrb[0].mxu0
  %v2929 = vadd.f32 %v2861, %v2928
  %v2930 = vpop.f32.mrb[0].mxu0
  %2931 = vdwg.mxu0
  %v2932 = vadd.f32 %v2548, %v2929
  %2933 = vst [vmem:[%s6] sm:$0xff] %v2932
  // Predicated region
  $region26: #{tal_forward.1} parent=0 // pred_check
    _
  $region27: #{tal_forward.1} parent=0 // pred_check_branch
    %2935 = sbr.rel (0) target = $region29
  $region28: #{tal_forward.1} parent=0 // pred_region
    _
  $region29: #{tal_forward.1} parent=0 // pred_fallthru
    _
  // Predicated region
  $region30: #{tal_forward.1} parent=0 // pred_check
    _
  $region31: #{tal_forward.1} parent=0 // pred_check_branch
    %2937 = sbr.rel (0) target = $region33
  $region32: #{tal_forward.1} parent=0 // pred_region
    _
  $region33: #{tal_forward.1} parent=0 // pred_fallthru
    _

</llo_original>
